<compile_context>
chip_gen: v7x
topology: tpu7x:2x2x1
jax: 0.10.0
libtpu: 0.0.40
codegen_flags: <defaults>
</compile_context>

<pallas_src>
import numpy as np
import jax
import jax.numpy as jnp
from jax import lax
from jax.experimental import pallas as pl
from jax.experimental.pallas import tpu as pltpu

EMB_DIM = 64                      # emb_dim (E)
HIDDEN = 2 * EMB_DIM              # DNC hidden/controller output size (H = 128)
NR_CELLS = 16                     # nr_cells (m)
CELL_SIZE = EMB_DIM               # cell_size (w), read_heads = 1
CLIP = 20.0                       # DNC controller clip
DELTA = 1e-6                      # DNC epsilon (util.δ)

GATE_IN = EMB_DIM + CELL_SIZE + HIDDEN      # 256  ([x | last_read | h])
IFACE_RAW = 4 * CELL_SIZE + 8               # 264  (rk|wk|erase|wv|scalars)
IFACE_PAD = 384                             # lane-padded to a multiple of 128
OUT_IN = HIDDEN + CELL_SIZE                 # 192  ([controller_out | read_vec])


# ------------------------------ DNC encoder kernel ---------------------------
def _dnc_encoder_kernel(
    len_ref,                                            # SMEM (n_enc,) seq lengths
    x_ref,                                              # (maxT, E) padded embedded seq
    wg_ref, bg_ref,                                     # fused LSTM gates  (256,512)/(1,512)
    wi_ref, bi_ref,                                     # fused interface   (128,384)/(1,384)
    wo_ref, bo_ref,                                     # fused output proj (192,64)/(1,64)
    h0_ref,                                             # initial LSTM hidden (= initial cell)
    out_ref,                                            # (1, E) DNC output at last real step
    h_s, c_s, lr_s, mem_s, link_s, prec_s, rw_s, ww_s, usage_s,
):
    m, w, H, E = NR_CELLS, CELL_SIZE, HIDDEN, EMB_DIM
    k = pl.program_id(0)
    seq_len = len_ref[k]

    # ---- per-encoder state reset (reset_experience=True) ----
    h_s[...] = h0_ref[...]
    c_s[...] = h0_ref[...]
    lr_s[...] = jnp.zeros(lr_s.shape, jnp.float32)
    mem_s[...] = jnp.full(mem_s.shape, DELTA, jnp.float32)
    link_s[...] = jnp.zeros(link_s.shape, jnp.float32)
    prec_s[...] = jnp.zeros(prec_s.shape, jnp.float32)
    rw_s[...] = jnp.full(rw_s.shape, DELTA, jnp.float32)
    ww_s[...] = jnp.full(ww_s.shape, DELTA, jnp.float32)
    usage_s[...] = jnp.zeros(usage_s.shape, jnp.float32)

    rid = lax.broadcasted_iota(jnp.int32, (m, m), 0)
    cid = lax.broadcasted_iota(jnp.int32, (m, m), 1)
    eye = rid == cid

    def to_col(v):
        # (1, m) -> (m, 1) via masked lane reduction (XLU); no MXU, no transpose.
        return jnp.sum(jnp.where(eye, jnp.broadcast_to(v, (m, m)), 0.0),
                       axis=1, keepdims=True)

    def content_weights(memory, key_vec, strength):
        # cosine-similarity content addressing with rsqrt (EUP slot).
        mem_n = memory * lax.rsqrt(
            jnp.sum(memory * memory, axis=1, keepdims=True) + DELTA)
        key_n = key_vec * lax.rsqrt(
            jnp.sum(key_vec * key_vec, axis=1, keepdims=True) + DELTA)
        sim = lax.dot_general(key_n, mem_n, (((1,), (1,)), ((), ())),
                              preferred_element_type=jnp.float32)       # (1, m)
        return jax.nn.softmax(sim * strength, axis=-1)

    def softplus(x):                                    # numerically stable
        return jnp.maximum(x, 0.0) + jnp.log(1.0 + jnp.exp(-jnp.abs(x)))

    def step(t, carry):
        x = x_ref[pl.ds(t, 1), :]                       # (1, E)
        h = h_s[...]
        c = c_s[...]
        last_read = lr_s[...]
        mem = mem_s[...]
        link = link_s[...]
        prec = prec_s[...]
        rw_prev = rw_s[...]
        ww_prev = ww_s[...]
        usage = usage_s[...]

        # ---- LSTM controller (PyTorch gate order i, f, g, o); fused weight,
        #      3 slice-dots (M=1 -> latency-bound; avoids lane-concat relayout)
        gates = (jnp.dot(x, wg_ref[0:E, :], preferred_element_type=jnp.float32)
                 + jnp.dot(last_read, wg_ref[E:E + w, :],
                           preferred_element_type=jnp.float32)
                 + jnp.dot(h, wg_ref[E + w:E + w + H, :],
                           preferred_element_type=jnp.float32)
                 + bg_ref[...])
        i_g = jax.nn.sigmoid(gates[:, 0 * H:1 * H])
        f_g = jax.nn.sigmoid(gates[:, 1 * H:2 * H])
        g_g = jnp.tanh(gates[:, 2 * H:3 * H])
        o_g = jax.nn.sigmoid(gates[:, 3 * H:4 * H])
        c_new = f_g * c + i_g * g_g
        h_new = o_g * jnp.tanh(c_new)
        out = jnp.clip(h_new, -CLIP, CLIP)              # controller output

        # ---- interface vector: ONE fused (1,H)x(H,384) matmul, static slices
        iface = jnp.dot(out, wi_ref[...], preferred_element_type=jnp.float32) + bi_ref[...]
        read_key = jnp.tanh(iface[:, 0:w])
        write_key = jnp.tanh(iface[:, w:2 * w])
        erase_vec = jax.nn.sigmoid(iface[:, 2 * w:3 * w])
        write_vec = jnp.tanh(iface[:, 3 * w:4 * w])
        sc = iface[:, 4 * w:4 * w + 8]
        read_strength = softplus(sc[:, 0:1])
        write_strength = softplus(sc[:, 1:2])
        free_gate = jax.nn.sigmoid(sc[:, 2:3])
        alloc_gate = jax.nn.sigmoid(sc[:, 3:4])
        write_gate = jax.nn.sigmoid(sc[:, 4:5])
        read_modes = jax.nn.softmax(sc[:, 5:8], axis=-1)    # [backward, forward, content]

        # ---- memory write ----
        usage = usage + (1.0 - usage) * ww_prev             # single write head
        usage = usage * (1.0 - free_gate * rw_prev)         # single read head

        wcw = content_weights(mem, write_key, write_strength)        # (1, m)

        # allocation weighting == sort-ascending + exclusive cumprod, O(m^2)
        # TODO(synk): torch.topk's tie ordering is unspecified; ties here are
        # broken deterministically by lower memory index first.
        u = DELTA + (1.0 - DELTA) * usage
        u_rows = jnp.broadcast_to(to_col(u), (m, m))         # [j, i] = u[j]
        u_cols = jnp.broadcast_to(u, (m, m))                 # [j, i] = u[i]
        precedes = (u_rows < u_cols) | ((u_rows == u_cols) & (rid < cid))
        log_prod = jnp.sum(jnp.where(precedes, jnp.log(u_rows), 0.0),
                           axis=0, keepdims=True)
        alloc = (1.0 - u) * jnp.exp(log_prod)                # (1, m)

        ww = write_gate * (alloc_gate * alloc + (1.0 - alloc_gate) * wcw)

        ww_col = to_col(ww)                                  # (m, 1), reused twice
        ww_rows_w = jnp.broadcast_to(ww_col, (m, w))         # row i filled with ww[i]
        mem = mem * (1.0 - ww_rows_w * erase_vec) + ww_rows_w * write_vec

        ww_i = jnp.broadcast_to(ww_col, (m, m))              # [i, j] = ww[i]
        ww_j = jnp.broadcast_to(ww, (m, m))                  # [i, j] = ww[j]
        prec_j = jnp.broadcast_to(prec, (m, m))              # [i, j] = prec[j]
        link = (1.0 - ww_i - ww_j) * link + ww_i * prec_j
        link = jnp.where(eye, 0.0, link)                     # zero diagonal

        prec = (1.0 - jnp.sum(ww, axis=1, keepdims=True)) * prec + ww

        # ---- memory read ----
        rcw = content_weights(mem, read_key, read_strength)              # (1, m)
        fwd = lax.dot_general(rw_prev, link, (((1,), (1,)), ((), ())),
                              preferred_element_type=jnp.float32)        # L @ rw
        bwd = jnp.dot(rw_prev, link, preferred_element_type=jnp.float32)  # L^T @ rw
        rw_new = (read_modes[:, 0:1] * bwd + read_modes[:, 1:2] * fwd
                  + read_modes[:, 2:3] * rcw)
        read_vec = jnp.dot(rw_new, mem, preferred_element_type=jnp.float32)  # (1, w)

        # ---- persist state ----
        h_s[...] = h_new
        c_s[...] = c_new
        lr_s[...] = read_vec
        mem_s[...] = mem
        link_s[...] = link
        prec_s[...] = prec
        rw_s[...] = rw_new
        ww_s[...] = ww
        usage_s[...] = usage
        return carry

    lax.fori_loop(0, seq_len, step, 0)

    # ---- DNC output projection ONLY at the last real timestep ----
    out_last = jnp.clip(h_s[...], -CLIP, CLIP)
    out_ref[...] = (jnp.dot(out_last, wo_ref[0:H, :], preferred_element_type=jnp.float32)
                    + jnp.dot(lr_s[...], wo_ref[H:H + w, :],
                              preferred_element_type=jnp.float32)
                    + bo_ref[...])


def dnc_encode_all(x_pad, lengths, Wg, bg, Wi, bi, Wo, bo, h0):
    """Run n_enc independent DNC encoders in one launch.

    x_pad: (n_enc, maxT, E); lengths: (n_enc,) int32. Returns (n_enc, E)."""
    n_enc, max_t, E = x_pad.shape
    H, w, m = HIDDEN, CELL_SIZE, NR_CELLS

    def espec(a, b):
        return pl.BlockSpec((None, a, b), lambda k, lens: (k, 0, 0))

    grid_spec = pltpu.PrefetchScalarGridSpec(
        num_scalar_prefetch=1,
        grid=(n_enc,),
        in_specs=[
            espec(max_t, E),              # x_pad
            espec(GATE_IN, 4 * H),        # Wg
            espec(1, 4 * H),              # bg
            espec(H, IFACE_PAD),          # Wi
            espec(1, IFACE_PAD),          # bi
            espec(OUT_IN, E),             # Wo
            espec(1, E),                  # bo
            espec(1, H),                  # h0
        ],
        out_specs=pl.BlockSpec((None, 1, E), lambda k, lens: (k, 0, 0)),
        scratch_shapes=[
            pltpu.VMEM((1, H), jnp.float32),   # h
            pltpu.VMEM((1, H), jnp.float32),   # c
            pltpu.VMEM((1, w), jnp.float32),   # last read vector
            pltpu.VMEM((m, w), jnp.float32),   # memory matrix
            pltpu.VMEM((m, m), jnp.float32),   # link matrix
            pltpu.VMEM((1, m), jnp.float32),   # precedence
            pltpu.VMEM((1, m), jnp.float32),   # read weights
            pltpu.VMEM((1, m), jnp.float32),   # write weights
            pltpu.VMEM((1, m), jnp.float32),   # usage
        ],
    )
    out = pl.pallas_call(
        _dnc_encoder_kernel,
        out_shape=jax.ShapeDtypeStruct((n_enc, 1, E), jnp.float32),
        grid_spec=grid_spec,
        compiler_params=pltpu.CompilerParams(
            dimension_semantics=("parallel",)),      # encoder-level parallelism (v7x)
    )(lengths, x_pad, Wg, bg, Wi, bi, Wo, bo, h0)
    return out.reshape(n_enc, E)


# --------------------------- context mean + decoder ---------------------------
def _decoder_kernel(ctx_ref, w_ref, b_ref, o_ref):
    ctx = jnp.mean(ctx_ref[...], axis=0, keepdims=True)            # (1, E)
    o_ref[...] = jnp.dot(ctx, w_ref[...], preferred_element_type=jnp.float32) + b_ref[...]


def decode_contexts(contexts, w_dec_t, b_dec):
    V = w_dec_t.shape[1]
    return pl.pallas_call(
        _decoder_kernel,
        out_shape=jax.ShapeDtypeStruct((1, V), jnp.float32),
        in_specs=[pl.BlockSpec(contexts.shape, lambda: (0, 0)),
                  pl.BlockSpec(w_dec_t.shape, lambda: (0, 0)),
                  pl.BlockSpec(b_dec.shape, lambda: (0, 0))],
        out_specs=pl.BlockSpec((1, V), lambda: (0, 0)),
    )(contexts, w_dec_t, b_dec)


# ------------------------------- parameter init -------------------------------
def init_params(key, vocab_sizes, emb_dim=EMB_DIM):
    K = len(vocab_sizes)
    E, H, w = emb_dim, 2 * emb_dim, emb_dim

    def uni(k, shape, scale):
        return jax.random.uniform(k, shape, jnp.float32, -scale, scale)

    keys = jax.random.split(key, 2 * K + 2)
    params = {'embeddings': [], 'encoders': []}
    for i in range(K):
        params['embeddings'].append(uni(keys[i], (vocab_sizes[i], E), 0.1))

    for i in range(K):
        ek = jax.random.split(keys[K + i], 17)
        s = 1.0 / np.sqrt(H)
        w_ih = uni(ek[0], (4 * H, E + w), s)            # LSTM input = [x, last_read]
        w_hh = uni(ek[1], (4 * H, H), s)
        b_ih = uni(ek[2], (4 * H,), s)
        b_hh = uni(ek[3], (4 * H,), s)
        si = 1.0 / np.sqrt(H)
        w_rk = uni(ek[4], (w, H), si); b_rk = uni(ek[5], (w,), si)
        w_wk = uni(ek[6], (w, H), si); b_wk = uni(ek[7], (w,), si)
        w_ev = uni(ek[8], (w, H), si); b_ev = uni(ek[9], (w,), si)
        w_wv = uni(ek[10], (w, H), si); b_wv = uni(ek[11], (w,), si)
        w_sc = uni(ek[12], (8, H), si); b_sc = uni(ek[13], (8,), si)
        so = 1.0 / np.sqrt(H + w)
        w_out = uni(ek[14], (E, H + w), so); b_out = uni(ek[15], (E,), so)
        # deterministic stand-in for xavier_uniform_ of the initial (h, c)
        h0 = uni(ek[16], (1, H), float(np.sqrt(6.0 / (1 + H))))

        # host-side weight fusion ------------------------------------------------
        Wg = jnp.concatenate([jnp.transpose(w_ih),          # rows [x | last_read]
                              jnp.transpose(w_hh)], axis=0)  # rows [h]
        bg = (b_ih + b_hh).reshape(1, 4 * H)
        Wi = jnp.concatenate([jnp.transpose(w_rk), jnp.transpose(w_wk),
                              jnp.transpose(w_ev), jnp.transpose(w_wv),
                              jnp.transpose(w_sc)], axis=1)  # (H, 264)
        bi = jnp.concatenate([b_rk, b_wk, b_ev, b_wv, b_sc]).reshape(1, IFACE_RAW)
        Wi = jnp.pad(Wi, ((0, 0), (0, IFACE_PAD - IFACE_RAW)))   # lane-dense 384
        bi = jnp.pad(bi, ((0, 0), (0, IFACE_PAD - IFACE_RAW)))
        Wo = jnp.transpose(w_out)                            # (H + w, E)
        bo = b_out.reshape(1, E)

        params['encoders'].append({'Wg': Wg, 'bg': bg, 'Wi': Wi, 'bi': bi,
                                   'Wo': Wo, 'bo': bo, 'h0': h0})

    V = vocab_sizes[K - 1]
    sd = 1.0 / np.sqrt(E)
    params['decoder_w_t'] = jnp.transpose(uni(keys[2 * K], (V, E), sd))   # (E, V)
    params['decoder_b'] = uni(keys[2 * K + 1], (V,), sd).reshape(1, V)
    return params


# --------------------------------- MANN forward --------------------------------
def mann_forward(input_adm, params, vocab_sizes):
    """input_adm: list of admissions, each admission = [codes_type0, ..., codes_type{K-1}]."""
    K = len(vocab_sizes)

    used = []                                    # (encoder_index, code list)
    for i in range(K - 1):
        codes = [c for adm in input_adm for c in adm[i]]
        used.append((i, codes))

    y = np.zeros((1, vocab_sizes[K - 1]), dtype=np.float32)
    hist = []
    for idx in range(len(input_adm)):
        if idx == len(input_adm) - 1:
            y[:, input_adm[idx][K - 1]] = 1.0
            break
        hist.extend(input_adm[idx][K - 1])
    if len(hist) != 0:
        used.append((K - 1, hist))

    n_enc = len(used)
    lengths = np.array([len(codes) for _, codes in used], dtype=np.int32)
    max_t = int(lengths.max())

    # embedding gather + ragged padding done host-side (no kernel value in a gather)
    x_list = []
    for enc_idx, codes in used:
        emb = params['embeddings'][enc_idx][jnp.asarray(codes, jnp.int32)]   # (T, E)
        x_list.append(jnp.pad(emb, ((0, max_t - emb.shape[0]), (0, 0))))
    x_pad = jnp.stack(x_list, axis=0)                                        # (n_enc, maxT, E)

    def stack(name):
        return jnp.stack([params['encoders'][e][name] for e, _ in used], axis=0)

    contexts = dnc_encode_all(
        x_pad, jnp.asarray(lengths, jnp.int32),
        stack('Wg'), stack('bg'), stack('Wi'), stack('bi'),
        stack('Wo'), stack('bo'), stack('h0'))                               # (n_enc, E)

    logits = decode_contexts(contexts, params['decoder_w_t'], params['decoder_b'])
    return logits, jnp.asarray(y)


if __name__ == "__main__":
    vocab_sizes = [28, 24, 20]          # K = 3 code types (diag, proc, med)
    key = jax.random.PRNGKey(0)
    params = init_params(key, vocab_sizes)

    # two admissions, each with K=3 code lists (ragged, like the PyTorch input)
    input_adm = [
        [[0, 3, 5], [1, 2], [4, 7, 9]],
        [[2, 6], [0, 5, 3], [1, 8]],
    ]

    logits, y = mann_forward(input_adm, params, vocab_sizes)
    logits = jax.block_until_ready(logits)
    y = jax.block_until_ready(y)

    assert logits.shape == (1, vocab_sizes[-1])
    assert y.shape == (1, vocab_sizes[-1])
    assert bool(jnp.all(jnp.isfinite(logits)))
    print("KERNEL_OK")
</pallas_src>

<mosaic_0001>
module attributes {stable_mosaic.version = 11 : i64} {
  func.func @_dnc_encoder_kernel(%arg0: i32, %arg1: memref<3xi32, #tpu.memory_space<smem>>, %arg2: memref<1x5x64xf32, #tpu.memory_space<vmem>>, %arg3: memref<1x256x512xf32, #tpu.memory_space<vmem>>, %arg4: memref<1x1x512xf32, #tpu.memory_space<vmem>>, %arg5: memref<1x128x384xf32, #tpu.memory_space<vmem>>, %arg6: memref<1x1x384xf32, #tpu.memory_space<vmem>>, %arg7: memref<1x192x64xf32, #tpu.memory_space<vmem>>, %arg8: memref<1x1x64xf32, #tpu.memory_space<vmem>>, %arg9: memref<1x1x128xf32, #tpu.memory_space<vmem>>, %arg10: memref<1x1x64xf32, #tpu.memory_space<vmem>>, %arg11: memref<1x128xf32, #tpu.memory_space<vmem>>, %arg12: memref<1x128xf32, #tpu.memory_space<vmem>>, %arg13: memref<1x64xf32, #tpu.memory_space<vmem>>, %arg14: memref<16x64xf32, #tpu.memory_space<vmem>>, %arg15: memref<16x16xf32, #tpu.memory_space<vmem>>, %arg16: memref<1x16xf32, #tpu.memory_space<vmem>>, %arg17: memref<1x16xf32, #tpu.memory_space<vmem>>, %arg18: memref<1x16xf32, #tpu.memory_space<vmem>>, %arg19: memref<1x16xf32, #tpu.memory_space<vmem>>) attributes {dimension_semantics = [#tpu.dimension_semantics<parallel>], iteration_bounds = array<i64: 3>, scalar_prefetch = 1 : i64, scratch_operands = 9 : i64, tpu.core_type = #tpu.core_type<tc>, window_params = [{transform_indices = @transform_0, window_bounds = array<i64: 1, 5, 64>}, {transform_indices = @transform_1, window_bounds = array<i64: 1, 256, 512>}, {transform_indices = @transform_2, window_bounds = array<i64: 1, 1, 512>}, {transform_indices = @transform_3, window_bounds = array<i64: 1, 128, 384>}, {transform_indices = @transform_4, window_bounds = array<i64: 1, 1, 384>}, {transform_indices = @transform_5, window_bounds = array<i64: 1, 192, 64>}, {transform_indices = @transform_6, window_bounds = array<i64: 1, 1, 64>}, {transform_indices = @transform_7, window_bounds = array<i64: 1, 1, 128>}, {transform_indices = @transform_8, window_bounds = array<i64: 1, 1, 64>}]} {
    %0 = arith.index_cast %arg0 : i32 to index
    %1 = memref.load %arg1[%0] : memref<3xi32, #tpu.memory_space<smem>>
    %c0 = arith.constant 0 : index
    %c0_0 = arith.constant 0 : index
    %c0_1 = arith.constant 0 : index
    %2 = vector.load %arg9[%c0, %c0_0, %c0_1] : memref<1x1x128xf32, #tpu.memory_space<vmem>>, vector<1x1x128xf32>
    %3 = vector.shape_cast %2 : vector<1x1x128xf32> to vector<1x128xf32>
    %c0_2 = arith.constant 0 : index
    %c0_3 = arith.constant 0 : index
    %4 = vector.load %arg11[%c0_2, %c0_3] : memref<1x128xf32, #tpu.memory_space<vmem>>, vector<1x128xf32>
    tpu.vector_store %arg11[%c0_2, %c0_3], %3 {strides = array<i32>} : memref<1x128xf32, #tpu.memory_space<vmem>>, vector<1x128xf32>,
    %c0_4 = arith.constant 0 : index
    %c0_5 = arith.constant 0 : index
    %c0_6 = arith.constant 0 : index
    %5 = vector.load %arg9[%c0_4, %c0_5, %c0_6] : memref<1x1x128xf32, #tpu.memory_space<vmem>>, vector<1x1x128xf32>
    %6 = vector.shape_cast %5 : vector<1x1x128xf32> to vector<1x128xf32>
    %c0_7 = arith.constant 0 : index
    %c0_8 = arith.constant 0 : index
    %7 = vector.load %arg12[%c0_7, %c0_8] : memref<1x128xf32, #tpu.memory_space<vmem>>, vector<1x128xf32>
    tpu.vector_store %arg12[%c0_7, %c0_8], %6 {strides = array<i32>} : memref<1x128xf32, #tpu.memory_space<vmem>>, vector<1x128xf32>,
    %cst = arith.constant 0.000000e+00 : f32
    %8 = vector.broadcast %cst : f32 to vector<1x64xf32>
    %c0_9 = arith.constant 0 : index
    %c0_10 = arith.constant 0 : index
    %9 = vector.load %arg13[%c0_9, %c0_10] : memref<1x64xf32, #tpu.memory_space<vmem>>, vector<1x64xf32>
    tpu.vector_store %arg13[%c0_9, %c0_10], %8 {strides = array<i32>} : memref<1x64xf32, #tpu.memory_space<vmem>>, vector<1x64xf32>,
    %cst_11 = arith.constant 9.99999997E-7 : f32
    %10 = vector.broadcast %cst_11 : f32 to vector<16x64xf32>
    %c0_12 = arith.constant 0 : index
    %c0_13 = arith.constant 0 : index
    %11 = vector.load %arg14[%c0_12, %c0_13] : memref<16x64xf32, #tpu.memory_space<vmem>>, vector<16x64xf32>
    tpu.vector_store %arg14[%c0_12, %c0_13], %10 {strides = array<i32>} : memref<16x64xf32, #tpu.memory_space<vmem>>, vector<16x64xf32>,
    %cst_14 = arith.constant 0.000000e+00 : f32
    %12 = vector.broadcast %cst_14 : f32 to vector<16x16xf32>
    %c0_15 = arith.constant 0 : index
    %c0_16 = arith.constant 0 : index
    %13 = vector.load %arg15[%c0_15, %c0_16] : memref<16x16xf32, #tpu.memory_space<vmem>>, vector<16x16xf32>
    tpu.vector_store %arg15[%c0_15, %c0_16], %12 {strides = array<i32>} : memref<16x16xf32, #tpu.memory_space<vmem>>, vector<16x16xf32>,
    %cst_17 = arith.constant 0.000000e+00 : f32
    %14 = vector.broadcast %cst_17 : f32 to vector<1x16xf32>
    %c0_18 = arith.constant 0 : index
    %c0_19 = arith.constant 0 : index
    %15 = vector.load %arg16[%c0_18, %c0_19] : memref<1x16xf32, #tpu.memory_space<vmem>>, vector<1x16xf32>
    tpu.vector_store %arg16[%c0_18, %c0_19], %14 {strides = array<i32>} : memref<1x16xf32, #tpu.memory_space<vmem>>, vector<1x16xf32>,
    %cst_20 = arith.constant 9.99999997E-7 : f32
    %16 = vector.broadcast %cst_20 : f32 to vector<1x16xf32>
    %c0_21 = arith.constant 0 : index
    %c0_22 = arith.constant 0 : index
    %17 = vector.load %arg17[%c0_21, %c0_22] : memref<1x16xf32, #tpu.memory_space<vmem>>, vector<1x16xf32>
    tpu.vector_store %arg17[%c0_21, %c0_22], %16 {strides = array<i32>} : memref<1x16xf32, #tpu.memory_space<vmem>>, vector<1x16xf32>,
    %cst_23 = arith.constant 9.99999997E-7 : f32
    %18 = vector.broadcast %cst_23 : f32 to vector<1x16xf32>
    %c0_24 = arith.constant 0 : index
    %c0_25 = arith.constant 0 : index
    %19 = vector.load %arg18[%c0_24, %c0_25] : memref<1x16xf32, #tpu.memory_space<vmem>>, vector<1x16xf32>
    tpu.vector_store %arg18[%c0_24, %c0_25], %18 {strides = array<i32>} : memref<1x16xf32, #tpu.memory_space<vmem>>, vector<1x16xf32>,
    %cst_26 = arith.constant 0.000000e+00 : f32
    %20 = vector.broadcast %cst_26 : f32 to vector<1x16xf32>
    %c0_27 = arith.constant 0 : index
    %c0_28 = arith.constant 0 : index
    %21 = vector.load %arg19[%c0_27, %c0_28] : memref<1x16xf32, #tpu.memory_space<vmem>>, vector<1x16xf32>
    tpu.vector_store %arg19[%c0_27, %c0_28], %20 {strides = array<i32>} : memref<1x16xf32, #tpu.memory_space<vmem>>, vector<1x16xf32>,
    %22 = tpu.iota {dimensions = array<i32: 0>} : vector<16x16xi32>
    %23 = tpu.iota {dimensions = array<i32: 1>} : vector<16x16xi32>
    %24 = arith.cmpi eq, %22, %23 : vector<16x16xi32>
    %c0_i32 = arith.constant 0 : i32
    %c0_i32_29 = arith.constant 0 : i32
    %25 = arith.subi %1, %c0_i32_29 : i32
    %26 = arith.addi %c0_i32_29, %25 : i32
    %c1_i32 = arith.constant 1 : i32
    scf.for %arg20 = %c0_i32_29 to %26 step %c1_i32  : i32 {
      %c0_49 = arith.constant 0 : index
      %46 = arith.index_cast %arg20 : i32 to index
      %c0_50 = arith.constant 0 : index
      %47 = vector.load %arg2[%c0_49, %46, %c0_50] : memref<1x5x64xf32, #tpu.memory_space<vmem>>, vector<1x1x64xf32>
      %48 = vector.shape_cast %47 : vector<1x1x64xf32> to vector<1x64xf32>
      %c0_51 = arith.constant 0 : index
      %c0_52 = arith.constant 0 : index
      %49 = vector.load %arg11[%c0_51, %c0_52] : memref<1x128xf32, #tpu.memory_space<vmem>>, vector<1x128xf32>
      %c0_53 = arith.constant 0 : index
      %c0_54 = arith.constant 0 : index
      %50 = vector.load %arg12[%c0_53, %c0_54] : memref<1x128xf32, #tpu.memory_space<vmem>>, vector<1x128xf32>
      %c0_55 = arith.constant 0 : index
      %c0_56 = arith.constant 0 : index
      %51 = vector.load %arg13[%c0_55, %c0_56] : memref<1x64xf32, #tpu.memory_space<vmem>>, vector<1x64xf32>
      %c0_57 = arith.constant 0 : index
      %c0_58 = arith.constant 0 : index
      %52 = vector.load %arg14[%c0_57, %c0_58] : memref<16x64xf32, #tpu.memory_space<vmem>>, vector<16x64xf32>
      %c0_59 = arith.constant 0 : index
      %c0_60 = arith.constant 0 : index
      %53 = vector.load %arg15[%c0_59, %c0_60] : memref<16x16xf32, #tpu.memory_space<vmem>>, vector<16x16xf32>
      %c0_61 = arith.constant 0 : index
      %c0_62 = arith.constant 0 : index
      %54 = vector.load %arg16[%c0_61, %c0_62] : memref<1x16xf32, #tpu.memory_space<vmem>>, vector<1x16xf32>
      %c0_63 = arith.constant 0 : index
      %c0_64 = arith.constant 0 : index
      %55 = vector.load %arg17[%c0_63, %c0_64] : memref<1x16xf32, #tpu.memory_space<vmem>>, vector<1x16xf32>
      %c0_65 = arith.constant 0 : index
      %c0_66 = arith.constant 0 : index
      %56 = vector.load %arg18[%c0_65, %c0_66] : memref<1x16xf32, #tpu.memory_space<vmem>>, vector<1x16xf32>
      %c0_67 = arith.constant 0 : index
      %c0_68 = arith.constant 0 : index
      %57 = vector.load %arg19[%c0_67, %c0_68] : memref<1x16xf32, #tpu.memory_space<vmem>>, vector<1x16xf32>
      %c0_69 = arith.constant 0 : index
      %c0_70 = arith.constant 0 : index
      %c0_71 = arith.constant 0 : index
      %58 = vector.load %arg3[%c0_69, %c0_70, %c0_71] : memref<1x256x512xf32, #tpu.memory_space<vmem>>, vector<1x64x512xf32>
      %59 = vector.shape_cast %58 : vector<1x64x512xf32> to vector<64x512xf32>
      %cst_72 = arith.constant dense<0.000000e+00> : vector<1x512xf32>
      %60 = tpu.matmul %48, %59, %cst_72 {dimension_numbers = #tpu.dot_dimension_numbers<[1], [0], [0], [1], [0, 0, 1, 1], [], []>} : vector<1x64xf32>, vector<64x512xf32>, vector<1x512xf32> -> vector<1x512xf32>
      %c0_73 = arith.constant 0 : index
      %c64 = arith.constant 64 : index
      %c0_74 = arith.constant 0 : index
      %61 = vector.load %arg3[%c0_73, %c64, %c0_74] : memref<1x256x512xf32, #tpu.memory_space<vmem>>, vector<1x64x512xf32>
      %62 = vector.shape_cast %61 : vector<1x64x512xf32> to vector<64x512xf32>
      %cst_75 = arith.constant dense<0.000000e+00> : vector<1x512xf32>
      %63 = tpu.matmul %51, %62, %cst_75 {dimension_numbers = #tpu.dot_dimension_numbers<[1], [0], [0], [1], [0, 0, 1, 1], [], []>} : vector<1x64xf32>, vector<64x512xf32>, vector<1x512xf32> -> vector<1x512xf32>
      %64 = arith.addf %60, %63 : vector<1x512xf32>
      %c0_76 = arith.constant 0 : index
      %c128_77 = arith.constant 128 : index
      %c0_78 = arith.constant 0 : index
      %65 = vector.load %arg3[%c0_76, %c128_77, %c0_78] : memref<1x256x512xf32, #tpu.memory_space<vmem>>, vector<1x128x512xf32>
      %66 = vector.shape_cast %65 : vector<1x128x512xf32> to vector<128x512xf32>
      %cst_79 = arith.constant dense<0.000000e+00> : vector<1x512xf32>
      %67 = tpu.matmul %49, %66, %cst_79 {dimension_numbers = #tpu.dot_dimension_numbers<[1], [0], [0], [1], [0, 0, 1, 1], [], []>} : vector<1x128xf32>, vector<128x512xf32>, vector<1x512xf32> -> vector<1x512xf32>
      %68 = arith.addf %64, %67 : vector<1x512xf32>
      %c0_80 = arith.constant 0 : index
      %c0_81 = arith.constant 0 : index
      %c0_82 = arith.constant 0 : index
      %69 = vector.load %arg4[%c0_80, %c0_81, %c0_82] : memref<1x1x512xf32, #tpu.memory_space<vmem>>, vector<1x1x512xf32>
      %70 = vector.shape_cast %69 : vector<1x1x512xf32> to vector<1x512xf32>
      %71 = arith.addf %68, %70 : vector<1x512xf32>
      %72 = vector.extract_strided_slice %71 {offsets = [0, 0], sizes = [1, 128], strides = [1, 1]} : vector<1x512xf32> to vector<1x128xf32>
      %73 = arith.negf %72 : vector<1x128xf32>
      %74 = math.exp %73 : vector<1x128xf32>
      %cst_83 = arith.constant 1.000000e+00 : f32
      %75 = vector.broadcast %cst_83 : f32 to vector<1x128xf32>
      %76 = arith.addf %75, %74 : vector<1x128xf32>
      %77 = arith.divf %75, %76 : vector<1x128xf32>
      %78 = vector.extract_strided_slice %71 {offsets = [0, 128], sizes = [1, 128], strides = [1, 1]} : vector<1x512xf32> to vector<1x128xf32>
      %79 = arith.negf %78 : vector<1x128xf32>
      %80 = math.exp %79 : vector<1x128xf32>
      %cst_84 = arith.constant 1.000000e+00 : f32
      %81 = vector.broadcast %cst_84 : f32 to vector<1x128xf32>
      %82 = arith.addf %81, %80 : vector<1x128xf32>
      %83 = arith.divf %81, %82 : vector<1x128xf32>
      %84 = vector.extract_strided_slice %71 {offsets = [0, 256], sizes = [1, 128], strides = [1, 1]} : vector<1x512xf32> to vector<1x128xf32>
      %85 = math.tanh %84 : vector<1x128xf32>
      %86 = vector.extract_strided_slice %71 {offsets = [0, 384], sizes = [1, 128], strides = [1, 1]} : vector<1x512xf32> to vector<1x128xf32>
      %87 = arith.negf %86 : vector<1x128xf32>
      %88 = math.exp %87 : vector<1x128xf32>
      %cst_85 = arith.constant 1.000000e+00 : f32
      %89 = vector.broadcast %cst_85 : f32 to vector<1x128xf32>
      %90 = arith.addf %89, %88 : vector<1x128xf32>
      %91 = arith.divf %89, %90 : vector<1x128xf32>
      %92 = arith.mulf %83, %50 : vector<1x128xf32>
      %93 = arith.mulf %77, %85 : vector<1x128xf32>
      %94 = arith.addf %92, %93 : vector<1x128xf32>
      %95 = math.tanh %94 : vector<1x128xf32>
      %96 = arith.mulf %91, %95 : vector<1x128xf32>
      %cst_86 = arith.constant -2.000000e+01 : f32
      %cst_87 = arith.constant 2.000000e+01 : f32
      %97 = vector.broadcast %cst_86 : f32 to vector<1x128xf32>
      %98 = arith.maximumf %97, %96 : vector<1x128xf32>
      %99 = vector.broadcast %cst_87 : f32 to vector<1x128xf32>
      %100 = arith.minimumf %99, %98 : vector<1x128xf32>
      %c0_88 = arith.constant 0 : index
      %c0_89 = arith.constant 0 : index
      %c0_90 = arith.constant 0 : index
      %101 = vector.load %arg5[%c0_88, %c0_89, %c0_90] : memref<1x128x384xf32, #tpu.memory_space<vmem>>, vector<1x128x384xf32>
      %102 = vector.shape_cast %101 : vector<1x128x384xf32> to vector<128x384xf32>
      %cst_91 = arith.constant dense<0.000000e+00> : vector<1x384xf32>
      %103 = tpu.matmul %100, %102, %cst_91 {dimension_numbers = #tpu.dot_dimension_numbers<[1], [0], [0], [1], [0, 0, 1, 1], [], []>} : vector<1x128xf32>, vector<128x384xf32>, vector<1x384xf32> -> vector<1x384xf32>
      %c0_92 = arith.constant 0 : index
      %c0_93 = arith.constant 0 : index
      %c0_94 = arith.constant 0 : index
      %104 = vector.load %arg6[%c0_92, %c0_93, %c0_94] : memref<1x1x384xf32, #tpu.memory_space<vmem>>, vector<1x1x384xf32>
      %105 = vector.shape_cast %104 : vector<1x1x384xf32> to vector<1x384xf32>
      %106 = arith.addf %103, %105 : vector<1x384xf32>
      %107 = vector.extract_strided_slice %106 {offsets = [0, 0], sizes = [1, 64], strides = [1, 1]} : vector<1x384xf32> to vector<1x64xf32>
      %108 = math.tanh %107 : vector<1x64xf32>
      %109 = vector.extract_strided_slice %106 {offsets = [0, 64], sizes = [1, 64], strides = [1, 1]} : vector<1x384xf32> to vector<1x64xf32>
      %110 = math.tanh %109 : vector<1x64xf32>
      %111 = vector.extract_strided_slice %106 {offsets = [0, 128], sizes = [1, 64], strides = [1, 1]} : vector<1x384xf32> to vector<1x64xf32>
      %112 = arith.negf %111 : vector<1x64xf32>
      %113 = math.exp %112 : vector<1x64xf32>
      %cst_95 = arith.constant 1.000000e+00 : f32
      %114 = vector.broadcast %cst_95 : f32 to vector<1x64xf32>
      %115 = arith.addf %114, %113 : vector<1x64xf32>
      %116 = arith.divf %114, %115 : vector<1x64xf32>
      %117 = vector.extract_strided_slice %106 {offsets = [0, 192], sizes = [1, 64], strides = [1, 1]} : vector<1x384xf32> to vector<1x64xf32>
      %118 = math.tanh %117 : vector<1x64xf32>
      %119 = vector.extract_strided_slice %106 {offsets = [0, 256], sizes = [1, 8], strides = [1, 1]} : vector<1x384xf32> to vector<1x8xf32>
      %120 = vector.extract_strided_slice %119 {offsets = [0, 0], sizes = [1, 1], strides = [1, 1]} : vector<1x8xf32> to vector<1x1xf32>
      %cst_96 = arith.constant 0.000000e+00 : f32
      %121 = vector.broadcast %cst_96 : f32 to vector<1x1xf32>
      %122 = arith.maximumf %120, %121 : vector<1x1xf32>
      %123 = math.absf %120 : vector<1x1xf32>
      %cst_97 = arith.constant 0.000000e+00 : f32
      %124 = vector.broadcast %cst_97 : f32 to vector<1x1xf32>
      %125 = arith.subf %124, %123 : vector<1x1xf32>
      %126 = math.exp %125 : vector<1x1xf32>
      %cst_98 = arith.constant 1.000000e+00 : f32
      %127 = vector.broadcast %cst_98 : f32 to vector<1x1xf32>
      %128 = arith.addf %127, %126 : vector<1x1xf32>
      %129 = math.log %128 : vector<1x1xf32>
      %130 = arith.addf %122, %129 : vector<1x1xf32>
      %131 = vector.extract_strided_slice %119 {offsets = [0, 1], sizes = [1, 1], strides = [1, 1]} : vector<1x8xf32> to vector<1x1xf32>
      %cst_99 = arith.constant 0.000000e+00 : f32
      %132 = vector.broadcast %cst_99 : f32 to vector<1x1xf32>
      %133 = arith.maximumf %131, %132 : vector<1x1xf32>
      %134 = math.absf %131 : vector<1x1xf32>
      %cst_100 = arith.constant 0.000000e+00 : f32
      %135 = vector.broadcast %cst_100 : f32 to vector<1x1xf32>
      %136 = arith.subf %135, %134 : vector<1x1xf32>
      %137 = math.exp %136 : vector<1x1xf32>
      %cst_101 = arith.constant 1.000000e+00 : f32
      %138 = vector.broadcast %cst_101 : f32 to vector<1x1xf32>
      %139 = arith.addf %138, %137 : vector<1x1xf32>
      %140 = math.log %139 : vector<1x1xf32>
      %141 = arith.addf %133, %140 : vector<1x1xf32>
      %142 = vector.extract_strided_slice %119 {offsets = [0, 2], sizes = [1, 1], strides = [1, 1]} : vector<1x8xf32> to vector<1x1xf32>
      %143 = arith.negf %142 : vector<1x1xf32>
      %144 = math.exp %143 : vector<1x1xf32>
      %cst_102 = arith.constant 1.000000e+00 : f32
      %145 = vector.broadcast %cst_102 : f32 to vector<1x1xf32>
      %146 = arith.addf %145, %144 : vector<1x1xf32>
      %147 = arith.divf %145, %146 : vector<1x1xf32>
      %148 = vector.extract_strided_slice %119 {offsets = [0, 3], sizes = [1, 1], strides = [1, 1]} : vector<1x8xf32> to vector<1x1xf32>
      %149 = arith.negf %148 : vector<1x1xf32>
      %150 = math.exp %149 : vector<1x1xf32>
      %cst_103 = arith.constant 1.000000e+00 : f32
      %151 = vector.broadcast %cst_103 : f32 to vector<1x1xf32>
      %152 = arith.addf %151, %150 : vector<1x1xf32>
      %153 = arith.divf %151, %152 : vector<1x1xf32>
      %154 = vector.extract_strided_slice %119 {offsets = [0, 4], sizes = [1, 1], strides = [1, 1]} : vector<1x8xf32> to vector<1x1xf32>
      %155 = arith.negf %154 : vector<1x1xf32>
      %156 = math.exp %155 : vector<1x1xf32>
      %cst_104 = arith.constant 1.000000e+00 : f32
      %157 = vector.broadcast %cst_104 : f32 to vector<1x1xf32>
      %158 = arith.addf %157, %156 : vector<1x1xf32>
      %159 = arith.divf %157, %158 : vector<1x1xf32>
      %160 = vector.extract_strided_slice %119 {offsets = [0, 5], sizes = [1, 3], strides = [1, 1]} : vector<1x8xf32> to vector<1x3xf32>
      %cst_105 = arith.constant dense<0xFF800000> : vector<1xf32>
      %161 = vector.multi_reduction <maximumf>, %160, %cst_105 [1] : vector<1x3xf32> to vector<1xf32>
      %cst_106 = arith.constant 0xFF800000 : f32
      %162 = vector.broadcast %cst_106 : f32 to vector<1xf32>
      %163 = arith.maximumf %162, %161 : vector<1xf32>
      %164 = vector.shape_cast %163 : vector<1xf32> to vector<1x1xf32>
      %165 = vector.broadcast %164 : vector<1x1xf32> to vector<1x3xf32>
      %166 = arith.subf %160, %165 : vector<1x3xf32>
      %167 = math.exp %166 : vector<1x3xf32>
      %cst_107 = arith.constant dense<0.000000e+00> : vector<1xf32>
      %168 = vector.multi_reduction <add>, %167, %cst_107 [1] : vector<1x3xf32> to vector<1xf32>
      %169 = vector.shape_cast %168 : vector<1xf32> to vector<1x1xf32>
      %170 = vector.broadcast %169 : vector<1x1xf32> to vector<1x3xf32>
      %171 = arith.divf %167, %170 : vector<1x3xf32>
      %cst_108 = arith.constant 1.000000e+00 : f32
      %172 = vector.broadcast %cst_108 : f32 to vector<1x16xf32>
      %173 = arith.subf %172, %57 : vector<1x16xf32>
      %174 = arith.mulf %173, %56 : vector<1x16xf32>
      %175 = arith.addf %57, %174 : vector<1x16xf32>
      %176 = vector.broadcast %147 : vector<1x1xf32> to vector<1x16xf32>
      %177 = arith.mulf %176, %55 : vector<1x16xf32>
      %cst_109 = arith.constant 1.000000e+00 : f32
      %178 = vector.broadcast %cst_109 : f32 to vector<1x16xf32>
      %179 = arith.subf %178, %177 : vector<1x16xf32>
      %180 = arith.mulf %175, %179 : vector<1x16xf32>
      %181 = arith.mulf %52, %52 : vector<16x64xf32>
      %cst_110 = arith.constant dense<0.000000e+00> : vector<16xf32>
      %182 = vector.multi_reduction <add>, %181, %cst_110 [1] : vector<16x64xf32> to vector<16xf32>
      %183 = vector.shape_cast %182 : vector<16xf32> to vector<16x1xf32>
      %cst_111 = arith.constant 9.99999997E-7 : f32
      %184 = vector.broadcast %cst_111 : f32 to vector<16x1xf32>
      %185 = arith.addf %183, %184 : vector<16x1xf32>
      %186 = math.rsqrt %185 : vector<16x1xf32>
      %187 = vector.broadcast %186 : vector<16x1xf32> to vector<16x64xf32>
      %188 = arith.mulf %52, %187 : vector<16x64xf32>
      %189 = arith.mulf %110, %110 : vector<1x64xf32>
      %cst_112 = arith.constant dense<0.000000e+00> : vector<1xf32>
      %190 = vector.multi_reduction <add>, %189, %cst_112 [1] : vector<1x64xf32> to vector<1xf32>
      %191 = vector.shape_cast %190 : vector<1xf32> to vector<1x1xf32>
      %cst_113 = arith.constant 9.99999997E-7 : f32
      %192 = vector.broadcast %cst_113 : f32 to vector<1x1xf32>
      %193 = arith.addf %191, %192 : vector<1x1xf32>
      %194 = math.rsqrt %193 : vector<1x1xf32>
      %195 = vector.broadcast %194 : vector<1x1xf32> to vector<1x64xf32>
      %196 = arith.mulf %110, %195 : vector<1x64xf32>
      %cst_114 = arith.constant dense<0.000000e+00> : vector<1x16xf32>
      %197 = tpu.matmul %196, %188, %cst_114 {dimension_numbers = #tpu.dot_dimension_numbers<[1], [1], [0], [0], [0, 0, 1, 0], [], []>} : vector<1x64xf32>, vector<16x64xf32>, vector<1x16xf32> -> vector<1x16xf32>
      %198 = vector.broadcast %141 : vector<1x1xf32> to vector<1x16xf32>
      %199 = arith.mulf %197, %198 : vector<1x16xf32>
      %cst_115 = arith.constant dense<0xFF800000> : vector<1xf32>
      %200 = vector.multi_reduction <maximumf>, %199, %cst_115 [1] : vector<1x16xf32> to vector<1xf32>
      %cst_116 = arith.constant 0xFF800000 : f32
      %201 = vector.broadcast %cst_116 : f32 to vector<1xf32>
      %202 = arith.maximumf %201, %200 : vector<1xf32>
      %203 = vector.shape_cast %202 : vector<1xf32> to vector<1x1xf32>
      %204 = vector.broadcast %203 : vector<1x1xf32> to vector<1x16xf32>
      %205 = arith.subf %199, %204 : vector<1x16xf32>
      %206 = math.exp %205 : vector<1x16xf32>
      %cst_117 = arith.constant dense<0.000000e+00> : vector<1xf32>
      %207 = vector.multi_reduction <add>, %206, %cst_117 [1] : vector<1x16xf32> to vector<1xf32>
      %208 = vector.shape_cast %207 : vector<1xf32> to vector<1x1xf32>
      %209 = vector.broadcast %208 : vector<1x1xf32> to vector<1x16xf32>
      %210 = arith.divf %206, %209 : vector<1x16xf32>
      %cst_118 = arith.constant 0.999998986 : f32
      %211 = vector.broadcast %cst_118 : f32 to vector<1x16xf32>
      %212 = arith.mulf %211, %180 : vector<1x16xf32>
      %cst_119 = arith.constant 9.99999997E-7 : f32
      %213 = vector.broadcast %cst_119 : f32 to vector<1x16xf32>
      %214 = arith.addf %213, %212 : vector<1x16xf32>
      %215 = vector.shape_cast %214 : vector<1x16xf32> to vector<1x16xf32>
      %216 = vector.broadcast %215 : vector<1x16xf32> to vector<16x16xf32>
      %cst_120 = arith.constant 0.000000e+00 : f32
      %217 = vector.broadcast %cst_120 : f32 to vector<16x16xf32>
      %218 = arith.select %24, %216, %217 : vector<16x16xi1>, vector<16x16xf32>
      %cst_121 = arith.constant dense<0.000000e+00> : vector<16xf32>
      %219 = vector.multi_reduction <add>, %218, %cst_121 [1] : vector<16x16xf32> to vector<16xf32>
      %220 = vector.shape_cast %219 : vector<16xf32> to vector<16x1xf32>
      %221 = vector.shape_cast %220 : vector<16x1xf32> to vector<16x1xf32>
      %222 = vector.broadcast %221 : vector<16x1xf32> to vector<16x16xf32>
      %223 = vector.shape_cast %214 : vector<1x16xf32> to vector<1x16xf32>
      %224 = vector.broadcast %223 : vector<1x16xf32> to vector<16x16xf32>
      %225 = arith.cmpf olt, %222, %224 : vector<16x16xf32>
      %226 = arith.cmpf oeq, %222, %224 : vector<16x16xf32>
      %227 = arith.cmpi slt, %22, %23 : vector<16x16xi32>
      %228 = arith.andi %226, %227 : vector<16x16xi1>
      %229 = arith.ori %225, %228 : vector<16x16xi1>
      %230 = math.log %222 : vector<16x16xf32>
      %cst_122 = arith.constant 0.000000e+00 : f32
      %231 = vector.broadcast %cst_122 : f32 to vector<16x16xf32>
      %232 = arith.select %229, %230, %231 : vector<16x16xi1>, vector<16x16xf32>
      %cst_123 = arith.constant dense<0.000000e+00> : vector<16xf32>
      %233 = vector.multi_reduction <add>, %232, %cst_123 [0] : vector<16x16xf32> to vector<16xf32>
      %234 = vector.shape_cast %233 : vector<16xf32> to vector<1x16xf32>
      %cst_124 = arith.constant 1.000000e+00 : f32
      %235 = vector.broadcast %cst_124 : f32 to vector<1x16xf32>
      %236 = arith.subf %235, %214 : vector<1x16xf32>
      %237 = math.exp %234 : vector<1x16xf32>
      %238 = arith.mulf %236, %237 : vector<1x16xf32>
      %239 = vector.broadcast %153 : vector<1x1xf32> to vector<1x16xf32>
      %240 = arith.mulf %239, %238 : vector<1x16xf32>
      %cst_125 = arith.constant 1.000000e+00 : f32
      %241 = vector.broadcast %cst_125 : f32 to vector<1x1xf32>
      %242 = arith.subf %241, %153 : vector<1x1xf32>
      %243 = vector.broadcast %242 : vector<1x1xf32> to vector<1x16xf32>
      %244 = arith.mulf %243, %210 : vector<1x16xf32>
      %245 = arith.addf %240, %244 : vector<1x16xf32>
      %246 = vector.broadcast %159 : vector<1x1xf32> to vector<1x16xf32>
      %247 = arith.mulf %246, %245 : vector<1x16xf32>
      %248 = vector.shape_cast %247 : vector<1x16xf32> to vector<1x16xf32>
      %249 = vector.broadcast %248 : vector<1x16xf32> to vector<16x16xf32>
      %cst_126 = arith.constant 0.000000e+00 : f32
      %250 = vector.broadcast %cst_126 : f32 to vector<16x16xf32>
      %251 = arith.select %24, %249, %250 : vector<16x16xi1>, vector<16x16xf32>
      %cst_127 = arith.constant dense<0.000000e+00> : vector<16xf32>
      %252 = vector.multi_reduction <add>, %251, %cst_127 [1] : vector<16x16xf32> to vector<16xf32>
      %253 = vector.shape_cast %252 : vector<16xf32> to vector<16x1xf32>
      %254 = vector.shape_cast %253 : vector<16x1xf32> to vector<16x1xf32>
      %255 = vector.broadcast %254 : vector<16x1xf32> to vector<16x64xf32>
      %256 = vector.broadcast %116 : vector<1x64xf32> to vector<16x64xf32>
      %257 = arith.mulf %255, %256 : vector<16x64xf32>
      %cst_128 = arith.constant 1.000000e+00 : f32
      %258 = vector.broadcast %cst_128 : f32 to vector<16x64xf32>
      %259 = arith.subf %258, %257 : vector<16x64xf32>
      %260 = arith.mulf %52, %259 : vector<16x64xf32>
      %261 = vector.broadcast %118 : vector<1x64xf32> to vector<16x64xf32>
      %262 = arith.mulf %255, %261 : vector<16x64xf32>
      %263 = arith.addf %260, %262 : vector<16x64xf32>
      %264 = vector.shape_cast %253 : vector<16x1xf32> to vector<16x1xf32>
      %265 = vector.broadcast %264 : vector<16x1xf32> to vector<16x16xf32>
      %266 = vector.shape_cast %247 : vector<1x16xf32> to vector<1x16xf32>
      %267 = vector.broadcast %266 : vector<1x16xf32> to vector<16x16xf32>
      %268 = vector.shape_cast %54 : vector<1x16xf32> to vector<1x16xf32>
      %269 = vector.broadcast %268 : vector<1x16xf32> to vector<16x16xf32>
      %cst_129 = arith.constant 1.000000e+00 : f32
      %270 = vector.broadcast %cst_129 : f32 to vector<16x16xf32>
      %271 = arith.subf %270, %265 : vector<16x16xf32>
      %272 = arith.subf %271, %267 : vector<16x16xf32>
      %273 = arith.mulf %272, %53 : vector<16x16xf32>
      %274 = arith.mulf %265, %269 : vector<16x16xf32>
      %275 = arith.addf %273, %274 : vector<16x16xf32>
      %cst_130 = arith.constant 0.000000e+00 : f32
      %276 = vector.broadcast %cst_130 : f32 to vector<16x16xf32>
      %277 = arith.select %24, %276, %275 : vector<16x16xi1>, vector<16x16xf32>
      %cst_131 = arith.constant dense<0.000000e+00> : vector<1xf32>
      %278 = vector.multi_reduction <add>, %247, %cst_131 [1] : vector<1x16xf32> to vector<1xf32>
      %279 = vector.shape_cast %278 : vector<1xf32> to vector<1x1xf32>
      %cst_132 = arith.constant 1.000000e+00 : f32
      %280 = vector.broadcast %cst_132 : f32 to vector<1x1xf32>
      %281 = arith.subf %280, %279 : vector<1x1xf32>
      %282 = vector.broadcast %281 : vector<1x1xf32> to vector<1x16xf32>
      %283 = arith.mulf %282, %54 : vector<1x16xf32>
      %284 = arith.addf %283, %247 : vector<1x16xf32>
      %285 = arith.mulf %263, %263 : vector<16x64xf32>
      %cst_133 = arith.constant dense<0.000000e+00> : vector<16xf32>
      %286 = vector.multi_reduction <add>, %285, %cst_133 [1] : vector<16x64xf32> to vector<16xf32>
      %287 = vector.shape_cast %286 : vector<16xf32> to vector<16x1xf32>
      %cst_134 = arith.constant 9.99999997E-7 : f32
      %288 = vector.broadcast %cst_134 : f32 to vector<16x1xf32>
      %289 = arith.addf %287, %288 : vector<16x1xf32>
      %290 = math.rsqrt %289 : vector<16x1xf32>
      %291 = vector.broadcast %290 : vector<16x1xf32> to vector<16x64xf32>
      %292 = arith.mulf %263, %291 : vector<16x64xf32>
      %293 = arith.mulf %108, %108 : vector<1x64xf32>
      %cst_135 = arith.constant dense<0.000000e+00> : vector<1xf32>
      %294 = vector.multi_reduction <add>, %293, %cst_135 [1] : vector<1x64xf32> to vector<1xf32>
      %295 = vector.shape_cast %294 : vector<1xf32> to vector<1x1xf32>
      %cst_136 = arith.constant 9.99999997E-7 : f32
      %296 = vector.broadcast %cst_136 : f32 to vector<1x1xf32>
      %297 = arith.addf %295, %296 : vector<1x1xf32>
      %298 = math.rsqrt %297 : vector<1x1xf32>
      %299 = vector.broadcast %298 : vector<1x1xf32> to vector<1x64xf32>
      %300 = arith.mulf %108, %299 : vector<1x64xf32>
      %cst_137 = arith.constant dense<0.000000e+00> : vector<1x16xf32>
      %301 = tpu.matmul %300, %292, %cst_137 {dimension_numbers = #tpu.dot_dimension_numbers<[1], [1], [0], [0], [0, 0, 1, 0], [], []>} : vector<1x64xf32>, vector<16x64xf32>, vector<1x16xf32> -> vector<1x16xf32>
      %302 = vector.broadcast %130 : vector<1x1xf32> to vector<1x16xf32>
      %303 = arith.mulf %301, %302 : vector<1x16xf32>
      %cst_138 = arith.constant dense<0xFF800000> : vector<1xf32>
      %304 = vector.multi_reduction <maximumf>, %303, %cst_138 [1] : vector<1x16xf32> to vector<1xf32>
      %cst_139 = arith.constant 0xFF800000 : f32
      %305 = vector.broadcast %cst_139 : f32 to vector<1xf32>
      %306 = arith.maximumf %305, %304 : vector<1xf32>
      %307 = vector.shape_cast %306 : vector<1xf32> to vector<1x1xf32>
      %308 = vector.broadcast %307 : vector<1x1xf32> to vector<1x16xf32>
      %309 = arith.subf %303, %308 : vector<1x16xf32>
      %310 = math.exp %309 : vector<1x16xf32>
      %cst_140 = arith.constant dense<0.000000e+00> : vector<1xf32>
      %311 = vector.multi_reduction <add>, %310, %cst_140 [1] : vector<1x16xf32> to vector<1xf32>
      %312 = vector.shape_cast %311 : vector<1xf32> to vector<1x1xf32>
      %313 = vector.broadcast %312 : vector<1x1xf32> to vector<1x16xf32>
      %314 = arith.divf %310, %313 : vector<1x16xf32>
      %cst_141 = arith.constant dense<0.000000e+00> : vector<1x16xf32>
      %315 = tpu.matmul %55, %277, %cst_141 {dimension_numbers = #tpu.dot_dimension_numbers<[1], [1], [0], [0], [0, 0, 1, 0], [], []>} : vector<1x16xf32>, vector<16x16xf32>, vector<1x16xf32> -> vector<1x16xf32>
      %cst_142 = arith.constant dense<0.000000e+00> : vector<1x16xf32>
      %316 = tpu.matmul %55, %277, %cst_142 {dimension_numbers = #tpu.dot_dimension_numbers<[1], [0], [0], [1], [0, 0, 1, 1], [], []>} : vector<1x16xf32>, vector<16x16xf32>, vector<1x16xf32> -> vector<1x16xf32>
      %317 = vector.extract_strided_slice %171 {offsets = [0, 0], sizes = [1, 1], strides = [1, 1]} : vector<1x3xf32> to vector<1x1xf32>
      %318 = vector.broadcast %317 : vector<1x1xf32> to vector<1x16xf32>
      %319 = arith.mulf %318, %316 : vector<1x16xf32>
      %320 = vector.extract_strided_slice %171 {offsets = [0, 1], sizes = [1, 1], strides = [1, 1]} : vector<1x3xf32> to vector<1x1xf32>
      %321 = vector.broadcast %320 : vector<1x1xf32> to vector<1x16xf32>
      %322 = arith.mulf %321, %315 : vector<1x16xf32>
      %323 = arith.addf %319, %322 : vector<1x16xf32>
      %324 = vector.extract_strided_slice %171 {offsets = [0, 2], sizes = [1, 1], strides = [1, 1]} : vector<1x3xf32> to vector<1x1xf32>
      %325 = vector.broadcast %324 : vector<1x1xf32> to vector<1x16xf32>
      %326 = arith.mulf %325, %314 : vector<1x16xf32>
      %327 = arith.addf %323, %326 : vector<1x16xf32>
      %cst_143 = arith.constant dense<0.000000e+00> : vector<1x64xf32>
      %328 = tpu.matmul %327, %263, %cst_143 {dimension_numbers = #tpu.dot_dimension_numbers<[1], [0], [0], [1], [0, 0, 1, 1], [], []>} : vector<1x16xf32>, vector<16x64xf32>, vector<1x64xf32> -> vector<1x64xf32>
      %c0_144 = arith.constant 0 : index
      %c0_145 = arith.constant 0 : index
      %329 = vector.load %arg11[%c0_144, %c0_145] : memref<1x128xf32, #tpu.memory_space<vmem>>, vector<1x128xf32>
      tpu.vector_store %arg11[%c0_144, %c0_145], %96 {strides = array<i32>} : memref<1x128xf32, #tpu.memory_space<vmem>>, vector<1x128xf32>,
      %c0_146 = arith.constant 0 : index
      %c0_147 = arith.constant 0 : index
      %330 = vector.load %arg12[%c0_146, %c0_147] : memref<1x128xf32, #tpu.memory_space<vmem>>, vector<1x128xf32>
      tpu.vector_store %arg12[%c0_146, %c0_147], %94 {strides = array<i32>} : memref<1x128xf32, #tpu.memory_space<vmem>>, vector<1x128xf32>,
      %c0_148 = arith.constant 0 : index
      %c0_149 = arith.constant 0 : index
      %331 = vector.load %arg13[%c0_148, %c0_149] : memref<1x64xf32, #tpu.memory_space<vmem>>, vector<1x64xf32>
      tpu.vector_store %arg13[%c0_148, %c0_149], %328 {strides = array<i32>} : memref<1x64xf32, #tpu.memory_space<vmem>>, vector<1x64xf32>,
      %c0_150 = arith.constant 0 : index
      %c0_151 = arith.constant 0 : index
      %332 = vector.load %arg14[%c0_150, %c0_151] : memref<16x64xf32, #tpu.memory_space<vmem>>, vector<16x64xf32>
      tpu.vector_store %arg14[%c0_150, %c0_151], %263 {strides = array<i32>} : memref<16x64xf32, #tpu.memory_space<vmem>>, vector<16x64xf32>,
      %c0_152 = arith.constant 0 : index
      %c0_153 = arith.constant 0 : index
      %333 = vector.load %arg15[%c0_152, %c0_153] : memref<16x16xf32, #tpu.memory_space<vmem>>, vector<16x16xf32>
      tpu.vector_store %arg15[%c0_152, %c0_153], %277 {strides = array<i32>} : memref<16x16xf32, #tpu.memory_space<vmem>>, vector<16x16xf32>,
      %c0_154 = arith.constant 0 : index
      %c0_155 = arith.constant 0 : index
      %334 = vector.load %arg16[%c0_154, %c0_155] : memref<1x16xf32, #tpu.memory_space<vmem>>, vector<1x16xf32>
      tpu.vector_store %arg16[%c0_154, %c0_155], %284 {strides = array<i32>} : memref<1x16xf32, #tpu.memory_space<vmem>>, vector<1x16xf32>,
      %c0_156 = arith.constant 0 : index
      %c0_157 = arith.constant 0 : index
      %335 = vector.load %arg17[%c0_156, %c0_157] : memref<1x16xf32, #tpu.memory_space<vmem>>, vector<1x16xf32>
      tpu.vector_store %arg17[%c0_156, %c0_157], %327 {strides = array<i32>} : memref<1x16xf32, #tpu.memory_space<vmem>>, vector<1x16xf32>,
      %c0_158 = arith.constant 0 : index
      %c0_159 = arith.constant 0 : index
      %336 = vector.load %arg18[%c0_158, %c0_159] : memref<1x16xf32, #tpu.memory_space<vmem>>, vector<1x16xf32>
      tpu.vector_store %arg18[%c0_158, %c0_159], %247 {strides = array<i32>} : memref<1x16xf32, #tpu.memory_space<vmem>>, vector<1x16xf32>,
      %c0_160 = arith.constant 0 : index
      %c0_161 = arith.constant 0 : index
      %337 = vector.load %arg19[%c0_160, %c0_161] : memref<1x16xf32, #tpu.memory_space<vmem>>, vector<1x16xf32>
      tpu.vector_store %arg19[%c0_160, %c0_161], %180 {strides = array<i32>} : memref<1x16xf32, #tpu.memory_space<vmem>>, vector<1x16xf32>,
    }
    %c0_30 = arith.constant 0 : index
    %c0_31 = arith.constant 0 : index
    %27 = vector.load %arg11[%c0_30, %c0_31] : memref<1x128xf32, #tpu.memory_space<vmem>>, vector<1x128xf32>
    %cst_32 = arith.constant -2.000000e+01 : f32
    %cst_33 = arith.constant 2.000000e+01 : f32
    %28 = vector.broadcast %cst_32 : f32 to vector<1x128xf32>
    %29 = arith.maximumf %28, %27 : vector<1x128xf32>
    %30 = vector.broadcast %cst_33 : f32 to vector<1x128xf32>
    %31 = arith.minimumf %30, %29 : vector<1x128xf32>
    %c0_34 = arith.constant 0 : index
    %c0_35 = arith.constant 0 : index
    %c0_36 = arith.constant 0 : index
    %32 = vector.load %arg7[%c0_34, %c0_35, %c0_36] : memref<1x192x64xf32, #tpu.memory_space<vmem>>, vector<1x128x64xf32>
    %33 = vector.shape_cast %32 : vector<1x128x64xf32> to vector<128x64xf32>
    %cst_37 = arith.constant dense<0.000000e+00> : vector<1x64xf32>
    %34 = tpu.matmul %31, %33, %cst_37 {dimension_numbers = #tpu.dot_dimension_numbers<[1], [0], [0], [1], [0, 0, 1, 1], [], []>} : vector<1x128xf32>, vector<128x64xf32>, vector<1x64xf32> -> vector<1x64xf32>
    %c0_38 = arith.constant 0 : index
    %c0_39 = arith.constant 0 : index
    %35 = vector.load %arg13[%c0_38, %c0_39] : memref<1x64xf32, #tpu.memory_space<vmem>>, vector<1x64xf32>
    %c0_40 = arith.constant 0 : index
    %c128 = arith.constant 128 : index
    %c0_41 = arith.constant 0 : index
    %36 = vector.load %arg7[%c0_40, %c128, %c0_41] : memref<1x192x64xf32, #tpu.memory_space<vmem>>, vector<1x64x64xf32>
    %37 = vector.shape_cast %36 : vector<1x64x64xf32> to vector<64x64xf32>
    %cst_42 = arith.constant dense<0.000000e+00> : vector<1x64xf32>
    %38 = tpu.matmul %35, %37, %cst_42 {dimension_numbers = #tpu.dot_dimension_numbers<[1], [0], [0], [1], [0, 0, 1, 1], [], []>} : vector<1x64xf32>, vector<64x64xf32>, vector<1x64xf32> -> vector<1x64xf32>
    %39 = arith.addf %34, %38 : vector<1x64xf32>
    %c0_43 = arith.constant 0 : index
    %c0_44 = arith.constant 0 : index
    %c0_45 = arith.constant 0 : index
    %40 = vector.load %arg8[%c0_43, %c0_44, %c0_45] : memref<1x1x64xf32, #tpu.memory_space<vmem>>, vector<1x1x64xf32>
    %41 = vector.shape_cast %40 : vector<1x1x64xf32> to vector<1x64xf32>
    %42 = arith.addf %39, %41 : vector<1x64xf32>
    %c0_46 = arith.constant 0 : index
    %c0_47 = arith.constant 0 : index
    %c0_48 = arith.constant 0 : index
    %43 = vector.load %arg10[%c0_46, %c0_47, %c0_48] : memref<1x1x64xf32, #tpu.memory_space<vmem>>, vector<1x1x64xf32>
    %44 = vector.shape_cast %43 : vector<1x1x64xf32> to vector<1x64xf32>
    %45 = vector.shape_cast %42 : vector<1x64xf32> to vector<1x1x64xf32>
    tpu.vector_store %arg10[%c0_46, %c0_47, %c0_48], %45 {strides = array<i32>} : memref<1x1x64xf32, #tpu.memory_space<vmem>>, vector<1x1x64xf32>,
    return
  }
  func.func @transform_0(%arg0: i32, %arg1: memref<3xi32, #tpu.memory_space<smem>>) -> (i32, i32, i32) {
    %c0_i32 = arith.constant 0 : i32
    %c0_i32_0 = arith.constant 0 : i32
    %c0_i32_1 = arith.constant 0 : i32
    return %arg0, %c0_i32, %c0_i32_0 : i32, i32, i32
  }
  func.func @transform_1(%arg0: i32, %arg1: memref<3xi32, #tpu.memory_space<smem>>) -> (i32, i32, i32) {
    %c0_i32 = arith.constant 0 : i32
    %c0_i32_0 = arith.constant 0 : i32
    %c0_i32_1 = arith.constant 0 : i32
    return %arg0, %c0_i32, %c0_i32_0 : i32, i32, i32
  }
  func.func @transform_2(%arg0: i32, %arg1: memref<3xi32, #tpu.memory_space<smem>>) -> (i32, i32, i32) {
    %c0_i32 = arith.constant 0 : i32
    %c0_i32_0 = arith.constant 0 : i32
    %c0_i32_1 = arith.constant 0 : i32
    return %arg0, %c0_i32, %c0_i32_0 : i32, i32, i32
  }
  func.func @transform_3(%arg0: i32, %arg1: memref<3xi32, #tpu.memory_space<smem>>) -> (i32, i32, i32) {
    %c0_i32 = arith.constant 0 : i32
    %c0_i32_0 = arith.constant 0 : i32
    %c0_i32_1 = arith.constant 0 : i32
    return %arg0, %c0_i32, %c0_i32_0 : i32, i32, i32
  }
  func.func @transform_4(%arg0: i32, %arg1: memref<3xi32, #tpu.memory_space<smem>>) -> (i32, i32, i32) {
    %c0_i32 = arith.constant 0 : i32
    %c0_i32_0 = arith.constant 0 : i32
    %c0_i32_1 = arith.constant 0 : i32
    return %arg0, %c0_i32, %c0_i32_0 : i32, i32, i32
  }
  func.func @transform_5(%arg0: i32, %arg1: memref<3xi32, #tpu.memory_space<smem>>) -> (i32, i32, i32) {
    %c0_i32 = arith.constant 0 : i32
    %c0_i32_0 = arith.constant 0 : i32
    %c0_i32_1 = arith.constant 0 : i32
    return %arg0, %c0_i32, %c0_i32_0 : i32, i32, i32
  }
  func.func @transform_6(%arg0: i32, %arg1: memref<3xi32, #tpu.memory_space<smem>>) -> (i32, i32, i32) {
    %c0_i32 = arith.constant 0 : i32
    %c0_i32_0 = arith.constant 0 : i32
    %c0_i32_1 = arith.constant 0 : i32
    return %arg0, %c0_i32, %c0_i32_0 : i32, i32, i32
  }
  func.func @transform_7(%arg0: i32, %arg1: memref<3xi32, #tpu.memory_space<smem>>) -> (i32, i32, i32) {
    %c0_i32 = arith.constant 0 : i32
    %c0_i32_0 = arith.constant 0 : i32
    %c0_i32_1 = arith.constant 0 : i32
    return %arg0, %c0_i32, %c0_i32_0 : i32, i32, i32
  }
  func.func @transform_8(%arg0: i32, %arg1: memref<3xi32, #tpu.memory_space<smem>>) -> (i32, i32, i32) {
    %c0_i32 = arith.constant 0 : i32
    %c0_i32_0 = arith.constant 0 : i32
    %c0_i32_1 = arith.constant 0 : i32
    return %arg0, %c0_i32, %c0_i32_0 : i32, i32, i32
  }
}

</mosaic_0001>

<llo_original>
// kernel: tpu_custom_call.1
$region0: #{tpu_custom_call.1}
  #allocation0 [shape = 'u32[]', space=smem, size = 0x4, offset = 0x4, fixed_abs, tag = 'smem constant byte address 0x4 - core index']
  #allocation1 [shape = 'u32[144,128]{1,0:T(1,128)}', space=vmem, size = 0x12000, scoped, tag = 'internal scratch']
  #allocation2 [shape = 'f32[1,128]{1,0:T(1,128)}', space=vmem, size = 0x200, scoped, tag = 'scratch operand']
  #allocation3 [shape = 'f32[1,128]{1,0:T(1,128)}', space=vmem, size = 0x200, scoped, tag = 'scratch operand']
  #allocation4 [shape = 'f32[1,64]{1,0:T(1,128)}', space=vmem, size = 0x200, scoped, tag = 'scratch operand']
  #allocation5 [shape = 'f32[16,64]{1,0:T(8,128)}', space=vmem, size = 0x2000, scoped, tag = 'scratch operand']
  #allocation6 [shape = 'f32[16,16]{1,0:T(8,128)}', space=vmem, size = 0x2000, scoped, tag = 'scratch operand']
  #allocation7 [shape = 'f32[1,16]{1,0:T(1,128)}', space=vmem, size = 0x200, scoped, tag = 'scratch operand']
  #allocation8 [shape = 'f32[1,16]{1,0:T(1,128)}', space=vmem, size = 0x200, scoped, tag = 'scratch operand']
  #allocation9 [shape = 'f32[1,16]{1,0:T(1,128)}', space=vmem, size = 0x200, scoped, tag = 'scratch operand']
  #allocation10 [shape = 'f32[1,16]{1,0:T(1,128)}', space=vmem, size = 0x200, scoped, tag = 'scratch operand']
  #allocation11 [shape = 's32[1]{0}', space=sflag, size = 0x4, scoped, tag = 'scoped memory for tpu_custom_call.1']
  #allocation12 [shape = 'u8[512]{0}', space=smem, size = 0x200, scoped, tag = 'prefetched SMEM operand 0']
  %s0 = inlined_call_operand.hbm [shape: s32[3], index: 0, kind: input, shape index: {}]
  %s1 = inlined_call_operand.vmem [shape: f32[3,5,64], index: 1, kind: input, shape index: {}]
  %s2 = inlined_call_operand.hbm [shape: f32[3,256,512], index: 2, kind: input, shape index: {}]
  %s3 = inlined_call_operand.hbm [shape: f32[3,1,512], index: 3, kind: input, shape index: {}]
  %s4 = inlined_call_operand.hbm [shape: f32[3,128,384], index: 4, kind: input, shape index: {}]
  %s5 = inlined_call_operand.hbm [shape: f32[3,1,384], index: 5, kind: input, shape index: {}]
  %s6 = inlined_call_operand.vmem [shape: f32[3,192,64], index: 6, kind: input, shape index: {}]
  %s7 = inlined_call_operand.hbm [shape: f32[3,1,64], index: 7, kind: input, shape index: {}]
  %s8 = inlined_call_operand.hbm [shape: f32[3,1,128], index: 8, kind: input, shape index: {}]
  %s9 = inlined_call_operand.hbm [shape: f32[3,1,64], index: 9, kind: output, shape index: {}]
  %s10 = sld [smem:[#allocation0]]
  $region96: #{tpu_custom_call.1} parent=0
    _
  %s12 = ssub.s32 1, %s10
  %s13 = scalar_select 0, %s12, %s10
  %15 = dma.hbm_to_smem %s0, 16, [#allocation12], [#allocation11]
  %16 = dma.done [#allocation11], 16
  %17 = sfence
  $region1: #{tpu_custom_call.1} parent=0
    #allocation13 [shape = 'u8[1048576]{0}', space=vmem, size = 0x100000, scoped, tag = 'input window, operand 2']
    #allocation14 [shape = 's32[2]{0}', space=sflag, size = 0x8, scoped, tag = 'scoped memory for tpu_custom_call.1']
    #allocation15 [shape = 's32[2]{0}', space=sflag, size = 0x8, scoped, tag = 'scoped memory for tpu_custom_call.1']
    #allocation16 [shape = 'u8[4096]{0}', space=vmem, size = 0x1000, scoped, tag = 'input window, operand 3']
    #allocation17 [shape = 's32[2]{0}', space=sflag, size = 0x8, scoped, tag = 'scoped memory for tpu_custom_call.1']
    #allocation18 [shape = 'u8[393216]{0}', space=vmem, size = 0x60000, scoped, tag = 'input window, operand 4']
    #allocation19 [shape = 'u8[3072]{0}', space=vmem, size = 0xc00, scoped, tag = 'input window, operand 5']
    #allocation20 [shape = 's32[2]{0}', space=sflag, size = 0x8, scoped, tag = 'scoped memory for tpu_custom_call.1']
    #allocation21 [shape = 'u8[1024]{0}', space=vmem, size = 0x400, scoped, tag = 'input window, operand 7']
    #allocation22 [shape = 'u8[1024]{0}', space=vmem, size = 0x400, scoped, tag = 'input window, operand 8']
    #allocation23 [shape = 's32[2]{0}', space=sflag, size = 0x8, scoped, tag = 'scoped memory for tpu_custom_call.1']
    #allocation24 [shape = 'u8[1024]{0}', space=vmem, size = 0x400, scoped, tag = 'output window, operand 0']
    %18 = vsyncpa [#allocation14], 0
    %s19 = scalar_lea.sflag [#allocation14], 1
    %20 = vsyncpa %s19, 0
    %21 = vsyncpa [#allocation17], 0
    %s22 = scalar_lea.sflag [#allocation17], 1
    %23 = vsyncpa %s22, 0
    %24 = vsyncpa [#allocation20], 0
    %s25 = scalar_lea.sflag [#allocation20], 1
    %26 = vsyncpa %s25, 0
    %27 = vsyncpa [#allocation23], 0
    %s28 = scalar_lea.sflag [#allocation23], 1
    %29 = vsyncpa %s28, 0
    %30 = vsyncpa [#allocation15], 0
    %s31 = scalar_lea.sflag [#allocation15], 1
    %32 = vsyncpa %s31, 0
    loop: start=0, step=1, limit=5
    $region2: #{tpu_custom_call.1} parent=1 // loop_pre_header
      _
    $region3: #{tpu_custom_call.1} parent=1 // loop_header
      %s34 = sphi 0, %s38
      %p35 = scmp.ge.s32.totalorder %s34, 5
      %s44 = sphi 0, %s46
      %s47 = sphi 0, %s44
      %s48 = sphi 0, %s47
      %s64 = sphi 0, %s48
      %s70 = sphi 0, %s72
      %s73 = sphi 0, %s70
      %s74 = sphi 0, %s73
      %s90 = sphi 0, %s74
      %s96 = sphi 0, %s98
      %s99 = sphi 0, %s96
      %s100 = sphi 0, %s99
      %s116 = sphi 0, %s100
      %s122 = sphi 0, %s124
      %s125 = sphi 0, %s122
      %s126 = sphi 0, %s125
      %s142 = sphi 0, %s126
      %s148 = sphi 0, %s150
      %s151 = sphi 0, %s148
      %s152 = sphi 0, %s151
      %s168 = sphi 0, %s152
      %s174 = sphi 0, %s176
      %s177 = sphi 0, %s174
      %s178 = sphi 0, %s177
      %s194 = sphi 0, %s178
      %s200 = sphi 0, %s202
      %s203 = sphi 0, %s200
      %s204 = sphi 0, %s203
      %s220 = sphi 0, %s204
      %s226 = sphi 0, %s228
      %s229 = sphi 0, %s226
      %s230 = sphi 0, %s229
      %s246 = sphi 0, %s230
      %s252 = sphi 0, %s254
      %s255 = sphi 0, %s252
      %s256 = sphi 0, %s255
      %s272 = sphi 0, %s256
    $region4: #{tpu_custom_call.1} parent=1 // loop_header_branch
      %37 = sbr.rel (%p35) target = $region8
    $region5: #{tpu_custom_call.1} parent=1 // loop_body
      %s39 = ssub.s32 %s34, 1
      %s40 = ssub.s32 %s34, 2
      %s41 = sadd.s32 %s34, 1
      %s42 = ssub.s32 %s34, %s41
      %p43 = scmp.eq.s32.totalorder %s42, 0
      %s45 = sadd.s32 %s44, 1
      %s46 = scalar_select %p43, %s44, %s45
      %p49 = pneg %p43
      %p50 = scmp.eq.s32.totalorder %s34, 2
      %p51 = por %p49, %p50
      %p52 = scmp.ne.s32.totalorder %s44, %s47
      %p53 = scmp.eq.s32.totalorder %s34, 0
      %p54 = por %p52, %p53
      %p55 = scmp.ne.s32.totalorder %s44, %s47
      %p56 = scmp.eq.s32.totalorder %s39, 2
      %p57 = por %p55, %p56
      %p58 = scmp.ne.s32.totalorder %s47, %s48
      %p59 = scmp.eq.s32.totalorder %s39, 0
      %p60 = por %p58, %p59
      %p61 = scmp.ne.s32.totalorder %s47, %s48
      %p62 = scmp.eq.s32.totalorder %s40, 2
      %p63 = por %p61, %p62
      %p65 = scmp.ne.s32.totalorder %s48, %s64
      %p66 = scmp.eq.s32.totalorder %s40, 0
      %p67 = por %p65, %p66
      %s68 = ssub.s32 %s34, %s41
      %p69 = scmp.eq.s32.totalorder %s68, 0
      %s71 = sadd.s32 %s70, 1
      %s72 = scalar_select %p69, %s70, %s71
      %p75 = pneg %p69
      %p76 = scmp.eq.s32.totalorder %s34, 2
      %p77 = por %p75, %p76
      %p78 = scmp.ne.s32.totalorder %s70, %s73
      %p79 = scmp.eq.s32.totalorder %s34, 0
      %p80 = por %p78, %p79
      %p81 = scmp.ne.s32.totalorder %s70, %s73
      %p82 = scmp.eq.s32.totalorder %s39, 2
      %p83 = por %p81, %p82
      %p84 = scmp.ne.s32.totalorder %s73, %s74
      %p85 = scmp.eq.s32.totalorder %s39, 0
      %p86 = por %p84, %p85
      %p87 = scmp.ne.s32.totalorder %s73, %s74
      %p88 = scmp.eq.s32.totalorder %s40, 2
      %p89 = por %p87, %p88
      %p91 = scmp.ne.s32.totalorder %s74, %s90
      %p92 = scmp.eq.s32.totalorder %s40, 0
      %p93 = por %p91, %p92
      %s94 = ssub.s32 %s34, %s41
      %p95 = scmp.eq.s32.totalorder %s94, 0
      %s97 = sadd.s32 %s96, 1
      %s98 = scalar_select %p95, %s96, %s97
      %p101 = pneg %p95
      %p102 = scmp.eq.s32.totalorder %s34, 2
      %p103 = por %p101, %p102
      %p104 = scmp.ne.s32.totalorder %s96, %s99
      %p105 = scmp.eq.s32.totalorder %s34, 0
      %p106 = por %p104, %p105
      %p107 = scmp.ne.s32.totalorder %s96, %s99
      %p108 = scmp.eq.s32.totalorder %s39, 2
      %p109 = por %p107, %p108
      %p110 = scmp.ne.s32.totalorder %s99, %s100
      %p111 = scmp.eq.s32.totalorder %s39, 0
      %p112 = por %p110, %p111
      %p113 = scmp.ne.s32.totalorder %s99, %s100
      %p114 = scmp.eq.s32.totalorder %s40, 2
      %p115 = por %p113, %p114
      %p117 = scmp.ne.s32.totalorder %s100, %s116
      %p118 = scmp.eq.s32.totalorder %s40, 0
      %p119 = por %p117, %p118
      %s120 = ssub.s32 %s34, %s41
      %p121 = scmp.eq.s32.totalorder %s120, 0
      %s123 = sadd.s32 %s122, 1
      %s124 = scalar_select %p121, %s122, %s123
      %p127 = pneg %p121
      %p128 = scmp.eq.s32.totalorder %s34, 2
      %p129 = por %p127, %p128
      %p130 = scmp.ne.s32.totalorder %s122, %s125
      %p131 = scmp.eq.s32.totalorder %s34, 0
      %p132 = por %p130, %p131
      %p133 = scmp.ne.s32.totalorder %s122, %s125
      %p134 = scmp.eq.s32.totalorder %s39, 2
      %p135 = por %p133, %p134
      %p136 = scmp.ne.s32.totalorder %s125, %s126
      %p137 = scmp.eq.s32.totalorder %s39, 0
      %p138 = por %p136, %p137
      %p139 = scmp.ne.s32.totalorder %s125, %s126
      %p140 = scmp.eq.s32.totalorder %s40, 2
      %p141 = por %p139, %p140
      %p143 = scmp.ne.s32.totalorder %s126, %s142
      %p144 = scmp.eq.s32.totalorder %s40, 0
      %p145 = por %p143, %p144
      %s146 = ssub.s32 %s34, %s41
      %p147 = scmp.eq.s32.totalorder %s146, 0
      %s149 = sadd.s32 %s148, 1
      %s150 = scalar_select %p147, %s148, %s149
      %p153 = pneg %p147
      %p154 = scmp.eq.s32.totalorder %s34, 2
      %p155 = por %p153, %p154
      %p156 = scmp.ne.s32.totalorder %s148, %s151
      %p157 = scmp.eq.s32.totalorder %s34, 0
      %p158 = por %p156, %p157
      %p159 = scmp.ne.s32.totalorder %s148, %s151
      %p160 = scmp.eq.s32.totalorder %s39, 2
      %p161 = por %p159, %p160
      %p162 = scmp.ne.s32.totalorder %s151, %s152
      %p163 = scmp.eq.s32.totalorder %s39, 0
      %p164 = por %p162, %p163
      %p165 = scmp.ne.s32.totalorder %s151, %s152
      %p166 = scmp.eq.s32.totalorder %s40, 2
      %p167 = por %p165, %p166
      %p169 = scmp.ne.s32.totalorder %s152, %s168
      %p170 = scmp.eq.s32.totalorder %s40, 0
      %p171 = por %p169, %p170
      %s172 = ssub.s32 %s34, %s41
      %p173 = scmp.eq.s32.totalorder %s172, 0
      %s175 = sadd.s32 %s174, 1
      %s176 = scalar_select %p173, %s174, %s175
      %p179 = pneg %p173
      %p180 = scmp.eq.s32.totalorder %s34, 2
      %p181 = por %p179, %p180
      %p182 = scmp.ne.s32.totalorder %s174, %s177
      %p183 = scmp.eq.s32.totalorder %s34, 0
      %p184 = por %p182, %p183
      %p185 = scmp.ne.s32.totalorder %s174, %s177
      %p186 = scmp.eq.s32.totalorder %s39, 2
      %p187 = por %p185, %p186
      %p188 = scmp.ne.s32.totalorder %s177, %s178
      %p189 = scmp.eq.s32.totalorder %s39, 0
      %p190 = por %p188, %p189
      %p191 = scmp.ne.s32.totalorder %s177, %s178
      %p192 = scmp.eq.s32.totalorder %s40, 2
      %p193 = por %p191, %p192
      %p195 = scmp.ne.s32.totalorder %s178, %s194
      %p196 = scmp.eq.s32.totalorder %s40, 0
      %p197 = por %p195, %p196
      %s198 = ssub.s32 %s34, %s41
      %p199 = scmp.eq.s32.totalorder %s198, 0
      %s201 = sadd.s32 %s200, 1
      %s202 = scalar_select %p199, %s200, %s201
      %p205 = pneg %p199
      %p206 = scmp.eq.s32.totalorder %s34, 2
      %p207 = por %p205, %p206
      %p208 = scmp.ne.s32.totalorder %s200, %s203
      %p209 = scmp.eq.s32.totalorder %s34, 0
      %p210 = por %p208, %p209
      %p211 = scmp.ne.s32.totalorder %s200, %s203
      %p212 = scmp.eq.s32.totalorder %s39, 2
      %p213 = por %p211, %p212
      %p214 = scmp.ne.s32.totalorder %s203, %s204
      %p215 = scmp.eq.s32.totalorder %s39, 0
      %p216 = por %p214, %p215
      %p217 = scmp.ne.s32.totalorder %s203, %s204
      %p218 = scmp.eq.s32.totalorder %s40, 2
      %p219 = por %p217, %p218
      %p221 = scmp.ne.s32.totalorder %s204, %s220
      %p222 = scmp.eq.s32.totalorder %s40, 0
      %p223 = por %p221, %p222
      %s224 = ssub.s32 %s34, %s41
      %p225 = scmp.eq.s32.totalorder %s224, 0
      %s227 = sadd.s32 %s226, 1
      %s228 = scalar_select %p225, %s226, %s227
      %p231 = pneg %p225
      %p232 = scmp.eq.s32.totalorder %s34, 2
      %p233 = por %p231, %p232
      %p234 = scmp.ne.s32.totalorder %s226, %s229
      %p235 = scmp.eq.s32.totalorder %s34, 0
      %p236 = por %p234, %p235
      %p237 = scmp.ne.s32.totalorder %s226, %s229
      %p238 = scmp.eq.s32.totalorder %s39, 2
      %p239 = por %p237, %p238
      %p240 = scmp.ne.s32.totalorder %s229, %s230
      %p241 = scmp.eq.s32.totalorder %s39, 0
      %p242 = por %p240, %p241
      %p243 = scmp.ne.s32.totalorder %s229, %s230
      %p244 = scmp.eq.s32.totalorder %s40, 2
      %p245 = por %p243, %p244
      %p247 = scmp.ne.s32.totalorder %s230, %s246
      %p248 = scmp.eq.s32.totalorder %s40, 0
      %p249 = por %p247, %p248
      %s250 = ssub.s32 %s34, %s41
      %p251 = scmp.eq.s32.totalorder %s250, 0
      %s253 = sadd.s32 %s252, 1
      %s254 = scalar_select %p251, %s252, %s253
      %p257 = pneg %p251
      %p258 = scmp.eq.s32.totalorder %s34, 2
      %p259 = por %p257, %p258
      %p260 = scmp.ne.s32.totalorder %s252, %s255
      %p261 = scmp.eq.s32.totalorder %s34, 0
      %p262 = por %p260, %p261
      %p263 = scmp.ne.s32.totalorder %s252, %s255
      %p264 = scmp.eq.s32.totalorder %s39, 2
      %p265 = por %p263, %p264
      %p266 = scmp.ne.s32.totalorder %s255, %s256
      %p267 = scmp.eq.s32.totalorder %s39, 0
      %p268 = por %p266, %p267
      %p269 = scmp.ne.s32.totalorder %s255, %s256
      %p270 = scmp.eq.s32.totalorder %s40, 2
      %p271 = por %p269, %p270
      %p273 = scmp.ne.s32.totalorder %s256, %s272
      %p274 = scmp.eq.s32.totalorder %s40, 0
      %p275 = por %p273, %p274
      %p276 = scmp.le.s32.totalorder 1, %s34
      %p277 = scmp.lt.s32.totalorder %s34, 4
      %p278 = pnand %p276, %p277
      %p279 = pneg %p278
      // Predicated region
      $region9: #{tpu_custom_call.1} parent=5 // pred_check
        _
      $region10: #{tpu_custom_call.1} parent=5 // pred_check_branch
        %281 = sbr.rel (%p278) target = $region12
      $region11: #{tpu_custom_call.1} parent=5 // pred_region
        %s282 = ssub.s32 %s34, 1
      $region12: #{tpu_custom_call.1} parent=5 // pred_fallthru
        _
      %p283 = scmp.lt.s32.totalorder %s34, 3
      // Predicated region
      $region13: #{tpu_custom_call.1} parent=5 // pred_check
        %p284 = pneg %p283
      $region14: #{tpu_custom_call.1} parent=5 // pred_check_branch
        %286 = sbr.rel (%p284) target = $region16
      $region15: #{tpu_custom_call.1} parent=5 // pred_region
        // Predicated region
        $region17: #{tpu_custom_call.1} parent=15 // pred_check
          %p287 = pneg %p54
        $region18: #{tpu_custom_call.1} parent=15 // pred_check_branch
          %289 = sbr.rel (%p287) target = $region20
        $region19: #{tpu_custom_call.1} parent=15 // pred_region
          %p290 = scmp.lt.s32.totalorder %s34, 2
          %s291 = scalar_select %p290, %s34, 2
          %s292 = smul.addr %s291, 8
          %s293 = scalar_lea.vmem %s1, %s292
        $region20: #{tpu_custom_call.1} parent=15 // pred_fallthru
          _
        // Predicated region
        $region21: #{tpu_custom_call.1} parent=15 // pred_check
          %p294 = pneg %p80
        $region22: #{tpu_custom_call.1} parent=15 // pred_check_branch
          %296 = sbr.rel (%p294) target = $region24
        $region23: #{tpu_custom_call.1} parent=15 // pred_region
          %s297 = sand.u32 %s70, 1
          %s298 = scalar_lea.sflag [#allocation14], %s297
          %s299 = sand.u32 %s70, 1
          %s300 = smul.addr %s299, 1024
          %s301 = scalar_lea.vmem [#allocation13], %s300
          %s303 = ssub.s32 16384, 16384
          %304 = vsyncadd %s298, %s303
          %s305 = smul.addr %s34, 128
          %s306 = smul.addr %s305, 128
          %s307 = scalar_lea.hbm %s2, %s306
          %s308 = sshll.u32 %s301, 4
          %s309 = int_to_ptr.vmem [resolvable:$true] %s308
          %314 = dma.hbm_to_vmem [thread:$0]  %s307, 16384, %s309, %s298, 512, 512, 32
        $region24: #{tpu_custom_call.1} parent=15 // pred_fallthru
          _
        // Predicated region
        $region25: #{tpu_custom_call.1} parent=15 // pred_check
          %p315 = pneg %p106
        $region26: #{tpu_custom_call.1} parent=15 // pred_check_branch
          %317 = sbr.rel (%p315) target = $region28
        $region27: #{tpu_custom_call.1} parent=15 // pred_region
          %s318 = sand.u32 %s34, 1
          %s319 = scalar_lea.sflag [#allocation17], %s318
          %s320 = sand.u32 %s96, 1
          %s321 = smul.addr %s320, 4
          %s322 = scalar_lea.vmem [#allocation16], %s321
          %s324 = ssub.s32 64, 64
          %325 = vsyncadd %s319, %s324
          %s326 = smul.addr %s34, 4
          %s327 = smul.addr %s326, 16
          %s328 = scalar_lea.hbm %s3, %s327
          %s330 = sshll.u32 %s322, 4
          %s331 = int_to_ptr.vmem [resolvable:$true] %s330
          %333 = dma.hbm_to_vmem [thread:$0]  %s328, 64, %s331, %s319
        $region28: #{tpu_custom_call.1} parent=15 // pred_fallthru
          _
        // Predicated region
        $region29: #{tpu_custom_call.1} parent=15 // pred_check
          %p334 = pneg %p132
        $region30: #{tpu_custom_call.1} parent=15 // pred_check_branch
          %336 = sbr.rel (%p334) target = $region32
        $region31: #{tpu_custom_call.1} parent=15 // pred_region
          %s337 = sand.u32 %s34, 1
          %s338 = scalar_lea.sflag [#allocation17], %s337
          %s339 = sand.u32 %s122, 1
          %s340 = smul.addr %s339, 384
          %s341 = scalar_lea.vmem [#allocation18], %s340
          %s343 = ssub.s32 6144, 6144
          %344 = vsyncadd %s338, %s343
          %s345 = smul.addr %s34, 48
          %s346 = smul.addr %s345, 128
          %s347 = scalar_lea.hbm %s4, %s346
          %s348 = sshll.u32 %s341, 4
          %s349 = int_to_ptr.vmem [resolvable:$true] %s348
          %354 = dma.hbm_to_vmem [thread:$0]  %s347, 6144, %s349, %s338, 384, 384, 24
        $region32: #{tpu_custom_call.1} parent=15 // pred_fallthru
          _
        // Predicated region
        $region33: #{tpu_custom_call.1} parent=15 // pred_check
          %p355 = pneg %p158
        $region34: #{tpu_custom_call.1} parent=15 // pred_check_branch
          %357 = sbr.rel (%p355) target = $region36
        $region35: #{tpu_custom_call.1} parent=15 // pred_region
          %s358 = sand.u32 %s34, 1
          %s359 = scalar_lea.sflag [#allocation20], %s358
          %s360 = sand.u32 %s148, 1
          %s361 = smul.addr %s360, 3
          %s362 = scalar_lea.vmem [#allocation19], %s361
          %s364 = ssub.s32 48, 48
          %365 = vsyncadd %s359, %s364
          %s366 = smul.addr %s34, 3
          %s367 = smul.addr %s366, 16
          %s368 = scalar_lea.hbm %s5, %s367
          %s370 = sshll.u32 %s362, 4
          %s371 = int_to_ptr.vmem [resolvable:$true] %s370
          %373 = dma.hbm_to_vmem [thread:$0]  %s368, 48, %s371, %s359
        $region36: #{tpu_custom_call.1} parent=15 // pred_fallthru
          _
        // Predicated region
        $region37: #{tpu_custom_call.1} parent=15 // pred_check
          %p374 = pneg %p184
        $region38: #{tpu_custom_call.1} parent=15 // pred_check_branch
          %376 = sbr.rel (%p374) target = $region40
        $region39: #{tpu_custom_call.1} parent=15 // pred_region
          %p377 = scmp.lt.s32.totalorder %s34, 2
          %s378 = scalar_select %p377, %s34, 2
          %s379 = smul.addr %s378, 24
          %s380 = smul.addr %s379, 8
          %s381 = scalar_lea.vmem %s6, %s380
        $region40: #{tpu_custom_call.1} parent=15 // pred_fallthru
          _
        // Predicated region
        $region41: #{tpu_custom_call.1} parent=15 // pred_check
          %p382 = pneg %p210
        $region42: #{tpu_custom_call.1} parent=15 // pred_check_branch
          %384 = sbr.rel (%p382) target = $region44
        $region43: #{tpu_custom_call.1} parent=15 // pred_region
          %s385 = sand.u32 %s34, 1
          %s386 = scalar_lea.sflag [#allocation20], %s385
          %s387 = sand.u32 %s200, 1
          %s388 = scalar_lea.vmem [#allocation21], %s387
          %s390 = ssub.s32 16, 16
          %391 = vsyncadd %s386, %s390
          %s392 = smul.addr %s34, 16
          %s393 = scalar_lea.hbm %s7, %s392
          %s395 = sshll.u32 %s388, 4
          %s396 = int_to_ptr.vmem [resolvable:$true] %s395
          %398 = dma.hbm_to_vmem [thread:$0]  %s393, 16, %s396, %s386
        $region44: #{tpu_custom_call.1} parent=15 // pred_fallthru
          _
        // Predicated region
        $region45: #{tpu_custom_call.1} parent=15 // pred_check
          %p399 = pneg %p236
        $region46: #{tpu_custom_call.1} parent=15 // pred_check_branch
          %401 = sbr.rel (%p399) target = $region48
        $region47: #{tpu_custom_call.1} parent=15 // pred_region
          %s402 = sand.u32 %s226, 1
          %s403 = scalar_lea.sflag [#allocation23], %s402
          %s404 = sand.u32 %s226, 1
          %s405 = scalar_lea.vmem [#allocation22], %s404
          %s407 = ssub.s32 16, 16
          %408 = vsyncadd %s403, %s407
          %s409 = smul.addr %s34, 16
          %s410 = scalar_lea.hbm %s8, %s409
          %s412 = sshll.u32 %s405, 4
          %s413 = int_to_ptr.vmem [resolvable:$true] %s412
          %415 = dma.hbm_to_vmem [thread:$0]  %s410, 16, %s413, %s403
        $region48: #{tpu_custom_call.1} parent=15 // pred_fallthru
          _
      $region16: #{tpu_custom_call.1} parent=5 // pred_fallthru
        _
      %p416 = scmp.le.s32.totalorder 1, %s34
      %p417 = scmp.lt.s32.totalorder %s34, 4
      %p418 = pnand %p416, %p417
      %p419 = pneg %p418
      // Predicated region
      $region49: #{tpu_custom_call.1} parent=5 // pred_check
        _
      $region50: #{tpu_custom_call.1} parent=5 // pred_check_branch
        %421 = sbr.rel (%p418) target = $region52
      $region51: #{tpu_custom_call.1} parent=5 // pred_region
        %s422 = ssub.s32 %s34, 1
        %s423 = sand.u32 %s73, 1
        %s424 = scalar_lea.sflag [#allocation14], %s423
        %s425 = sand.u32 %s73, 1
        %s426 = smul.addr %s425, 1024
        %s427 = scalar_lea.vmem [#allocation13], %s426
        // Predicated region
        $region53: #{tpu_custom_call.1} parent=51 // pred_check
          %p428 = pneg %p86
        $region54: #{tpu_custom_call.1} parent=51 // pred_check_branch
          %430 = sbr.rel (%p428) target = $region56
        $region55: #{tpu_custom_call.1} parent=51 // pred_region
          %431 = dma.done %s424, 16384
        $region56: #{tpu_custom_call.1} parent=51 // pred_fallthru
          _
        %s432 = sand.u32 %s39, 1
        %s433 = scalar_lea.sflag [#allocation17], %s432
        %s434 = sand.u32 %s99, 1
        %s435 = smul.addr %s434, 4
        %s436 = scalar_lea.vmem [#allocation16], %s435
        // Predicated region
        $region57: #{tpu_custom_call.1} parent=51 // pred_check
          %p437 = pneg %p112
        $region58: #{tpu_custom_call.1} parent=51 // pred_check_branch
          %439 = sbr.rel (%p437) target = $region60
        $region59: #{tpu_custom_call.1} parent=51 // pred_region
          %440 = dma.done %s433, 64
        $region60: #{tpu_custom_call.1} parent=51 // pred_fallthru
          _
        %s441 = sand.u32 %s39, 1
        %s442 = scalar_lea.sflag [#allocation17], %s441
        %s443 = sand.u32 %s125, 1
        %s444 = smul.addr %s443, 384
        %s445 = scalar_lea.vmem [#allocation18], %s444
        // Predicated region
        $region61: #{tpu_custom_call.1} parent=51 // pred_check
          %p446 = pneg %p138
        $region62: #{tpu_custom_call.1} parent=51 // pred_check_branch
          %448 = sbr.rel (%p446) target = $region64
        $region63: #{tpu_custom_call.1} parent=51 // pred_region
          %449 = dma.done %s442, 6144
        $region64: #{tpu_custom_call.1} parent=51 // pred_fallthru
          _
        %s450 = sand.u32 %s39, 1
        %s451 = scalar_lea.sflag [#allocation20], %s450
        %s452 = sand.u32 %s151, 1
        %s453 = smul.addr %s452, 3
        %s454 = scalar_lea.vmem [#allocation19], %s453
        // Predicated region
        $region65: #{tpu_custom_call.1} parent=51 // pred_check
          %p455 = pneg %p164
        $region66: #{tpu_custom_call.1} parent=51 // pred_check_branch
          %457 = sbr.rel (%p455) target = $region68
        $region67: #{tpu_custom_call.1} parent=51 // pred_region
          %458 = dma.done %s451, 48
        $region68: #{tpu_custom_call.1} parent=51 // pred_fallthru
          _
        %s459 = sand.u32 %s39, 1
        %s460 = scalar_lea.sflag [#allocation20], %s459
        %s461 = sand.u32 %s203, 1
        %s462 = scalar_lea.vmem [#allocation21], %s461
        // Predicated region
        $region69: #{tpu_custom_call.1} parent=51 // pred_check
          %p463 = pneg %p216
        $region70: #{tpu_custom_call.1} parent=51 // pred_check_branch
          %465 = sbr.rel (%p463) target = $region72
        $region71: #{tpu_custom_call.1} parent=51 // pred_region
          %466 = dma.done %s460, 16
        $region72: #{tpu_custom_call.1} parent=51 // pred_fallthru
          _
        %s467 = sand.u32 %s229, 1
        %s468 = scalar_lea.sflag [#allocation23], %s467
        %s469 = sand.u32 %s229, 1
        %s470 = scalar_lea.vmem [#allocation22], %s469
        // Predicated region
        $region73: #{tpu_custom_call.1} parent=51 // pred_check
          %p471 = pneg %p242
        $region74: #{tpu_custom_call.1} parent=51 // pred_check_branch
          %473 = sbr.rel (%p471) target = $region76
        $region75: #{tpu_custom_call.1} parent=51 // pred_region
          %474 = dma.done %s468, 16
        $region76: #{tpu_custom_call.1} parent=51 // pred_fallthru
          _
        %p475 = scmp.lt.s32.totalorder %s39, 2
        %s476 = scalar_select %p475, %s39, 2
        %s477 = smul.addr %s476, 8
        %s478 = scalar_lea.vmem %s1, %s477
        %p479 = pneg %p60
        %p480 = pneg %p57
        %s481 = sand.u32 %s73, 1
        %s482 = scalar_lea.sflag [#allocation14], %s481
        %s483 = sand.u32 %s73, 1
        %s484 = smul.addr %s483, 1024
        %s485 = scalar_lea.vmem [#allocation13], %s484
        %p486 = pneg %p86
        %p487 = pneg %p83
        %s488 = sand.u32 %s39, 1
        %s489 = scalar_lea.sflag [#allocation17], %s488
        %s490 = sand.u32 %s99, 1
        %s491 = smul.addr %s490, 4
        %s492 = scalar_lea.vmem [#allocation16], %s491
        %p493 = pneg %p112
        %p494 = pneg %p109
        %s495 = sand.u32 %s39, 1
        %s496 = scalar_lea.sflag [#allocation17], %s495
        %s497 = sand.u32 %s125, 1
        %s498 = smul.addr %s497, 384
        %s499 = scalar_lea.vmem [#allocation18], %s498
        %p500 = pneg %p138
        %p501 = pneg %p135
        %s502 = sand.u32 %s39, 1
        %s503 = scalar_lea.sflag [#allocation20], %s502
        %s504 = sand.u32 %s151, 1
        %s505 = smul.addr %s504, 3
        %s506 = scalar_lea.vmem [#allocation19], %s505
        %p507 = pneg %p164
        %p508 = pneg %p161
        %p509 = scmp.lt.s32.totalorder %s39, 2
        %s510 = scalar_select %p509, %s39, 2
        %s511 = smul.addr %s510, 24
        %s512 = smul.addr %s511, 8
        %s513 = scalar_lea.vmem %s6, %s512
        %p514 = pneg %p190
        %p515 = pneg %p187
        %s516 = sand.u32 %s39, 1
        %s517 = scalar_lea.sflag [#allocation20], %s516
        %s518 = sand.u32 %s203, 1
        %s519 = scalar_lea.vmem [#allocation21], %s518
        %p520 = pneg %p216
        %p521 = pneg %p213
        %s522 = sand.u32 %s229, 1
        %s523 = scalar_lea.sflag [#allocation23], %s522
        %s524 = sand.u32 %s229, 1
        %s525 = scalar_lea.vmem [#allocation22], %s524
        %p526 = pneg %p242
        %p527 = pneg %p239
        %p528 = pneg %p268
        %p529 = pneg %p265
        %s530 = sand.u32 %s255, 1
        %s531 = scalar_lea.sflag [#allocation15], %s530
        %s532 = sand.u32 %s255, 1
        %s533 = scalar_lea.vmem [#allocation24], %s532
        %p534 = scmp.lt.s32.totalorder %s39, 2
        %s535 = scalar_select %p534, %s39, 2
        %s536 = smul.addr %s535, 8
        %s537 = scalar_lea.vmem %s1, %s536
        %p538 = scmp.lt.s32.totalorder %s39, 2
        %s539 = scalar_select %p538, %s39, 2
        %s540 = smul.addr %s539, 24
        %s541 = smul.addr %s540, 8
        %s542 = scalar_lea.vmem %s6, %s541
        %s543 = sld [smem:[#allocation12 + %s39]]
        %v544 = vld [vmem:[%s470] sm:$0x1]
        %545 = vst [vmem:[#allocation2] sm:$0x1] %v544
        %v546 = vld [vmem:[%s470] sm:$0x1]
        %547 = vst [vmem:[#allocation3] sm:$0x1] %v546
        %vm548 = vcmask 516096
        %549 = vst.msk [vmem:[#allocation4] sm:$0x1] %vm548, 0.0
        %vm550 = vcmask 523264
        %551 = vst.msk [vmem:[#allocation5] sm:$0xff] %vm550, 1e-06
        %552 = vst.msk [vmem:[#allocation5 + $0x8] sm:$0xff] %vm550, 1e-06
        %vm553 = vcmask 130048
        %554 = vst.msk [vmem:[#allocation6] sm:$0xff] %vm553, 0.0
        %555 = vst.msk [vmem:[#allocation6 + $0x8] sm:$0xff] %vm553, 0.0
        %vm556 = vcmask 122880
        %557 = vst.msk [vmem:[#allocation7] sm:$0x1] %vm556, 0.0
        %558 = vst.msk [vmem:[#allocation8] sm:$0x1] %vm556, 1e-06
        %559 = vst.msk [vmem:[#allocation9] sm:$0x1] %vm556, 1e-06
        %560 = vst.msk [vmem:[#allocation10] sm:$0x1] %vm556, 0.0
        %v561 = vlaneseq
        %v562 = vshrl.u32 %v561, 7
        %v563 = vadd.s32 %v562, 8
        %v564 = vlaneseq
        %v565 = vand.u32 %v564, 127
        %vm566 = vcmp.eq.s32.totalorder %v562, %v565
        %vm567 = vcmp.eq.s32.totalorder %v563, %v565
        // While loop
        $region77: #{tpu_custom_call.1} parent=51 // loop_pre_header
          _
        $region78: #{tpu_custom_call.1} parent=51 // loop_header
          %s569 = sphi 0, %s571
          %p570 = scmp.ge.s32.totalorder %s569, %s543
        $region79: #{tpu_custom_call.1} parent=51 // loop_header_branch
          %573 = sbr.rel (%p570) target = $region83
        $region80: #{tpu_custom_call.1} parent=51 // loop_body
          %s574 = scalar_lea.vmem %s537, %s569
          %v575 = vld [vmem:[%s574] sm:$0x1]
          %v576 = vld [vmem:[#allocation2] sm:$0x1]
          %v577 = vld [vmem:[#allocation3] sm:$0x1]
          %v578 = vld [vmem:[#allocation4] sm:$0x1]
          %v579 = vld [vmem:[#allocation5] sm:$0xff]
          %v580 = vld [vmem:[#allocation5 + $0x8] sm:$0xff]
          %v581 = vld [vmem:[#allocation6] sm:$0xff]
          %v582 = vld [vmem:[#allocation6 + $0x8] sm:$0xff]
          %v583 = vld [vmem:[#allocation7] sm:$0x1]
          %v584 = vld [vmem:[#allocation8] sm:$0x1]
          %v585 = vld [vmem:[#allocation9] sm:$0x1]
          %v586 = vld [vmem:[#allocation10] sm:$0x1]
          %v587 = vld [vmem:[%s427] sm:$0xff]
          %v588 = vld [vmem:[%s427 + $0x8] sm:$0xff]
          %v589 = vld [vmem:[%s427 + $0x10] sm:$0xff]
          %v590 = vld [vmem:[%s427 + $0x18] sm:$0xff]
          %v591 = vld [vmem:[%s427 + $0x20] sm:$0xff]
          %v592 = vld [vmem:[%s427 + $0x28] sm:$0xff]
          %v593 = vld [vmem:[%s427 + $0x30] sm:$0xff]
          %v594 = vld [vmem:[%s427 + $0x38] sm:$0xff]
          %v595 = vld [vmem:[%s427 + $0x40] sm:$0xff]
          %v596 = vld [vmem:[%s427 + $0x48] sm:$0xff]
          %v597 = vld [vmem:[%s427 + $0x50] sm:$0xff]
          %v598 = vld [vmem:[%s427 + $0x58] sm:$0xff]
          %v599 = vld [vmem:[%s427 + $0x60] sm:$0xff]
          %v600 = vld [vmem:[%s427 + $0x68] sm:$0xff]
          %v601 = vld [vmem:[%s427 + $0x70] sm:$0xff]
          %v602 = vld [vmem:[%s427 + $0x78] sm:$0xff]
          %v603 = vld [vmem:[%s427 + $0x80] sm:$0xff]
          %v604 = vld [vmem:[%s427 + $0x88] sm:$0xff]
          %v605 = vld [vmem:[%s427 + $0x90] sm:$0xff]
          %v606 = vld [vmem:[%s427 + $0x98] sm:$0xff]
          %v607 = vld [vmem:[%s427 + $0xa0] sm:$0xff]
          %v608 = vld [vmem:[%s427 + $0xa8] sm:$0xff]
          %v609 = vld [vmem:[%s427 + $0xb0] sm:$0xff]
          %v610 = vld [vmem:[%s427 + $0xb8] sm:$0xff]
          %v611 = vld [vmem:[%s427 + $0xc0] sm:$0xff]
          %v612 = vld [vmem:[%s427 + $0xc8] sm:$0xff]
          %v613 = vld [vmem:[%s427 + $0xd0] sm:$0xff]
          %v614 = vld [vmem:[%s427 + $0xd8] sm:$0xff]
          %v615 = vld [vmem:[%s427 + $0xe0] sm:$0xff]
          %v616 = vld [vmem:[%s427 + $0xe8] sm:$0xff]
          %v617 = vld [vmem:[%s427 + $0xf0] sm:$0xff]
          %v618 = vld [vmem:[%s427 + $0xf8] sm:$0xff]
          %v619 = vld [vmem:[%s427 + $0x100] sm:$0xff]
          %v620 = vld [vmem:[%s427 + $0x108] sm:$0xff]
          %v621 = vld [vmem:[%s427 + $0x110] sm:$0xff]
          %v622 = vld [vmem:[%s427 + $0x118] sm:$0xff]
          %v623 = vld [vmem:[%s427 + $0x120] sm:$0xff]
          %v624 = vld [vmem:[%s427 + $0x128] sm:$0xff]
          %v625 = vld [vmem:[%s427 + $0x130] sm:$0xff]
          %v626 = vld [vmem:[%s427 + $0x138] sm:$0xff]
          %v627 = vld [vmem:[%s427 + $0x140] sm:$0xff]
          %v628 = vld [vmem:[%s427 + $0x148] sm:$0xff]
          %v629 = vld [vmem:[%s427 + $0x150] sm:$0xff]
          %v630 = vld [vmem:[%s427 + $0x158] sm:$0xff]
          %v631 = vld [vmem:[%s427 + $0x160] sm:$0xff]
          %v632 = vld [vmem:[%s427 + $0x168] sm:$0xff]
          %v633 = vld [vmem:[%s427 + $0x170] sm:$0xff]
          %v634 = vld [vmem:[%s427 + $0x178] sm:$0xff]
          %v635 = vld [vmem:[%s427 + $0x180] sm:$0xff]
          %v636 = vld [vmem:[%s427 + $0x188] sm:$0xff]
          %v637 = vld [vmem:[%s427 + $0x190] sm:$0xff]
          %v638 = vld [vmem:[%s427 + $0x198] sm:$0xff]
          %v639 = vld [vmem:[%s427 + $0x1a0] sm:$0xff]
          %v640 = vld [vmem:[%s427 + $0x1a8] sm:$0xff]
          %v641 = vld [vmem:[%s427 + $0x1b0] sm:$0xff]
          %v642 = vld [vmem:[%s427 + $0x1b8] sm:$0xff]
          %v643 = vld [vmem:[%s427 + $0x1c0] sm:$0xff]
          %v644 = vld [vmem:[%s427 + $0x1c8] sm:$0xff]
          %v645 = vld [vmem:[%s427 + $0x1d0] sm:$0xff]
          %v646 = vld [vmem:[%s427 + $0x1d8] sm:$0xff]
          %v647 = vld [vmem:[%s427 + $0x1e0] sm:$0xff]
          %v648 = vld [vmem:[%s427 + $0x1e8] sm:$0xff]
          %v649 = vld [vmem:[%s427 + $0x1f0] sm:$0xff]
          %v650 = vld [vmem:[%s427 + $0x1f8] sm:$0xff]
          %v652 = vsel %vm550, %v578, 0
          %654 = vmatprep.subr.mxu0 %v620
          %655 = vmatpush1.msra.mxu0 %v619
          %656 = vmatprep.subr.mxu0 %v624
          %657 = vmatpush1.msra.mxu0 %v623
          %658 = vmatprep.subr.mxu0 %v628
          %659 = vmatpush1.msra.mxu0 %v627
          %660 = vmatprep.subr.mxu0 %v632
          %661 = vmatpush1.msra.mxu0 %v631
          %662 = vmatprep.subr.mxu0 %v636
          %663 = vmatpush1.msra.mxu0 %v635
          %664 = vmatprep.subr.mxu0 %v640
          %665 = vmatpush1.msra.mxu0 %v639
          %666 = vmatprep.subr.mxu0 %v644
          %667 = vmatpush1.msra.mxu0 %v643
          %668 = vmatprep.subr.mxu0 %v648
          %669 = vmatpush1.msra.mxu0 %v647
          %670 = vmatprep.subr.mxu0 0.0
          %671 = vmatpush1.msra.mxu0 0.0
          %672 = vmatprep.subr.mxu0 0.0
          %673 = vmatpush1.msra.mxu0 0.0
          %674 = vmatprep.subr.mxu0 0.0
          %675 = vmatpush1.msra.mxu0 0.0
          %676 = vmatprep.subr.mxu0 0.0
          %677 = vmatpush1.msra.mxu0 0.0
          %678 = vmatprep.subr.mxu0 0.0
          %679 = vmatpush1.msra.mxu0 0.0
          %680 = vmatprep.subr.mxu0 0.0
          %681 = vmatpush1.msra.mxu0 0.0
          %682 = vmatprep.subr.mxu0 0.0
          %683 = vmatpush1.msra.mxu0 0.0
          %684 = vmatprep.subr.mxu0 0.0
          %685 = vmatpush1.msra.mxu0 0.0
          %686 = vmatprep.subr.mxu0 0.0
          %687 = vmatpush1.msra.mxu0 0.0
          %688 = vmatprep.subr.mxu0 0.0
          %689 = vmatpush1.msra.mxu0 0.0
          %690 = vmatprep.subr.mxu0 0.0
          %691 = vmatpush1.msra.mxu0 0.0
          %692 = vmatprep.subr.mxu0 0.0
          %693 = vmatpush1.msra.mxu0 0.0
          %694 = vmatprep.subr.mxu0 0.0
          %695 = vmatpush1.msra.mxu0 0.0
          %696 = vmatprep.subr.mxu0 0.0
          %697 = vmatpush1.msra.mxu0 0.0
          %698 = vmatprep.subr.mxu0 0.0
          %699 = vmatpush1.msra.mxu0 0.0
          %700 = vmatprep.subr.mxu0 0.0
          %701 = vmatpush1.msra.mxu0 0.0
          %702 = vmatprep.subr.mxu0 0.0
          %703 = vmatpush1.msra.mxu0 0.0
          %704 = vmatprep.subr.mxu0 0.0
          %705 = vmatpush1.msra.mxu0 0.0
          %706 = vmatprep.subr.mxu0 0.0
          %707 = vmatpush1.msra.mxu0 0.0
          %708 = vmatprep.subr.mxu0 0.0
          %709 = vmatpush1.msra.mxu0 0.0
          %710 = vmatprep.subr.mxu0 0.0
          %711 = vmatpush1.msra.mxu0 0.0
          %712 = vmatprep.subr.mxu0 0.0
          %713 = vmatpush1.msra.mxu0 0.0
          %714 = vmatprep.subr.mxu0 0.0
          %715 = vmatpush1.msra.mxu0 0.0
          %716 = vmatprep.subr.mxu0 0.0
          %717 = vmatpush1.msra.mxu0 0.0
          %718 = vmatprep.mubr.f32.mxu0 0.0
          %719 = vmatmul.mubr.f32.gmra.mrb[0].mxu0 %v652
          %v720 = vpop.f32.mrb[0].mxu0
          %v721 = vadd.f32 0.0, %v720
          %v722 = vpop.f32.mrb[0].mxu0
          %v723 = vadd.f32 0.0, %v722
          %724 = vdwg.mxu0
          %725 = vmatprep.subr.mxu0 %v622
          %726 = vmatpush1.msra.mxu0 %v621
          %727 = vmatprep.subr.mxu0 %v626
          %728 = vmatpush1.msra.mxu0 %v625
          %729 = vmatprep.subr.mxu0 %v630
          %730 = vmatpush1.msra.mxu0 %v629
          %731 = vmatprep.subr.mxu0 %v634
          %732 = vmatpush1.msra.mxu0 %v633
          %733 = vmatprep.subr.mxu0 %v638
          %734 = vmatpush1.msra.mxu0 %v637
          %735 = vmatprep.subr.mxu0 %v642
          %736 = vmatpush1.msra.mxu0 %v641
          %737 = vmatprep.subr.mxu0 %v646
          %738 = vmatpush1.msra.mxu0 %v645
          %739 = vmatprep.subr.mxu0 %v650
          %740 = vmatpush1.msra.mxu0 %v649
          %741 = vmatprep.subr.mxu0 0.0
          %742 = vmatpush1.msra.mxu0 0.0
          %743 = vmatprep.subr.mxu0 0.0
          %744 = vmatpush1.msra.mxu0 0.0
          %745 = vmatprep.subr.mxu0 0.0
          %746 = vmatpush1.msra.mxu0 0.0
          %747 = vmatprep.subr.mxu0 0.0
          %748 = vmatpush1.msra.mxu0 0.0
          %749 = vmatprep.subr.mxu0 0.0
          %750 = vmatpush1.msra.mxu0 0.0
          %751 = vmatprep.subr.mxu0 0.0
          %752 = vmatpush1.msra.mxu0 0.0
          %753 = vmatprep.subr.mxu0 0.0
          %754 = vmatpush1.msra.mxu0 0.0
          %755 = vmatprep.subr.mxu0 0.0
          %756 = vmatpush1.msra.mxu0 0.0
          %757 = vmatprep.subr.mxu0 0.0
          %758 = vmatpush1.msra.mxu0 0.0
          %759 = vmatprep.subr.mxu0 0.0
          %760 = vmatpush1.msra.mxu0 0.0
          %761 = vmatprep.subr.mxu0 0.0
          %762 = vmatpush1.msra.mxu0 0.0
          %763 = vmatprep.subr.mxu0 0.0
          %764 = vmatpush1.msra.mxu0 0.0
          %765 = vmatprep.subr.mxu0 0.0
          %766 = vmatpush1.msra.mxu0 0.0
          %767 = vmatprep.subr.mxu0 0.0
          %768 = vmatpush1.msra.mxu0 0.0
          %769 = vmatprep.subr.mxu0 0.0
          %770 = vmatpush1.msra.mxu0 0.0
          %771 = vmatprep.subr.mxu0 0.0
          %772 = vmatpush1.msra.mxu0 0.0
          %773 = vmatprep.subr.mxu0 0.0
          %774 = vmatpush1.msra.mxu0 0.0
          %775 = vmatprep.subr.mxu0 0.0
          %776 = vmatpush1.msra.mxu0 0.0
          %777 = vmatprep.subr.mxu0 0.0
          %778 = vmatpush1.msra.mxu0 0.0
          %779 = vmatprep.subr.mxu0 0.0
          %780 = vmatpush1.msra.mxu0 0.0
          %781 = vmatprep.subr.mxu0 0.0
          %782 = vmatpush1.msra.mxu0 0.0
          %783 = vmatprep.subr.mxu0 0.0
          %784 = vmatpush1.msra.mxu0 0.0
          %785 = vmatprep.subr.mxu0 0.0
          %786 = vmatpush1.msra.mxu0 0.0
          %787 = vmatprep.subr.mxu0 0.0
          %788 = vmatpush1.msra.mxu0 0.0
          %789 = vmatprep.mubr.f32.mxu0 0.0
          %790 = vmatmul.mubr.f32.gmra.mrb[0].mxu0 %v652
          %v791 = vpop.f32.mrb[0].mxu0
          %v792 = vadd.f32 0.0, %v791
          %v793 = vpop.f32.mrb[0].mxu0
          %v794 = vadd.f32 0.0, %v793
          %795 = vdwg.mxu0
          %v797 = vsel %vm550, %v575, 0
          %799 = vmatprep.subr.mxu0 %v588
          %800 = vmatpush1.msra.mxu0 %v587
          %801 = vmatprep.subr.mxu0 %v592
          %802 = vmatpush1.msra.mxu0 %v591
          %803 = vmatprep.subr.mxu0 %v596
          %804 = vmatpush1.msra.mxu0 %v595
          %805 = vmatprep.subr.mxu0 %v600
          %806 = vmatpush1.msra.mxu0 %v599
          %807 = vmatprep.subr.mxu0 %v604
          %808 = vmatpush1.msra.mxu0 %v603
          %809 = vmatprep.subr.mxu0 %v608
          %810 = vmatpush1.msra.mxu0 %v607
          %811 = vmatprep.subr.mxu0 %v612
          %812 = vmatpush1.msra.mxu0 %v611
          %813 = vmatprep.subr.mxu0 %v616
          %814 = vmatpush1.msra.mxu0 %v615
          %815 = vmatprep.subr.mxu0 0.0
          %816 = vmatpush1.msra.mxu0 0.0
          %817 = vmatprep.subr.mxu0 0.0
          %818 = vmatpush1.msra.mxu0 0.0
          %819 = vmatprep.subr.mxu0 0.0
          %820 = vmatpush1.msra.mxu0 0.0
          %821 = vmatprep.subr.mxu0 0.0
          %822 = vmatpush1.msra.mxu0 0.0
          %823 = vmatprep.subr.mxu0 0.0
          %824 = vmatpush1.msra.mxu0 0.0
          %825 = vmatprep.subr.mxu0 0.0
          %826 = vmatpush1.msra.mxu0 0.0
          %827 = vmatprep.subr.mxu0 0.0
          %828 = vmatpush1.msra.mxu0 0.0
          %829 = vmatprep.subr.mxu0 0.0
          %830 = vmatpush1.msra.mxu0 0.0
          %831 = vmatprep.subr.mxu0 0.0
          %832 = vmatpush1.msra.mxu0 0.0
          %833 = vmatprep.subr.mxu0 0.0
          %834 = vmatpush1.msra.mxu0 0.0
          %835 = vmatprep.subr.mxu0 0.0
          %836 = vmatpush1.msra.mxu0 0.0
          %837 = vmatprep.subr.mxu0 0.0
          %838 = vmatpush1.msra.mxu0 0.0
          %839 = vmatprep.subr.mxu0 0.0
          %840 = vmatpush1.msra.mxu0 0.0
          %841 = vmatprep.subr.mxu0 0.0
          %842 = vmatpush1.msra.mxu0 0.0
          %843 = vmatprep.subr.mxu0 0.0
          %844 = vmatpush1.msra.mxu0 0.0
          %845 = vmatprep.subr.mxu0 0.0
          %846 = vmatpush1.msra.mxu0 0.0
          %847 = vmatprep.subr.mxu0 0.0
          %848 = vmatpush1.msra.mxu0 0.0
          %849 = vmatprep.subr.mxu0 0.0
          %850 = vmatpush1.msra.mxu0 0.0
          %851 = vmatprep.subr.mxu0 0.0
          %852 = vmatpush1.msra.mxu0 0.0
          %853 = vmatprep.subr.mxu0 0.0
          %854 = vmatpush1.msra.mxu0 0.0
          %855 = vmatprep.subr.mxu0 0.0
          %856 = vmatpush1.msra.mxu0 0.0
          %857 = vmatprep.subr.mxu0 0.0
          %858 = vmatpush1.msra.mxu0 0.0
          %859 = vmatprep.subr.mxu0 0.0
          %860 = vmatpush1.msra.mxu0 0.0
          %861 = vmatprep.subr.mxu0 0.0
          %862 = vmatpush1.msra.mxu0 0.0
          %863 = vmatprep.mubr.f32.mxu0 0.0
          %864 = vmatmul.mubr.f32.gmra.mrb[0].mxu0 %v797
          %v865 = vpop.f32.mrb[0].mxu0
          %v866 = vadd.f32 %v721, %v865
          %v867 = vpop.f32.mrb[0].mxu0
          %v868 = vadd.f32 %v723, %v867
          %869 = vdwg.mxu0
          %870 = vmatprep.subr.mxu0 %v590
          %871 = vmatpush1.msra.mxu0 %v589
          %872 = vmatprep.subr.mxu0 %v594
          %873 = vmatpush1.msra.mxu0 %v593
          %874 = vmatprep.subr.mxu0 %v598
          %875 = vmatpush1.msra.mxu0 %v597
          %876 = vmatprep.subr.mxu0 %v602
          %877 = vmatpush1.msra.mxu0 %v601
          %878 = vmatprep.subr.mxu0 %v606
          %879 = vmatpush1.msra.mxu0 %v605
          %880 = vmatprep.subr.mxu0 %v610
          %881 = vmatpush1.msra.mxu0 %v609
          %882 = vmatprep.subr.mxu0 %v614
          %883 = vmatpush1.msra.mxu0 %v613
          %884 = vmatprep.subr.mxu0 %v618
          %885 = vmatpush1.msra.mxu0 %v617
          %886 = vmatprep.subr.mxu0 0.0
          %887 = vmatpush1.msra.mxu0 0.0
          %888 = vmatprep.subr.mxu0 0.0
          %889 = vmatpush1.msra.mxu0 0.0
          %890 = vmatprep.subr.mxu0 0.0
          %891 = vmatpush1.msra.mxu0 0.0
          %892 = vmatprep.subr.mxu0 0.0
          %893 = vmatpush1.msra.mxu0 0.0
          %894 = vmatprep.subr.mxu0 0.0
          %895 = vmatpush1.msra.mxu0 0.0
          %896 = vmatprep.subr.mxu0 0.0
          %897 = vmatpush1.msra.mxu0 0.0
          %898 = vmatprep.subr.mxu0 0.0
          %899 = vmatpush1.msra.mxu0 0.0
          %900 = vmatprep.subr.mxu0 0.0
          %901 = vmatpush1.msra.mxu0 0.0
          %902 = vmatprep.subr.mxu0 0.0
          %903 = vmatpush1.msra.mxu0 0.0
          %904 = vmatprep.subr.mxu0 0.0
          %905 = vmatpush1.msra.mxu0 0.0
          %906 = vmatprep.subr.mxu0 0.0
          %907 = vmatpush1.msra.mxu0 0.0
          %908 = vmatprep.subr.mxu0 0.0
          %909 = vmatpush1.msra.mxu0 0.0
          %910 = vmatprep.subr.mxu0 0.0
          %911 = vmatpush1.msra.mxu0 0.0
          %912 = vmatprep.subr.mxu0 0.0
          %913 = vmatpush1.msra.mxu0 0.0
          %914 = vmatprep.subr.mxu0 0.0
          %915 = vmatpush1.msra.mxu0 0.0
          %916 = vmatprep.subr.mxu0 0.0
          %917 = vmatpush1.msra.mxu0 0.0
          %918 = vmatprep.subr.mxu0 0.0
          %919 = vmatpush1.msra.mxu0 0.0
          %920 = vmatprep.subr.mxu0 0.0
          %921 = vmatpush1.msra.mxu0 0.0
          %922 = vmatprep.subr.mxu0 0.0
          %923 = vmatpush1.msra.mxu0 0.0
          %924 = vmatprep.subr.mxu0 0.0
          %925 = vmatpush1.msra.mxu0 0.0
          %926 = vmatprep.subr.mxu0 0.0
          %927 = vmatpush1.msra.mxu0 0.0
          %928 = vmatprep.subr.mxu0 0.0
          %929 = vmatpush1.msra.mxu0 0.0
          %930 = vmatprep.subr.mxu0 0.0
          %931 = vmatpush1.msra.mxu0 0.0
          %932 = vmatprep.subr.mxu0 0.0
          %933 = vmatpush1.msra.mxu0 0.0
          %934 = vmatprep.mubr.f32.mxu0 0.0
          %935 = vmatmul.mubr.f32.gmra.mrb[0].mxu0 %v797
          %v936 = vpop.f32.mrb[0].mxu0
          %v937 = vadd.f32 %v792, %v936
          %v938 = vpop.f32.mrb[0].mxu0
          %v939 = vadd.f32 %v794, %v938
          %940 = vdwg.mxu0
          %v941 = vld [vmem:[%s427 + $0x200] sm:$0xff]
          %v942 = vld [vmem:[%s427 + $0x208] sm:$0xff]
          %v943 = vld [vmem:[%s427 + $0x210] sm:$0xff]
          %v944 = vld [vmem:[%s427 + $0x218] sm:$0xff]
          %v945 = vld [vmem:[%s427 + $0x220] sm:$0xff]
          %v946 = vld [vmem:[%s427 + $0x228] sm:$0xff]
          %v947 = vld [vmem:[%s427 + $0x230] sm:$0xff]
          %v948 = vld [vmem:[%s427 + $0x238] sm:$0xff]
          %v949 = vld [vmem:[%s427 + $0x240] sm:$0xff]
          %v950 = vld [vmem:[%s427 + $0x248] sm:$0xff]
          %v951 = vld [vmem:[%s427 + $0x250] sm:$0xff]
          %v952 = vld [vmem:[%s427 + $0x258] sm:$0xff]
          %v953 = vld [vmem:[%s427 + $0x260] sm:$0xff]
          %v954 = vld [vmem:[%s427 + $0x268] sm:$0xff]
          %v955 = vld [vmem:[%s427 + $0x270] sm:$0xff]
          %v956 = vld [vmem:[%s427 + $0x278] sm:$0xff]
          %v957 = vld [vmem:[%s427 + $0x280] sm:$0xff]
          %v958 = vld [vmem:[%s427 + $0x288] sm:$0xff]
          %v959 = vld [vmem:[%s427 + $0x290] sm:$0xff]
          %v960 = vld [vmem:[%s427 + $0x298] sm:$0xff]
          %v961 = vld [vmem:[%s427 + $0x2a0] sm:$0xff]
          %v962 = vld [vmem:[%s427 + $0x2a8] sm:$0xff]
          %v963 = vld [vmem:[%s427 + $0x2b0] sm:$0xff]
          %v964 = vld [vmem:[%s427 + $0x2b8] sm:$0xff]
          %v965 = vld [vmem:[%s427 + $0x2c0] sm:$0xff]
          %v966 = vld [vmem:[%s427 + $0x2c8] sm:$0xff]
          %v967 = vld [vmem:[%s427 + $0x2d0] sm:$0xff]
          %v968 = vld [vmem:[%s427 + $0x2d8] sm:$0xff]
          %v969 = vld [vmem:[%s427 + $0x2e0] sm:$0xff]
          %v970 = vld [vmem:[%s427 + $0x2e8] sm:$0xff]
          %v971 = vld [vmem:[%s427 + $0x2f0] sm:$0xff]
          %v972 = vld [vmem:[%s427 + $0x2f8] sm:$0xff]
          %v973 = vld [vmem:[%s427 + $0x300] sm:$0xff]
          %v974 = vld [vmem:[%s427 + $0x308] sm:$0xff]
          %v975 = vld [vmem:[%s427 + $0x310] sm:$0xff]
          %v976 = vld [vmem:[%s427 + $0x318] sm:$0xff]
          %v977 = vld [vmem:[%s427 + $0x320] sm:$0xff]
          %v978 = vld [vmem:[%s427 + $0x328] sm:$0xff]
          %v979 = vld [vmem:[%s427 + $0x330] sm:$0xff]
          %v980 = vld [vmem:[%s427 + $0x338] sm:$0xff]
          %v981 = vld [vmem:[%s427 + $0x340] sm:$0xff]
          %v982 = vld [vmem:[%s427 + $0x348] sm:$0xff]
          %v983 = vld [vmem:[%s427 + $0x350] sm:$0xff]
          %v984 = vld [vmem:[%s427 + $0x358] sm:$0xff]
          %v985 = vld [vmem:[%s427 + $0x360] sm:$0xff]
          %v986 = vld [vmem:[%s427 + $0x368] sm:$0xff]
          %v987 = vld [vmem:[%s427 + $0x370] sm:$0xff]
          %v988 = vld [vmem:[%s427 + $0x378] sm:$0xff]
          %v989 = vld [vmem:[%s427 + $0x380] sm:$0xff]
          %v990 = vld [vmem:[%s427 + $0x388] sm:$0xff]
          %v991 = vld [vmem:[%s427 + $0x390] sm:$0xff]
          %v992 = vld [vmem:[%s427 + $0x398] sm:$0xff]
          %v993 = vld [vmem:[%s427 + $0x3a0] sm:$0xff]
          %v994 = vld [vmem:[%s427 + $0x3a8] sm:$0xff]
          %v995 = vld [vmem:[%s427 + $0x3b0] sm:$0xff]
          %v996 = vld [vmem:[%s427 + $0x3b8] sm:$0xff]
          %v997 = vld [vmem:[%s427 + $0x3c0] sm:$0xff]
          %v998 = vld [vmem:[%s427 + $0x3c8] sm:$0xff]
          %v999 = vld [vmem:[%s427 + $0x3d0] sm:$0xff]
          %v1000 = vld [vmem:[%s427 + $0x3d8] sm:$0xff]
          %v1001 = vld [vmem:[%s427 + $0x3e0] sm:$0xff]
          %v1002 = vld [vmem:[%s427 + $0x3e8] sm:$0xff]
          %v1003 = vld [vmem:[%s427 + $0x3f0] sm:$0xff]
          %v1004 = vld [vmem:[%s427 + $0x3f8] sm:$0xff]
          %1005 = vmatprep.subr.mxu0 %v942
          %1006 = vmatpush1.msra.mxu0 %v941
          %1007 = vmatprep.subr.mxu0 %v946
          %1008 = vmatpush1.msra.mxu0 %v945
          %1009 = vmatprep.subr.mxu0 %v950
          %1010 = vmatpush1.msra.mxu0 %v949
          %1011 = vmatprep.subr.mxu0 %v954
          %1012 = vmatpush1.msra.mxu0 %v953
          %1013 = vmatprep.subr.mxu0 %v958
          %1014 = vmatpush1.msra.mxu0 %v957
          %1015 = vmatprep.subr.mxu0 %v962
          %1016 = vmatpush1.msra.mxu0 %v961
          %1017 = vmatprep.subr.mxu0 %v966
          %1018 = vmatpush1.msra.mxu0 %v965
          %1019 = vmatprep.subr.mxu0 %v970
          %1020 = vmatpush1.msra.mxu0 %v969
          %1021 = vmatprep.subr.mxu0 %v974
          %1022 = vmatpush1.msra.mxu0 %v973
          %1023 = vmatprep.subr.mxu0 %v978
          %1024 = vmatpush1.msra.mxu0 %v977
          %1025 = vmatprep.subr.mxu0 %v982
          %1026 = vmatpush1.msra.mxu0 %v981
          %1027 = vmatprep.subr.mxu0 %v986
          %1028 = vmatpush1.msra.mxu0 %v985
          %1029 = vmatprep.subr.mxu0 %v990
          %1030 = vmatpush1.msra.mxu0 %v989
          %1031 = vmatprep.subr.mxu0 %v994
          %1032 = vmatpush1.msra.mxu0 %v993
          %1033 = vmatprep.subr.mxu0 %v998
          %1034 = vmatpush1.msra.mxu0 %v997
          %1035 = vmatprep.subr.mxu0 %v1002
          %1036 = vmatpush1.msra.mxu0 %v1001
          %1037 = vmatprep.subr.mxu0 0.0
          %1038 = vmatpush1.msra.mxu0 0.0
          %1039 = vmatprep.subr.mxu0 0.0
          %1040 = vmatpush1.msra.mxu0 0.0
          %1041 = vmatprep.subr.mxu0 0.0
          %1042 = vmatpush1.msra.mxu0 0.0
          %1043 = vmatprep.subr.mxu0 0.0
          %1044 = vmatpush1.msra.mxu0 0.0
          %1045 = vmatprep.subr.mxu0 0.0
          %1046 = vmatpush1.msra.mxu0 0.0
          %1047 = vmatprep.subr.mxu0 0.0
          %1048 = vmatpush1.msra.mxu0 0.0
          %1049 = vmatprep.subr.mxu0 0.0
          %1050 = vmatpush1.msra.mxu0 0.0
          %1051 = vmatprep.subr.mxu0 0.0
          %1052 = vmatpush1.msra.mxu0 0.0
          %1053 = vmatprep.subr.mxu0 0.0
          %1054 = vmatpush1.msra.mxu0 0.0
          %1055 = vmatprep.subr.mxu0 0.0
          %1056 = vmatpush1.msra.mxu0 0.0
          %1057 = vmatprep.subr.mxu0 0.0
          %1058 = vmatpush1.msra.mxu0 0.0
          %1059 = vmatprep.subr.mxu0 0.0
          %1060 = vmatpush1.msra.mxu0 0.0
          %1061 = vmatprep.subr.mxu0 0.0
          %1062 = vmatpush1.msra.mxu0 0.0
          %1063 = vmatprep.subr.mxu0 0.0
          %1064 = vmatpush1.msra.mxu0 0.0
          %1065 = vmatprep.subr.mxu0 0.0
          %1066 = vmatpush1.msra.mxu0 0.0
          %1067 = vmatprep.subr.mxu0 0.0
          %1068 = vmatpush1.msra.mxu0 0.0
          %1069 = vmatprep.mubr.f32.mxu0 0.0
          %1070 = vmatmul.mubr.f32.gmra.mrb[0].mxu0 %v576
          %v1071 = vpop.f32.mrb[0].mxu0
          %v1072 = vadd.f32 0.0, %v1071
          %v1073 = vpop.f32.mrb[0].mxu0
          %v1074 = vadd.f32 0.0, %v1073
          %1075 = vdwg.mxu0
          %1076 = vmatprep.subr.mxu0 %v944
          %1077 = vmatpush1.msra.mxu0 %v943
          %1078 = vmatprep.subr.mxu0 %v948
          %1079 = vmatpush1.msra.mxu0 %v947
          %1080 = vmatprep.subr.mxu0 %v952
          %1081 = vmatpush1.msra.mxu0 %v951
          %1082 = vmatprep.subr.mxu0 %v956
          %1083 = vmatpush1.msra.mxu0 %v955
          %1084 = vmatprep.subr.mxu0 %v960
          %1085 = vmatpush1.msra.mxu0 %v959
          %1086 = vmatprep.subr.mxu0 %v964
          %1087 = vmatpush1.msra.mxu0 %v963
          %1088 = vmatprep.subr.mxu0 %v968
          %1089 = vmatpush1.msra.mxu0 %v967
          %1090 = vmatprep.subr.mxu0 %v972
          %1091 = vmatpush1.msra.mxu0 %v971
          %1092 = vmatprep.subr.mxu0 %v976
          %1093 = vmatpush1.msra.mxu0 %v975
          %1094 = vmatprep.subr.mxu0 %v980
          %1095 = vmatpush1.msra.mxu0 %v979
          %1096 = vmatprep.subr.mxu0 %v984
          %1097 = vmatpush1.msra.mxu0 %v983
          %1098 = vmatprep.subr.mxu0 %v988
          %1099 = vmatpush1.msra.mxu0 %v987
          %1100 = vmatprep.subr.mxu0 %v992
          %1101 = vmatpush1.msra.mxu0 %v991
          %1102 = vmatprep.subr.mxu0 %v996
          %1103 = vmatpush1.msra.mxu0 %v995
          %1104 = vmatprep.subr.mxu0 %v1000
          %1105 = vmatpush1.msra.mxu0 %v999
          %1106 = vmatprep.subr.mxu0 %v1004
          %1107 = vmatpush1.msra.mxu0 %v1003
          %1108 = vmatprep.subr.mxu0 0.0
          %1109 = vmatpush1.msra.mxu0 0.0
          %1110 = vmatprep.subr.mxu0 0.0
          %1111 = vmatpush1.msra.mxu0 0.0
          %1112 = vmatprep.subr.mxu0 0.0
          %1113 = vmatpush1.msra.mxu0 0.0
          %1114 = vmatprep.subr.mxu0 0.0
          %1115 = vmatpush1.msra.mxu0 0.0
          %1116 = vmatprep.subr.mxu0 0.0
          %1117 = vmatpush1.msra.mxu0 0.0
          %1118 = vmatprep.subr.mxu0 0.0
          %1119 = vmatpush1.msra.mxu0 0.0
          %1120 = vmatprep.subr.mxu0 0.0
          %1121 = vmatpush1.msra.mxu0 0.0
          %1122 = vmatprep.subr.mxu0 0.0
          %1123 = vmatpush1.msra.mxu0 0.0
          %1124 = vmatprep.subr.mxu0 0.0
          %1125 = vmatpush1.msra.mxu0 0.0
          %1126 = vmatprep.subr.mxu0 0.0
          %1127 = vmatpush1.msra.mxu0 0.0
          %1128 = vmatprep.subr.mxu0 0.0
          %1129 = vmatpush1.msra.mxu0 0.0
          %1130 = vmatprep.subr.mxu0 0.0
          %1131 = vmatpush1.msra.mxu0 0.0
          %1132 = vmatprep.subr.mxu0 0.0
          %1133 = vmatpush1.msra.mxu0 0.0
          %1134 = vmatprep.subr.mxu0 0.0
          %1135 = vmatpush1.msra.mxu0 0.0
          %1136 = vmatprep.subr.mxu0 0.0
          %1137 = vmatpush1.msra.mxu0 0.0
          %1138 = vmatprep.subr.mxu0 0.0
          %1139 = vmatpush1.msra.mxu0 0.0
          %1140 = vmatprep.mubr.f32.mxu0 0.0
          %1141 = vmatmul.mubr.f32.gmra.mrb[0].mxu0 %v576
          %v1142 = vpop.f32.mrb[0].mxu0
          %v1143 = vadd.f32 0.0, %v1142
          %v1144 = vpop.f32.mrb[0].mxu0
          %v1145 = vadd.f32 0.0, %v1144
          %1146 = vdwg.mxu0
          %v1147 = vadd.f32 %v866, %v1072
          %v1148 = vadd.f32 %v868, %v1074
          %v1149 = vadd.f32 %v937, %v1143
          %v1150 = vadd.f32 %v939, %v1145
          %v1151 = vld [vmem:[%s436] sm:$0xf]
          %v1153 = vlaneseq
          %v1154 = vshrl.u32 %v1153, 7
          %v1155 = vsub.s32 0, %v1154
          %v1156 = vrot.slane %v1151, %v1155
          %v1157 = vlaneseq
          %v1158 = vshrl.u32 %v1157, 7
          %v1159 = vsub.s32 1, %v1158
          %v1160 = vrot.slane %v1151, %v1159
          %v1161 = vlaneseq
          %v1162 = vshrl.u32 %v1161, 7
          %v1163 = vsub.s32 2, %v1162
          %v1164 = vrot.slane %v1151, %v1163
          %v1165 = vlaneseq
          %v1166 = vshrl.u32 %v1165, 7
          %v1167 = vsub.s32 3, %v1166
          %v1168 = vrot.slane %v1151, %v1167
          %v1173 = vadd.f32 %v1147, %v1156
          %v1174 = vadd.f32 %v1148, %v1160
          %v1175 = vadd.f32 %v1149, %v1164
          %v1176 = vadd.f32 %v1150, %v1168
          %v1177 = vxor.u32 %v1173, 2147483648
          %v1178 = vmul.f32 %v1177, 1.442695
          %v1179 = vpow.pop %v1178
          %v1180 = vadd.f32 %v1179, 1.0
          %v1181 = vrcp.pop %v1180
          %v1182 = vmul.f32 1.0, %v1181
          %v1183 = vxor.u32 %v1174, 2147483648
          %v1184 = vmul.f32 %v1183, 1.442695
          %v1185 = vpow.pop %v1184
          %v1186 = vadd.f32 %v1185, 1.0
          %v1187 = vrcp.pop %v1186
          %v1188 = vmul.f32 1.0, %v1187
          %v1189 = vtanh.pop %v1175
          %v1190 = vxor.u32 %v1176, 2147483648
          %v1191 = vmul.f32 %v1190, 1.442695
          %v1192 = vpow.pop %v1191
          %v1193 = vadd.f32 %v1192, 1.0
          %v1194 = vrcp.pop %v1193
          %v1195 = vmul.f32 1.0, %v1194
          %v1196 = vmul.f32 %v1188, %v577
          %v1197 = vmul.f32 %v1182, %v1189
          %v1198 = vadd.f32 %v1196, %v1197
          %v1199 = vtanh.pop %v1198
          %v1200 = vmul.f32 %v1195, %v1199
          %v1201 = vmax.f32 %v1200, -20.0
          %v1202 = vmin.f32 %v1201, 20.0
          %v1203 = vld [vmem:[%s445] sm:$0xff]
          %v1204 = vld [vmem:[%s445 + $0x8] sm:$0xff]
          %v1205 = vld [vmem:[%s445 + $0x10] sm:$0xff]
          %v1206 = vld [vmem:[%s445 + $0x18] sm:$0xff]
          %v1207 = vld [vmem:[%s445 + $0x20] sm:$0xff]
          %v1208 = vld [vmem:[%s445 + $0x28] sm:$0xff]
          %v1209 = vld [vmem:[%s445 + $0x30] sm:$0xff]
          %v1210 = vld [vmem:[%s445 + $0x38] sm:$0xff]
          %v1211 = vld [vmem:[%s445 + $0x40] sm:$0xff]
          %v1212 = vld [vmem:[%s445 + $0x48] sm:$0xff]
          %v1213 = vld [vmem:[%s445 + $0x50] sm:$0xff]
          %v1214 = vld [vmem:[%s445 + $0x58] sm:$0xff]
          %v1215 = vld [vmem:[%s445 + $0x60] sm:$0xff]
          %v1216 = vld [vmem:[%s445 + $0x68] sm:$0xff]
          %v1217 = vld [vmem:[%s445 + $0x70] sm:$0xff]
          %v1218 = vld [vmem:[%s445 + $0x78] sm:$0xff]
          %v1219 = vld [vmem:[%s445 + $0x80] sm:$0xff]
          %v1220 = vld [vmem:[%s445 + $0x88] sm:$0xff]
          %v1221 = vld [vmem:[%s445 + $0x90] sm:$0xff]
          %v1222 = vld [vmem:[%s445 + $0x98] sm:$0xff]
          %v1223 = vld [vmem:[%s445 + $0xa0] sm:$0xff]
          %v1224 = vld [vmem:[%s445 + $0xa8] sm:$0xff]
          %v1225 = vld [vmem:[%s445 + $0xb0] sm:$0xff]
          %v1226 = vld [vmem:[%s445 + $0xb8] sm:$0xff]
          %v1227 = vld [vmem:[%s445 + $0xc0] sm:$0xff]
          %v1228 = vld [vmem:[%s445 + $0xc8] sm:$0xff]
          %v1229 = vld [vmem:[%s445 + $0xd0] sm:$0xff]
          %v1230 = vld [vmem:[%s445 + $0xd8] sm:$0xff]
          %v1231 = vld [vmem:[%s445 + $0xe0] sm:$0xff]
          %v1232 = vld [vmem:[%s445 + $0xe8] sm:$0xff]
          %v1233 = vld [vmem:[%s445 + $0xf0] sm:$0xff]
          %v1234 = vld [vmem:[%s445 + $0xf8] sm:$0xff]
          %v1235 = vld [vmem:[%s445 + $0x100] sm:$0xff]
          %v1236 = vld [vmem:[%s445 + $0x108] sm:$0xff]
          %v1237 = vld [vmem:[%s445 + $0x110] sm:$0xff]
          %v1238 = vld [vmem:[%s445 + $0x118] sm:$0xff]
          %v1239 = vld [vmem:[%s445 + $0x120] sm:$0xff]
          %v1240 = vld [vmem:[%s445 + $0x128] sm:$0xff]
          %v1241 = vld [vmem:[%s445 + $0x130] sm:$0xff]
          %v1242 = vld [vmem:[%s445 + $0x138] sm:$0xff]
          %v1243 = vld [vmem:[%s445 + $0x140] sm:$0xff]
          %v1244 = vld [vmem:[%s445 + $0x148] sm:$0xff]
          %v1245 = vld [vmem:[%s445 + $0x150] sm:$0xff]
          %v1246 = vld [vmem:[%s445 + $0x158] sm:$0xff]
          %v1247 = vld [vmem:[%s445 + $0x160] sm:$0xff]
          %v1248 = vld [vmem:[%s445 + $0x168] sm:$0xff]
          %v1249 = vld [vmem:[%s445 + $0x170] sm:$0xff]
          %v1250 = vld [vmem:[%s445 + $0x178] sm:$0xff]
          %v1251 = vld [vmem:[%s454] sm:$0x7]
          %v1253 = vlaneseq
          %v1254 = vshrl.u32 %v1253, 7
          %v1255 = vsub.s32 0, %v1254
          %v1256 = vrot.slane %v1251, %v1255
          %v1257 = vlaneseq
          %v1258 = vshrl.u32 %v1257, 7
          %v1259 = vsub.s32 1, %v1258
          %v1260 = vrot.slane %v1251, %v1259
          %v1261 = vlaneseq
          %v1262 = vshrl.u32 %v1261, 7
          %v1263 = vsub.s32 2, %v1262
          %v1264 = vrot.slane %v1251, %v1263
          %1268 = vmatprep.subr.mxu0 %v1204
          %1269 = vmatpush1.msra.mxu0 %v1203
          %1270 = vmatprep.subr.mxu0 %v1207
          %1271 = vmatpush1.msra.mxu0 %v1206
          %1272 = vmatprep.subr.mxu0 %v1210
          %1273 = vmatpush1.msra.mxu0 %v1209
          %1274 = vmatprep.subr.mxu0 %v1213
          %1275 = vmatpush1.msra.mxu0 %v1212
          %1276 = vmatprep.subr.mxu0 %v1216
          %1277 = vmatpush1.msra.mxu0 %v1215
          %1278 = vmatprep.subr.mxu0 %v1219
          %1279 = vmatpush1.msra.mxu0 %v1218
          %1280 = vmatprep.subr.mxu0 %v1222
          %1281 = vmatpush1.msra.mxu0 %v1221
          %1282 = vmatprep.subr.mxu0 %v1225
          %1283 = vmatpush1.msra.mxu0 %v1224
          %1284 = vmatprep.subr.mxu0 %v1228
          %1285 = vmatpush1.msra.mxu0 %v1227
          %1286 = vmatprep.subr.mxu0 %v1231
          %1287 = vmatpush1.msra.mxu0 %v1230
          %1288 = vmatprep.subr.mxu0 %v1234
          %1289 = vmatpush1.msra.mxu0 %v1233
          %1290 = vmatprep.subr.mxu0 %v1237
          %1291 = vmatpush1.msra.mxu0 %v1236
          %1292 = vmatprep.subr.mxu0 %v1240
          %1293 = vmatpush1.msra.mxu0 %v1239
          %1294 = vmatprep.subr.mxu0 %v1243
          %1295 = vmatpush1.msra.mxu0 %v1242
          %1296 = vmatprep.subr.mxu0 %v1246
          %1297 = vmatpush1.msra.mxu0 %v1245
          %1298 = vmatprep.subr.mxu0 %v1249
          %1299 = vmatpush1.msra.mxu0 %v1248
          %1300 = vmatprep.subr.mxu0 0.0
          %1301 = vmatpush1.msra.mxu0 0.0
          %1302 = vmatprep.subr.mxu0 0.0
          %1303 = vmatpush1.msra.mxu0 0.0
          %1304 = vmatprep.subr.mxu0 0.0
          %1305 = vmatpush1.msra.mxu0 0.0
          %1306 = vmatprep.subr.mxu0 0.0
          %1307 = vmatpush1.msra.mxu0 0.0
          %1308 = vmatprep.subr.mxu0 0.0
          %1309 = vmatpush1.msra.mxu0 0.0
          %1310 = vmatprep.subr.mxu0 0.0
          %1311 = vmatpush1.msra.mxu0 0.0
          %1312 = vmatprep.subr.mxu0 0.0
          %1313 = vmatpush1.msra.mxu0 0.0
          %1314 = vmatprep.subr.mxu0 0.0
          %1315 = vmatpush1.msra.mxu0 0.0
          %1316 = vmatprep.subr.mxu0 0.0
          %1317 = vmatpush1.msra.mxu0 0.0
          %1318 = vmatprep.subr.mxu0 0.0
          %1319 = vmatpush1.msra.mxu0 0.0
          %1320 = vmatprep.subr.mxu0 0.0
          %1321 = vmatpush1.msra.mxu0 0.0
          %1322 = vmatprep.subr.mxu0 0.0
          %1323 = vmatpush1.msra.mxu0 0.0
          %1324 = vmatprep.subr.mxu0 0.0
          %1325 = vmatpush1.msra.mxu0 0.0
          %1326 = vmatprep.subr.mxu0 0.0
          %1327 = vmatpush1.msra.mxu0 0.0
          %1328 = vmatprep.subr.mxu0 0.0
          %1329 = vmatpush1.msra.mxu0 0.0
          %1330 = vmatprep.subr.mxu0 0.0
          %1331 = vmatpush1.msra.mxu0 0.0
          %1332 = vmatprep.mubr.f32.mxu0 0.0
          %1333 = vmatmul.mubr.f32.gmra.mrb[0].mxu0 %v1202
          %v1334 = vpop.f32.mrb[0].mxu0
          %v1335 = vadd.f32 %v1256, %v1334
          %v1336 = vpop.f32.mrb[0].mxu0
          %v1337 = vadd.f32 %v1260, %v1336
          %1338 = vdwg.mxu0
          %1339 = vmatprep.subr.mxu0 0.0
          %1340 = vmatpush1.msra.mxu0 %v1205
          %1341 = vmatprep.subr.mxu0 0.0
          %1342 = vmatpush1.msra.mxu0 %v1208
          %1343 = vmatprep.subr.mxu0 0.0
          %1344 = vmatpush1.msra.mxu0 %v1211
          %1345 = vmatprep.subr.mxu0 0.0
          %1346 = vmatpush1.msra.mxu0 %v1214
          %1347 = vmatprep.subr.mxu0 0.0
          %1348 = vmatpush1.msra.mxu0 %v1217
          %1349 = vmatprep.subr.mxu0 0.0
          %1350 = vmatpush1.msra.mxu0 %v1220
          %1351 = vmatprep.subr.mxu0 0.0
          %1352 = vmatpush1.msra.mxu0 %v1223
          %1353 = vmatprep.subr.mxu0 0.0
          %1354 = vmatpush1.msra.mxu0 %v1226
          %1355 = vmatprep.subr.mxu0 0.0
          %1356 = vmatpush1.msra.mxu0 %v1229
          %1357 = vmatprep.subr.mxu0 0.0
          %1358 = vmatpush1.msra.mxu0 %v1232
          %1359 = vmatprep.subr.mxu0 0.0
          %1360 = vmatpush1.msra.mxu0 %v1235
          %1361 = vmatprep.subr.mxu0 0.0
          %1362 = vmatpush1.msra.mxu0 %v1238
          %1363 = vmatprep.subr.mxu0 0.0
          %1364 = vmatpush1.msra.mxu0 %v1241
          %1365 = vmatprep.subr.mxu0 0.0
          %1366 = vmatpush1.msra.mxu0 %v1244
          %1367 = vmatprep.subr.mxu0 0.0
          %1368 = vmatpush1.msra.mxu0 %v1247
          %1369 = vmatprep.subr.mxu0 0.0
          %1370 = vmatpush1.msra.mxu0 %v1250
          %1371 = vmatprep.subr.mxu0 0.0
          %1372 = vmatpush1.msra.mxu0 0.0
          %1373 = vmatprep.subr.mxu0 0.0
          %1374 = vmatpush1.msra.mxu0 0.0
          %1375 = vmatprep.subr.mxu0 0.0
          %1376 = vmatpush1.msra.mxu0 0.0
          %1377 = vmatprep.subr.mxu0 0.0
          %1378 = vmatpush1.msra.mxu0 0.0
          %1379 = vmatprep.subr.mxu0 0.0
          %1380 = vmatpush1.msra.mxu0 0.0
          %1381 = vmatprep.subr.mxu0 0.0
          %1382 = vmatpush1.msra.mxu0 0.0
          %1383 = vmatprep.subr.mxu0 0.0
          %1384 = vmatpush1.msra.mxu0 0.0
          %1385 = vmatprep.subr.mxu0 0.0
          %1386 = vmatpush1.msra.mxu0 0.0
          %1387 = vmatprep.subr.mxu0 0.0
          %1388 = vmatpush1.msra.mxu0 0.0
          %1389 = vmatprep.subr.mxu0 0.0
          %1390 = vmatpush1.msra.mxu0 0.0
          %1391 = vmatprep.subr.mxu0 0.0
          %1392 = vmatpush1.msra.mxu0 0.0
          %1393 = vmatprep.subr.mxu0 0.0
          %1394 = vmatpush1.msra.mxu0 0.0
          %1395 = vmatprep.subr.mxu0 0.0
          %1396 = vmatpush1.msra.mxu0 0.0
          %1397 = vmatprep.subr.mxu0 0.0
          %1398 = vmatpush1.msra.mxu0 0.0
          %1399 = vmatprep.subr.mxu0 0.0
          %1400 = vmatpush1.msra.mxu0 0.0
          %1401 = vmatprep.subr.mxu0 0.0
          %1402 = vmatpush1.msra.mxu0 0.0
          %1403 = vmatprep.mubr.f32.mxu0 0.0
          %1404 = vmatmul.mubr.f32.gmra.mrb[0].mxu0 %v1202
          %v1405 = vpop.f32.mrb[0].mxu0
          %v1406 = vadd.f32 %v1264, %v1405
          %v1407 = vpop.f32.mrb[0].mxu0
          %1408 = vdwg.mxu0
          %v1409 = vtanh.pop %v1335
          %v1410 = vxor.u32 %v1337, 2147483648
          %v1411 = vmul.f32 %v1410, 1.442695
          %v1412 = vpow.pop %v1411
          %v1413 = vadd.f32 %v1412, 1.0
          %v1414 = vrcp.pop %v1413
          %v1415 = vmul.f32 1.0, %v1414
          %v1416 = vtanh.pop %v1337
          %v1417 = vmax.f32 %v1406, 0.0
          %v1418 = vand.u32 2147483647, %v1406
          %v1419 = vsub.f32 0.0, %v1418
          %v1420 = vmul.f32 %v1419, 1.442695
          %v1421 = vpow.pop %v1420
          %v1422 = vadd.f32 %v1421, 1.0
          %v1423 = vlog2.pop %v1422
          %v1424 = vmul.f32 %v1423, 0.6931472
          %v1425 = vadd.f32 %v1417, %v1424
          %v1426 = vxor.u32 %v1406, 2147483648
          %v1427 = vmul.f32 %v1426, 1.442695
          %v1428 = vpow.pop %v1427
          %v1429 = vadd.f32 %v1428, 1.0
          %v1430 = vrcp.pop %v1429
          %v1431 = vmul.f32 1.0, %v1430
          %vm1432 = vcmask 57384
          %v1433 = vsel %vm1432, %v1406, -inf
          %1434 = vmax.xlane.f32.xlu0 %v1433
          %v1435 = vpop.xlane.xlu0 %1434
          %v1436 = vsub.f32 %v1406, %v1435
          %v1437 = vmul.f32 %v1436, 1.442695
          %v1438 = vpow.pop %v1437
          %1440 = vrot.lane.b32.xlu0 %v1438, 123
          %v1441 = vpop.permute.xlu0 %1440
          %vm1443 = vcmask 16384
          %v1444 = vsel %vm1443, %v1441, 0.0
          %1445 = vadd.xlane.f32.xlu0 %v1444
          %v1446 = vpop.xlane.xlu0 %1445
          %v1447 = vrcp.pop %v1446
          %v1448 = vmul.f32 %v1438, %v1447
          %v1449 = vsub.f32 1.0, %v586
          %v1450 = vmul.f32 %v1449, %v585
          %v1451 = vadd.f32 %v586, %v1450
          %1453 = vset.pattern.permute.xlu0 2
          %1454 = vperm.xlu0 %1453, %v1431
          %v1455 = vpop.permute.xlu0 %1454
          %v1457 = vmul.f32 %v1455, %v584
          %v1458 = vsub.f32 1.0, %v1457
          %v1459 = vmul.f32 %v1451, %v1458
          %v1460 = vmul.f32 %v579, %v579
          %v1461 = vmul.f32 %v580, %v580
          %v1462 = vsel %vm550, %v1460, 0.0
          %1463 = vadd.xlane.f32.xlu0 %v1462
          %v1464 = vpop.xlane.xlu0 %1463
          %v1465 = vsel %vm550, %v1461, 0.0
          %1466 = vadd.xlane.f32.xlu0 %v1465
          %v1467 = vpop.xlane.xlu0 %1466
          %v1468 = vadd.f32 %v1464, 1e-06
          %v1469 = vadd.f32 %v1467, 1e-06
          %v1470 = vrsqrt.pop %v1468
          %v1471 = vrsqrt.pop %v1469
          %v1472 = vmul.f32 %v579, %v1470
          %v1473 = vmul.f32 %v580, %v1471
          %v1474 = vmul.f32 %v1409, %v1409
          %1476 = vrot.lane.b32.xlu0 %v1474, 64
          %v1477 = vpop.permute.xlu0 %1476
          %v1479 = vsel %vm548, %v1477, 0.0
          %1480 = vadd.xlane.f32.xlu0 %v1479
          %v1481 = vpop.xlane.xlu0 %1480
          %v1482 = vadd.f32 %v1481, 1e-06
          %v1483 = vrsqrt.pop %v1482
          %v1484 = vmul.f32 %v1409, %v1483
          %1486 = vrot.lane.b32.xlu0 %v1484, 64
          %v1487 = vpop.permute.xlu0 %1486
          %v1488 = vsel %vm550, %v1487, 0
          %v1491 = vsel %vm550, %v1472, 0
          %v1494 = vsel %vm550, %v1473, 0
          %1496 = vmatprep.subr.mxu0 0.0
          %1497 = vmatpush1.xpose.msra.mxu0 %v1491
          %1498 = vmatprep.subr.mxu0 0.0
          %1499 = vmatpush1.xpose.msra.mxu0 %v1494
          %1500 = vmatprep.subr.mxu0 0.0
          %1501 = vmatpush1.xpose.msra.mxu0 0.0
          %1502 = vmatprep.subr.mxu0 0.0
          %1503 = vmatpush1.xpose.msra.mxu0 0.0
          %1504 = vmatprep.subr.mxu0 0.0
          %1505 = vmatpush1.xpose.msra.mxu0 0.0
          %1506 = vmatprep.subr.mxu0 0.0
          %1507 = vmatpush1.xpose.msra.mxu0 0.0
          %1508 = vmatprep.subr.mxu0 0.0
          %1509 = vmatpush1.xpose.msra.mxu0 0.0
          %1510 = vmatprep.subr.mxu0 0.0
          %1511 = vmatpush1.xpose.msra.mxu0 0.0
          %1512 = vmatprep.subr.mxu0 0.0
          %1513 = vmatpush1.xpose.msra.mxu0 0.0
          %1514 = vmatprep.subr.mxu0 0.0
          %1515 = vmatpush1.xpose.msra.mxu0 0.0
          %1516 = vmatprep.subr.mxu0 0.0
          %1517 = vmatpush1.xpose.msra.mxu0 0.0
          %1518 = vmatprep.subr.mxu0 0.0
          %1519 = vmatpush1.xpose.msra.mxu0 0.0
          %1520 = vmatprep.subr.mxu0 0.0
          %1521 = vmatpush1.xpose.msra.mxu0 0.0
          %1522 = vmatprep.subr.mxu0 0.0
          %1523 = vmatpush1.xpose.msra.mxu0 0.0
          %1524 = vmatprep.subr.mxu0 0.0
          %1525 = vmatpush1.xpose.msra.mxu0 0.0
          %1526 = vmatprep.subr.mxu0 0.0
          %1527 = vmatpush1.xpose.msra.mxu0 0.0
          %1528 = vmatprep.subr.mxu0 0.0
          %1529 = vmatpush1.xpose.msra.mxu0 0.0
          %1530 = vmatprep.subr.mxu0 0.0
          %1531 = vmatpush1.xpose.msra.mxu0 0.0
          %1532 = vmatprep.subr.mxu0 0.0
          %1533 = vmatpush1.xpose.msra.mxu0 0.0
          %1534 = vmatprep.subr.mxu0 0.0
          %1535 = vmatpush1.xpose.msra.mxu0 0.0
          %1536 = vmatprep.subr.mxu0 0.0
          %1537 = vmatpush1.xpose.msra.mxu0 0.0
          %1538 = vmatprep.subr.mxu0 0.0
          %1539 = vmatpush1.xpose.msra.mxu0 0.0
          %1540 = vmatprep.subr.mxu0 0.0
          %1541 = vmatpush1.xpose.msra.mxu0 0.0
          %1542 = vmatprep.subr.mxu0 0.0
          %1543 = vmatpush1.xpose.msra.mxu0 0.0
          %1544 = vmatprep.subr.mxu0 0.0
          %1545 = vmatpush1.xpose.msra.mxu0 0.0
          %1546 = vmatprep.subr.mxu0 0.0
          %1547 = vmatpush1.xpose.msra.mxu0 0.0
          %1548 = vmatprep.subr.mxu0 0.0
          %1549 = vmatpush1.xpose.msra.mxu0 0.0
          %1550 = vmatprep.subr.mxu0 0.0
          %1551 = vmatpush1.xpose.msra.mxu0 0.0
          %1552 = vmatprep.subr.mxu0 0.0
          %1553 = vmatpush1.xpose.msra.mxu0 0.0
          %1554 = vmatprep.subr.mxu0 0.0
          %1555 = vmatpush1.xpose.msra.mxu0 0.0
          %1556 = vmatprep.subr.mxu0 0.0
          %1557 = vmatpush1.xpose.msra.mxu0 0.0
          %1558 = vmatprep.subr.mxu0 0.0
          %1559 = vmatpush1.xpose.msra.mxu0 0.0
          %1560 = vmatprep.mubr.f32.mxu0 0.0
          %1561 = vmatmul.mubr.f32.gmra.mrb[0].mxu0 %v1488
          %v1562 = vpop.f32.mrb[0].mxu0
          %v1563 = vadd.f32 0.0, %v1562
          %v1564 = vpop.f32.mrb[0].mxu0
          %1565 = vdwg.mxu0
          %1567 = vset.pattern.permute.xlu0 1
          %1568 = vperm.xlu0 %1567, %v1425
          %v1569 = vpop.permute.xlu0 %1568
          %v1571 = vmul.f32 %v1563, %v1569
          %v1572 = vsel %vm556, %v1571, -inf
          %1573 = vmax.xlane.f32.xlu0 %v1572
          %v1574 = vpop.xlane.xlu0 %1573
          %v1575 = vsub.f32 %v1571, %v1574
          %v1576 = vmul.f32 %v1575, 1.442695
          %v1577 = vpow.pop %v1576
          %v1578 = vsel %vm556, %v1577, 0.0
          %1579 = vadd.xlane.f32.xlu0 %v1578
          %v1580 = vpop.xlane.xlu0 %1579
          %v1581 = vrcp.pop %v1580
          %v1582 = vmul.f32 %v1577, %v1581
          %v1583 = vmul.f32 %v1459, 0.999999
          %v1584 = vadd.f32 %v1583, 1e-06
          %v1586 = vlaneseq
          %v1587 = vshrl.u32 %v1586, 7
          %v1588 = vsub.s32 0, %v1587
          %v1589 = vrot.slane %v1584, %v1588
          %v1591 = vsel %vm566, %v1589, 0.0
          %v1592 = vsel %vm567, %v1589, 0.0
          %v1593 = vsel %vm553, %v1591, 0.0
          %1594 = vadd.xlane.f32.xlu0 %v1593
          %v1595 = vpop.xlane.xlu0 %1594
          %v1596 = vsel %vm553, %v1592, 0.0
          %1597 = vadd.xlane.f32.xlu0 %v1596
          %v1598 = vpop.xlane.xlu0 %1597
          %vm1599 = vcmp.lt.f32.partialorder %v1595, %v1589
          %vm1600 = vcmp.lt.f32.partialorder %v1598, %v1589
          %vm1601 = vcmp.eq.f32.partialorder %v1595, %v1589
          %vm1602 = vcmp.eq.f32.partialorder %v1598, %v1589
          %vm1603 = vcmp.lt.s32.totalorder %v562, %v565
          %vm1604 = vcmp.lt.s32.totalorder %v563, %v565
          %vm1605 = vmand %vm1601, %vm1603
          %vm1606 = vmand %vm1602, %vm1604
          %vm1607 = vmor %vm1599, %vm1605
          %vm1608 = vmor %vm1600, %vm1606
          %v1609 = vlog2.pop %v1595
          %v1610 = vmul.f32 %v1609, 0.6931472
          %v1611 = vlog2.pop %v1598
          %v1612 = vmul.f32 %v1611, 0.6931472
          %v1613 = vsel %vm1607, %v1610, 0.0
          %v1614 = vsel %vm1608, %v1612, 0.0
          %v1615 = vsel %vm553, %v1613, 0.0
          %v1616 = vsel %vm553, %v1614, 0.0
          %v1617 = vadd.f32 %v1615, %v1616
          %v1618 = vrot.slane %v1617, 4
          %v1619 = vadd.f32 %v1617, %v1618
          %v1620 = vrot.slane %v1619, 2
          %v1621 = vadd.f32 %v1619, %v1620
          %v1622 = vrot.slane %v1621, 1
          %v1623 = vadd.f32 %v1621, %v1622
          %v1624 = vsub.f32 1.0, %v1584
          %v1625 = vmul.f32 %v1623, 1.442695
          %v1626 = vpow.pop %v1625
          %v1627 = vmul.f32 %v1624, %v1626
          %1628 = vset.pattern.permute.xlu0 3
          %1629 = vperm.xlu0 %1628, %v1431
          %v1630 = vpop.permute.xlu0 %1629
          %v1632 = vmul.f32 %v1630, %v1627
          %v1633 = vsub.f32 1.0, %v1431
          %1635 = vset.pattern.permute.xlu0 3
          %1636 = vperm.xlu0 %1635, %v1633
          %v1637 = vpop.permute.xlu0 %1636
          %v1639 = vmul.f32 %v1637, %v1582
          %v1640 = vadd.f32 %v1632, %v1639
          %1641 = vset.pattern.permute.xlu0 4
          %1642 = vperm.xlu0 %1641, %v1431
          %v1643 = vpop.permute.xlu0 %1642
          %v1645 = vmul.f32 %v1643, %v1640
          %v1646 = vlaneseq
          %v1647 = vshrl.u32 %v1646, 7
          %v1648 = vsub.s32 0, %v1647
          %v1649 = vrot.slane %v1645, %v1648
          %v1650 = vsel %vm566, %v1649, 0.0
          %v1651 = vsel %vm567, %v1649, 0.0
          %v1652 = vsel %vm553, %v1650, 0.0
          %1653 = vadd.xlane.f32.xlu0 %v1652
          %v1654 = vpop.xlane.xlu0 %1653
          %v1655 = vsel %vm553, %v1651, 0.0
          %1656 = vadd.xlane.f32.xlu0 %v1655
          %v1657 = vpop.xlane.xlu0 %1656
          %v1658 = vlaneseq
          %v1659 = vshrl.u32 %v1658, 7
          %v1660 = vsub.s32 0, %v1659
          %v1661 = vrot.slane %v1415, %v1660
          %v1662 = vmul.f32 %v1654, %v1661
          %v1663 = vmul.f32 %v1657, %v1661
          %v1664 = vsub.f32 1.0, %v1662
          %v1665 = vsub.f32 1.0, %v1663
          %v1666 = vmul.f32 %v579, %v1664
          %v1667 = vmul.f32 %v580, %v1665
          %v1668 = vlaneseq
          %v1669 = vshrl.u32 %v1668, 7
          %v1670 = vsub.s32 0, %v1669
          %v1671 = vrot.slane %v1416, %v1670
          %v1672 = vmul.f32 %v1654, %v1671
          %v1673 = vmul.f32 %v1657, %v1671
          %1676 = vrot.lane.b32.xlu0 %v1672, 64
          %v1677 = vpop.permute.xlu0 %1676
          %1678 = vrot.lane.b32.xlu0 %v1673, 64
          %v1679 = vpop.permute.xlu0 %1678
          %v1682 = vadd.f32 %v1666, %v1677
          %v1683 = vadd.f32 %v1667, %v1679
          %v1685 = vlaneseq
          %v1686 = vshrl.u32 %v1685, 7
          %v1687 = vsub.s32 0, %v1686
          %v1688 = vrot.slane %v583, %v1687
          %v1690 = vsub.f32 1.0, %v1654
          %v1691 = vsub.f32 1.0, %v1657
          %v1692 = vsub.f32 %v1690, %v1649
          %v1693 = vsub.f32 %v1691, %v1649
          %v1694 = vmul.f32 %v1692, %v581
          %v1695 = vmul.f32 %v1693, %v582
          %v1696 = vmul.f32 %v1654, %v1688
          %v1697 = vmul.f32 %v1657, %v1688
          %v1698 = vadd.f32 %v1694, %v1696
          %v1699 = vadd.f32 %v1695, %v1697
          %v1700 = vsel %vm566, 0.0, %v1698
          %v1701 = vsel %vm567, 0.0, %v1699
          %v1702 = vsel %vm556, %v1645, 0.0
          %1703 = vadd.xlane.f32.xlu0 %v1702
          %v1704 = vpop.xlane.xlu0 %1703
          %v1705 = vsub.f32 1.0, %v1704
          %v1706 = vmul.f32 %v1705, %v583
          %v1707 = vadd.f32 %v1706, %v1645
          %v1708 = vmul.f32 %v1682, %v1682
          %v1709 = vmul.f32 %v1683, %v1683
          %v1710 = vsel %vm550, %v1708, 0.0
          %1711 = vadd.xlane.f32.xlu0 %v1710
          %v1712 = vpop.xlane.xlu0 %1711
          %v1713 = vsel %vm550, %v1709, 0.0
          %1714 = vadd.xlane.f32.xlu0 %v1713
          %v1715 = vpop.xlane.xlu0 %1714
          %v1716 = vadd.f32 %v1712, 1e-06
          %v1717 = vadd.f32 %v1715, 1e-06
          %v1718 = vrsqrt.pop %v1716
          %v1719 = vrsqrt.pop %v1717
          %v1720 = vmul.f32 %v1682, %v1718
          %v1721 = vmul.f32 %v1683, %v1719
          %v1722 = vsel %vm548, %v1474, 0.0
          %1723 = vadd.xlane.f32.xlu0 %v1722
          %v1724 = vpop.xlane.xlu0 %1723
          %v1725 = vadd.f32 %v1724, 1e-06
          %v1726 = vrsqrt.pop %v1725
          %v1727 = vmul.f32 %v1409, %v1726
          %v1729 = vsel %vm550, %v1727, 0
          %v1732 = vsel %vm550, %v1720, 0
          %v1735 = vsel %vm550, %v1721, 0
          %1737 = vmatprep.subr.mxu0 0.0
          %1738 = vmatpush1.xpose.msra.mxu0 %v1732
          %1739 = vmatprep.subr.mxu0 0.0
          %1740 = vmatpush1.xpose.msra.mxu0 %v1735
          %1741 = vmatprep.subr.mxu0 0.0
          %1742 = vmatpush1.xpose.msra.mxu0 0.0
          %1743 = vmatprep.subr.mxu0 0.0
          %1744 = vmatpush1.xpose.msra.mxu0 0.0
          %1745 = vmatprep.subr.mxu0 0.0
          %1746 = vmatpush1.xpose.msra.mxu0 0.0
          %1747 = vmatprep.subr.mxu0 0.0
          %1748 = vmatpush1.xpose.msra.mxu0 0.0
          %1749 = vmatprep.subr.mxu0 0.0
          %1750 = vmatpush1.xpose.msra.mxu0 0.0
          %1751 = vmatprep.subr.mxu0 0.0
          %1752 = vmatpush1.xpose.msra.mxu0 0.0
          %1753 = vmatprep.subr.mxu0 0.0
          %1754 = vmatpush1.xpose.msra.mxu0 0.0
          %1755 = vmatprep.subr.mxu0 0.0
          %1756 = vmatpush1.xpose.msra.mxu0 0.0
          %1757 = vmatprep.subr.mxu0 0.0
          %1758 = vmatpush1.xpose.msra.mxu0 0.0
          %1759 = vmatprep.subr.mxu0 0.0
          %1760 = vmatpush1.xpose.msra.mxu0 0.0
          %1761 = vmatprep.subr.mxu0 0.0
          %1762 = vmatpush1.xpose.msra.mxu0 0.0
          %1763 = vmatprep.subr.mxu0 0.0
          %1764 = vmatpush1.xpose.msra.mxu0 0.0
          %1765 = vmatprep.subr.mxu0 0.0
          %1766 = vmatpush1.xpose.msra.mxu0 0.0
          %1767 = vmatprep.subr.mxu0 0.0
          %1768 = vmatpush1.xpose.msra.mxu0 0.0
          %1769 = vmatprep.subr.mxu0 0.0
          %1770 = vmatpush1.xpose.msra.mxu0 0.0
          %1771 = vmatprep.subr.mxu0 0.0
          %1772 = vmatpush1.xpose.msra.mxu0 0.0
          %1773 = vmatprep.subr.mxu0 0.0
          %1774 = vmatpush1.xpose.msra.mxu0 0.0
          %1775 = vmatprep.subr.mxu0 0.0
          %1776 = vmatpush1.xpose.msra.mxu0 0.0
          %1777 = vmatprep.subr.mxu0 0.0
          %1778 = vmatpush1.xpose.msra.mxu0 0.0
          %1779 = vmatprep.subr.mxu0 0.0
          %1780 = vmatpush1.xpose.msra.mxu0 0.0
          %1781 = vmatprep.subr.mxu0 0.0
          %1782 = vmatpush1.xpose.msra.mxu0 0.0
          %1783 = vmatprep.subr.mxu0 0.0
          %1784 = vmatpush1.xpose.msra.mxu0 0.0
          %1785 = vmatprep.subr.mxu0 0.0
          %1786 = vmatpush1.xpose.msra.mxu0 0.0
          %1787 = vmatprep.subr.mxu0 0.0
          %1788 = vmatpush1.xpose.msra.mxu0 0.0
          %1789 = vmatprep.subr.mxu0 0.0
          %1790 = vmatpush1.xpose.msra.mxu0 0.0
          %1791 = vmatprep.subr.mxu0 0.0
          %1792 = vmatpush1.xpose.msra.mxu0 0.0
          %1793 = vmatprep.subr.mxu0 0.0
          %1794 = vmatpush1.xpose.msra.mxu0 0.0
          %1795 = vmatprep.subr.mxu0 0.0
          %1796 = vmatpush1.xpose.msra.mxu0 0.0
          %1797 = vmatprep.subr.mxu0 0.0
          %1798 = vmatpush1.xpose.msra.mxu0 0.0
          %1799 = vmatprep.subr.mxu0 0.0
          %1800 = vmatpush1.xpose.msra.mxu0 0.0
          %1801 = vmatprep.mubr.f32.mxu0 0.0
          %1802 = vmatmul.mubr.f32.gmra.mrb[0].mxu0 %v1729
          %v1803 = vpop.f32.mrb[0].mxu0
          %v1804 = vadd.f32 0.0, %v1803
          %v1805 = vpop.f32.mrb[0].mxu0
          %1806 = vdwg.mxu0
          %1807 = vset.pattern.permute.xlu0 0
          %1808 = vperm.xlu0 %1807, %v1425
          %v1809 = vpop.permute.xlu0 %1808
          %v1811 = vmul.f32 %v1804, %v1809
          %v1812 = vsel %vm556, %v1811, -inf
          %1813 = vmax.xlane.f32.xlu0 %v1812
          %v1814 = vpop.xlane.xlu0 %1813
          %v1815 = vsub.f32 %v1811, %v1814
          %v1816 = vmul.f32 %v1815, 1.442695
          %v1817 = vpow.pop %v1816
          %v1818 = vsel %vm556, %v1817, 0.0
          %1819 = vadd.xlane.f32.xlu0 %v1818
          %v1820 = vpop.xlane.xlu0 %1819
          %v1821 = vrcp.pop %v1820
          %v1822 = vmul.f32 %v1817, %v1821
          %v1824 = vsel %vm553, %v584, 0
          %v1827 = vsel %vm553, %v1700, 0
          %v1830 = vsel %vm553, %v1701, 0
          %1832 = vmatprep.subr.mxu0 0.0
          %1833 = vmatpush1.xpose.msra.mxu0 %v1827
          %1834 = vmatprep.subr.mxu0 0.0
          %1835 = vmatpush1.xpose.msra.mxu0 %v1830
          %1836 = vmatprep.subr.mxu0 0.0
          %1837 = vmatpush1.xpose.msra.mxu0 0.0
          %1838 = vmatprep.subr.mxu0 0.0
          %1839 = vmatpush1.xpose.msra.mxu0 0.0
          %1840 = vmatprep.subr.mxu0 0.0
          %1841 = vmatpush1.xpose.msra.mxu0 0.0
          %1842 = vmatprep.subr.mxu0 0.0
          %1843 = vmatpush1.xpose.msra.mxu0 0.0
          %1844 = vmatprep.subr.mxu0 0.0
          %1845 = vmatpush1.xpose.msra.mxu0 0.0
          %1846 = vmatprep.subr.mxu0 0.0
          %1847 = vmatpush1.xpose.msra.mxu0 0.0
          %1848 = vmatprep.subr.mxu0 0.0
          %1849 = vmatpush1.xpose.msra.mxu0 0.0
          %1850 = vmatprep.subr.mxu0 0.0
          %1851 = vmatpush1.xpose.msra.mxu0 0.0
          %1852 = vmatprep.subr.mxu0 0.0
          %1853 = vmatpush1.xpose.msra.mxu0 0.0
          %1854 = vmatprep.subr.mxu0 0.0
          %1855 = vmatpush1.xpose.msra.mxu0 0.0
          %1856 = vmatprep.subr.mxu0 0.0
          %1857 = vmatpush1.xpose.msra.mxu0 0.0
          %1858 = vmatprep.subr.mxu0 0.0
          %1859 = vmatpush1.xpose.msra.mxu0 0.0
          %1860 = vmatprep.subr.mxu0 0.0
          %1861 = vmatpush1.xpose.msra.mxu0 0.0
          %1862 = vmatprep.subr.mxu0 0.0
          %1863 = vmatpush1.xpose.msra.mxu0 0.0
          %1864 = vmatprep.subr.mxu0 0.0
          %1865 = vmatpush1.xpose.msra.mxu0 0.0
          %1866 = vmatprep.subr.mxu0 0.0
          %1867 = vmatpush1.xpose.msra.mxu0 0.0
          %1868 = vmatprep.subr.mxu0 0.0
          %1869 = vmatpush1.xpose.msra.mxu0 0.0
          %1870 = vmatprep.subr.mxu0 0.0
          %1871 = vmatpush1.xpose.msra.mxu0 0.0
          %1872 = vmatprep.subr.mxu0 0.0
          %1873 = vmatpush1.xpose.msra.mxu0 0.0
          %1874 = vmatprep.subr.mxu0 0.0
          %1875 = vmatpush1.xpose.msra.mxu0 0.0
          %1876 = vmatprep.subr.mxu0 0.0
          %1877 = vmatpush1.xpose.msra.mxu0 0.0
          %1878 = vmatprep.subr.mxu0 0.0
          %1879 = vmatpush1.xpose.msra.mxu0 0.0
          %1880 = vmatprep.subr.mxu0 0.0
          %1881 = vmatpush1.xpose.msra.mxu0 0.0
          %1882 = vmatprep.subr.mxu0 0.0
          %1883 = vmatpush1.xpose.msra.mxu0 0.0
          %1884 = vmatprep.subr.mxu0 0.0
          %1885 = vmatpush1.xpose.msra.mxu0 0.0
          %1886 = vmatprep.subr.mxu0 0.0
          %1887 = vmatpush1.xpose.msra.mxu0 0.0
          %1888 = vmatprep.subr.mxu0 0.0
          %1889 = vmatpush1.xpose.msra.mxu0 0.0
          %1890 = vmatprep.subr.mxu0 0.0
          %1891 = vmatpush1.xpose.msra.mxu0 0.0
          %1892 = vmatprep.subr.mxu0 0.0
          %1893 = vmatpush1.xpose.msra.mxu0 0.0
          %1894 = vmatprep.subr.mxu0 0.0
          %1895 = vmatpush1.xpose.msra.mxu0 0.0
          %1896 = vmatprep.mubr.f32.mxu0 0.0
          %1897 = vmatmul.mubr.f32.gmra.mrb[0].mxu0 %v1824
          %v1898 = vpop.f32.mrb[0].mxu0
          %v1899 = vadd.f32 0.0, %v1898
          %v1900 = vpop.f32.mrb[0].mxu0
          %1901 = vdwg.mxu0
          %1902 = vmatprep.subr.mxu0 0.0
          %1903 = vmatpush1.msra.mxu0 %v1700
          %1904 = vmatprep.subr.mxu0 0.0
          %1905 = vmatpush1.msra.mxu0 %v1701
          %1906 = vmatprep.subr.mxu0 0.0
          %1907 = vmatpush1.msra.mxu0 0.0
          %1908 = vmatprep.subr.mxu0 0.0
          %1909 = vmatpush1.msra.mxu0 0.0
          %1910 = vmatprep.subr.mxu0 0.0
          %1911 = vmatpush1.msra.mxu0 0.0
          %1912 = vmatprep.subr.mxu0 0.0
          %1913 = vmatpush1.msra.mxu0 0.0
          %1914 = vmatprep.subr.mxu0 0.0
          %1915 = vmatpush1.msra.mxu0 0.0
          %1916 = vmatprep.subr.mxu0 0.0
          %1917 = vmatpush1.msra.mxu0 0.0
          %1918 = vmatprep.subr.mxu0 0.0
          %1919 = vmatpush1.msra.mxu0 0.0
          %1920 = vmatprep.subr.mxu0 0.0
          %1921 = vmatpush1.msra.mxu0 0.0
          %1922 = vmatprep.subr.mxu0 0.0
          %1923 = vmatpush1.msra.mxu0 0.0
          %1924 = vmatprep.subr.mxu0 0.0
          %1925 = vmatpush1.msra.mxu0 0.0
          %1926 = vmatprep.subr.mxu0 0.0
          %1927 = vmatpush1.msra.mxu0 0.0
          %1928 = vmatprep.subr.mxu0 0.0
          %1929 = vmatpush1.msra.mxu0 0.0
          %1930 = vmatprep.subr.mxu0 0.0
          %1931 = vmatpush1.msra.mxu0 0.0
          %1932 = vmatprep.subr.mxu0 0.0
          %1933 = vmatpush1.msra.mxu0 0.0
          %1934 = vmatprep.subr.mxu0 0.0
          %1935 = vmatpush1.msra.mxu0 0.0
          %1936 = vmatprep.subr.mxu0 0.0
          %1937 = vmatpush1.msra.mxu0 0.0
          %1938 = vmatprep.subr.mxu0 0.0
          %1939 = vmatpush1.msra.mxu0 0.0
          %1940 = vmatprep.subr.mxu0 0.0
          %1941 = vmatpush1.msra.mxu0 0.0
          %1942 = vmatprep.subr.mxu0 0.0
          %1943 = vmatpush1.msra.mxu0 0.0
          %1944 = vmatprep.subr.mxu0 0.0
          %1945 = vmatpush1.msra.mxu0 0.0
          %1946 = vmatprep.subr.mxu0 0.0
          %1947 = vmatpush1.msra.mxu0 0.0
          %1948 = vmatprep.subr.mxu0 0.0
          %1949 = vmatpush1.msra.mxu0 0.0
          %1950 = vmatprep.subr.mxu0 0.0
          %1951 = vmatpush1.msra.mxu0 0.0
          %1952 = vmatprep.subr.mxu0 0.0
          %1953 = vmatpush1.msra.mxu0 0.0
          %1954 = vmatprep.subr.mxu0 0.0
          %1955 = vmatpush1.msra.mxu0 0.0
          %1956 = vmatprep.subr.mxu0 0.0
          %1957 = vmatpush1.msra.mxu0 0.0
          %1958 = vmatprep.subr.mxu0 0.0
          %1959 = vmatpush1.msra.mxu0 0.0
          %1960 = vmatprep.subr.mxu0 0.0
          %1961 = vmatpush1.msra.mxu0 0.0
          %1962 = vmatprep.subr.mxu0 0.0
          %1963 = vmatpush1.msra.mxu0 0.0
          %1964 = vmatprep.subr.mxu0 0.0
          %1965 = vmatpush1.msra.mxu0 0.0
          %1966 = vmatprep.mubr.f32.mxu0 0.0
          %1967 = vmatmul.mubr.f32.gmra.mrb[0].mxu0 %v1824
          %v1968 = vpop.f32.mrb[0].mxu0
          %v1969 = vadd.f32 0.0, %v1968
          %v1970 = vpop.f32.mrb[0].mxu0
          %1971 = vdwg.mxu0
          %1973 = vset.pattern.permute.xlu0 5
          %1974 = vperm.xlu0 %1973, %v1448
          %v1975 = vpop.permute.xlu0 %1974
          %v1977 = vmul.f32 %v1975, %v1969
          %1978 = vset.pattern.permute.xlu0 6
          %1979 = vperm.xlu0 %1978, %v1448
          %v1980 = vpop.permute.xlu0 %1979
          %v1982 = vmul.f32 %v1980, %v1899
          %v1983 = vadd.f32 %v1977, %v1982
          %1984 = vset.pattern.permute.xlu0 7
          %1985 = vperm.xlu0 %1984, %v1448
          %v1986 = vpop.permute.xlu0 %1985
          %v1988 = vmul.f32 %v1986, %v1822
          %v1989 = vadd.f32 %v1983, %v1988
          %v1991 = vsel %vm553, %v1989, 0
          %1993 = vmatprep.subr.mxu0 0.0
          %1994 = vmatpush1.msra.mxu0 %v1682
          %1995 = vmatprep.subr.mxu0 0.0
          %1996 = vmatpush1.msra.mxu0 %v1683
          %1997 = vmatprep.subr.mxu0 0.0
          %1998 = vmatpush1.msra.mxu0 0.0
          %1999 = vmatprep.subr.mxu0 0.0
          %2000 = vmatpush1.msra.mxu0 0.0
          %2001 = vmatprep.subr.mxu0 0.0
          %2002 = vmatpush1.msra.mxu0 0.0
          %2003 = vmatprep.subr.mxu0 0.0
          %2004 = vmatpush1.msra.mxu0 0.0
          %2005 = vmatprep.subr.mxu0 0.0
          %2006 = vmatpush1.msra.mxu0 0.0
          %2007 = vmatprep.subr.mxu0 0.0
          %2008 = vmatpush1.msra.mxu0 0.0
          %2009 = vmatprep.subr.mxu0 0.0
          %2010 = vmatpush1.msra.mxu0 0.0
          %2011 = vmatprep.subr.mxu0 0.0
          %2012 = vmatpush1.msra.mxu0 0.0
          %2013 = vmatprep.subr.mxu0 0.0
          %2014 = vmatpush1.msra.mxu0 0.0
          %2015 = vmatprep.subr.mxu0 0.0
          %2016 = vmatpush1.msra.mxu0 0.0
          %2017 = vmatprep.subr.mxu0 0.0
          %2018 = vmatpush1.msra.mxu0 0.0
          %2019 = vmatprep.subr.mxu0 0.0
          %2020 = vmatpush1.msra.mxu0 0.0
          %2021 = vmatprep.subr.mxu0 0.0
          %2022 = vmatpush1.msra.mxu0 0.0
          %2023 = vmatprep.subr.mxu0 0.0
          %2024 = vmatpush1.msra.mxu0 0.0
          %2025 = vmatprep.subr.mxu0 0.0
          %2026 = vmatpush1.msra.mxu0 0.0
          %2027 = vmatprep.subr.mxu0 0.0
          %2028 = vmatpush1.msra.mxu0 0.0
          %2029 = vmatprep.subr.mxu0 0.0
          %2030 = vmatpush1.msra.mxu0 0.0
          %2031 = vmatprep.subr.mxu0 0.0
          %2032 = vmatpush1.msra.mxu0 0.0
          %2033 = vmatprep.subr.mxu0 0.0
          %2034 = vmatpush1.msra.mxu0 0.0
          %2035 = vmatprep.subr.mxu0 0.0
          %2036 = vmatpush1.msra.mxu0 0.0
          %2037 = vmatprep.subr.mxu0 0.0
          %2038 = vmatpush1.msra.mxu0 0.0
          %2039 = vmatprep.subr.mxu0 0.0
          %2040 = vmatpush1.msra.mxu0 0.0
          %2041 = vmatprep.subr.mxu0 0.0
          %2042 = vmatpush1.msra.mxu0 0.0
          %2043 = vmatprep.subr.mxu0 0.0
          %2044 = vmatpush1.msra.mxu0 0.0
          %2045 = vmatprep.subr.mxu0 0.0
          %2046 = vmatpush1.msra.mxu0 0.0
          %2047 = vmatprep.subr.mxu0 0.0
          %2048 = vmatpush1.msra.mxu0 0.0
          %2049 = vmatprep.subr.mxu0 0.0
          %2050 = vmatpush1.msra.mxu0 0.0
          %2051 = vmatprep.subr.mxu0 0.0
          %2052 = vmatpush1.msra.mxu0 0.0
          %2053 = vmatprep.subr.mxu0 0.0
          %2054 = vmatpush1.msra.mxu0 0.0
          %2055 = vmatprep.subr.mxu0 0.0
          %2056 = vmatpush1.msra.mxu0 0.0
          %2057 = vmatprep.mubr.f32.mxu0 0.0
          %2058 = vmatmul.mubr.f32.gmra.mrb[0].mxu0 %v1991
          %v2059 = vpop.f32.mrb[0].mxu0
          %v2060 = vadd.f32 0.0, %v2059
          %v2061 = vpop.f32.mrb[0].mxu0
          %2062 = vdwg.mxu0
          %2063 = vst [vmem:[#allocation2] sm:$0x1] %v1200
          %2064 = vst [vmem:[#allocation3] sm:$0x1] %v1198
          %2065 = vst.msk [vmem:[#allocation4] sm:$0x1] %vm548, %v2060
          %2066 = vst.msk [vmem:[#allocation5] sm:$0xff] %vm550, %v1682
          %2067 = vst.msk [vmem:[#allocation5 + $0x8] sm:$0xff] %vm550, %v1683
          %2068 = vst.msk [vmem:[#allocation6] sm:$0xff] %vm553, %v1700
          %2069 = vst.msk [vmem:[#allocation6 + $0x8] sm:$0xff] %vm553, %v1701
          %2070 = vst.msk [vmem:[#allocation7] sm:$0x1] %vm556, %v1707
          %2071 = vst.msk [vmem:[#allocation8] sm:$0x1] %vm556, %v1989
          %2072 = vst.msk [vmem:[#allocation9] sm:$0x1] %vm556, %v1645
          %2073 = vst.msk [vmem:[#allocation10] sm:$0x1] %vm556, %v1459
        $region81: #{tpu_custom_call.1} parent=51 // loop_footer
          %s571 = sadd.s32 %s569, 1
        $region82: #{tpu_custom_call.1} parent=51 // loop_footer_branch
          %568 = sbr.rel target = $region78
        $region83: #{tpu_custom_call.1} parent=51 // loop_exit
          _
        %v2074 = vld [vmem:[#allocation2] sm:$0x1]
        %v2075 = vmax.f32 %v2074, -20.0
        %v2076 = vmin.f32 %v2075, 20.0
        %v2077 = vld [vmem:[%s542] sm:$0xff]
        %v2078 = vld [vmem:[%s542 + $0x8] sm:$0xff]
        %v2079 = vld [vmem:[%s542 + $0x10] sm:$0xff]
        %v2080 = vld [vmem:[%s542 + $0x18] sm:$0xff]
        %v2081 = vld [vmem:[%s542 + $0x20] sm:$0xff]
        %v2082 = vld [vmem:[%s542 + $0x28] sm:$0xff]
        %v2083 = vld [vmem:[%s542 + $0x30] sm:$0xff]
        %v2084 = vld [vmem:[%s542 + $0x38] sm:$0xff]
        %v2085 = vld [vmem:[%s542 + $0x40] sm:$0xff]
        %v2086 = vld [vmem:[%s542 + $0x48] sm:$0xff]
        %v2087 = vld [vmem:[%s542 + $0x50] sm:$0xff]
        %v2088 = vld [vmem:[%s542 + $0x58] sm:$0xff]
        %v2089 = vld [vmem:[%s542 + $0x60] sm:$0xff]
        %v2090 = vld [vmem:[%s542 + $0x68] sm:$0xff]
        %v2091 = vld [vmem:[%s542 + $0x70] sm:$0xff]
        %v2092 = vld [vmem:[%s542 + $0x78] sm:$0xff]
        %v2093 = vld [vmem:[#allocation4] sm:$0x1]
        %v2094 = vld [vmem:[%s542 + $0x80] sm:$0xff]
        %v2095 = vld [vmem:[%s542 + $0x88] sm:$0xff]
        %v2096 = vld [vmem:[%s542 + $0x90] sm:$0xff]
        %v2097 = vld [vmem:[%s542 + $0x98] sm:$0xff]
        %v2098 = vld [vmem:[%s542 + $0xa0] sm:$0xff]
        %v2099 = vld [vmem:[%s542 + $0xa8] sm:$0xff]
        %v2100 = vld [vmem:[%s542 + $0xb0] sm:$0xff]
        %v2101 = vld [vmem:[%s542 + $0xb8] sm:$0xff]
        %v2103 = vsel %vm550, %v2093, 0
        %2105 = vmatprep.subr.mxu0 0.0
        %2106 = vmatpush1.msra.mxu0 %v2094
        %2107 = vmatprep.subr.mxu0 0.0
        %2108 = vmatpush1.msra.mxu0 %v2095
        %2109 = vmatprep.subr.mxu0 0.0
        %2110 = vmatpush1.msra.mxu0 %v2096
        %2111 = vmatprep.subr.mxu0 0.0
        %2112 = vmatpush1.msra.mxu0 %v2097
        %2113 = vmatprep.subr.mxu0 0.0
        %2114 = vmatpush1.msra.mxu0 %v2098
        %2115 = vmatprep.subr.mxu0 0.0
        %2116 = vmatpush1.msra.mxu0 %v2099
        %2117 = vmatprep.subr.mxu0 0.0
        %2118 = vmatpush1.msra.mxu0 %v2100
        %2119 = vmatprep.subr.mxu0 0.0
        %2120 = vmatpush1.msra.mxu0 %v2101
        %2121 = vmatprep.subr.mxu0 0.0
        %2122 = vmatpush1.msra.mxu0 0.0
        %2123 = vmatprep.subr.mxu0 0.0
        %2124 = vmatpush1.msra.mxu0 0.0
        %2125 = vmatprep.subr.mxu0 0.0
        %2126 = vmatpush1.msra.mxu0 0.0
        %2127 = vmatprep.subr.mxu0 0.0
        %2128 = vmatpush1.msra.mxu0 0.0
        %2129 = vmatprep.subr.mxu0 0.0
        %2130 = vmatpush1.msra.mxu0 0.0
        %2131 = vmatprep.subr.mxu0 0.0
        %2132 = vmatpush1.msra.mxu0 0.0
        %2133 = vmatprep.subr.mxu0 0.0
        %2134 = vmatpush1.msra.mxu0 0.0
        %2135 = vmatprep.subr.mxu0 0.0
        %2136 = vmatpush1.msra.mxu0 0.0
        %2137 = vmatprep.subr.mxu0 0.0
        %2138 = vmatpush1.msra.mxu0 0.0
        %2139 = vmatprep.subr.mxu0 0.0
        %2140 = vmatpush1.msra.mxu0 0.0
        %2141 = vmatprep.subr.mxu0 0.0
        %2142 = vmatpush1.msra.mxu0 0.0
        %2143 = vmatprep.subr.mxu0 0.0
        %2144 = vmatpush1.msra.mxu0 0.0
        %2145 = vmatprep.subr.mxu0 0.0
        %2146 = vmatpush1.msra.mxu0 0.0
        %2147 = vmatprep.subr.mxu0 0.0
        %2148 = vmatpush1.msra.mxu0 0.0
        %2149 = vmatprep.subr.mxu0 0.0
        %2150 = vmatpush1.msra.mxu0 0.0
        %2151 = vmatprep.subr.mxu0 0.0
        %2152 = vmatpush1.msra.mxu0 0.0
        %2153 = vmatprep.subr.mxu0 0.0
        %2154 = vmatpush1.msra.mxu0 0.0
        %2155 = vmatprep.subr.mxu0 0.0
        %2156 = vmatpush1.msra.mxu0 0.0
        %2157 = vmatprep.subr.mxu0 0.0
        %2158 = vmatpush1.msra.mxu0 0.0
        %2159 = vmatprep.subr.mxu0 0.0
        %2160 = vmatpush1.msra.mxu0 0.0
        %2161 = vmatprep.subr.mxu0 0.0
        %2162 = vmatpush1.msra.mxu0 0.0
        %2163 = vmatprep.subr.mxu0 0.0
        %2164 = vmatpush1.msra.mxu0 0.0
        %2165 = vmatprep.subr.mxu0 0.0
        %2166 = vmatpush1.msra.mxu0 0.0
        %2167 = vmatprep.subr.mxu0 0.0
        %2168 = vmatpush1.msra.mxu0 0.0
        %2169 = vmatprep.mubr.f32.mxu0 0.0
        %2170 = vmatmul.mubr.f32.gmra.mrb[0].mxu0 %v2103
        %v2171 = vpop.f32.mrb[0].mxu0
        %v2172 = vadd.f32 0.0, %v2171
        %v2173 = vpop.f32.mrb[0].mxu0
        %2174 = vdwg.mxu0
        %2175 = vmatprep.subr.mxu0 0.0
        %2176 = vmatpush1.msra.mxu0 %v2077
        %2177 = vmatprep.subr.mxu0 0.0
        %2178 = vmatpush1.msra.mxu0 %v2078
        %2179 = vmatprep.subr.mxu0 0.0
        %2180 = vmatpush1.msra.mxu0 %v2079
        %2181 = vmatprep.subr.mxu0 0.0
        %2182 = vmatpush1.msra.mxu0 %v2080
        %2183 = vmatprep.subr.mxu0 0.0
        %2184 = vmatpush1.msra.mxu0 %v2081
        %2185 = vmatprep.subr.mxu0 0.0
        %2186 = vmatpush1.msra.mxu0 %v2082
        %2187 = vmatprep.subr.mxu0 0.0
        %2188 = vmatpush1.msra.mxu0 %v2083
        %2189 = vmatprep.subr.mxu0 0.0
        %2190 = vmatpush1.msra.mxu0 %v2084
        %2191 = vmatprep.subr.mxu0 0.0
        %2192 = vmatpush1.msra.mxu0 %v2085
        %2193 = vmatprep.subr.mxu0 0.0
        %2194 = vmatpush1.msra.mxu0 %v2086
        %2195 = vmatprep.subr.mxu0 0.0
        %2196 = vmatpush1.msra.mxu0 %v2087
        %2197 = vmatprep.subr.mxu0 0.0
        %2198 = vmatpush1.msra.mxu0 %v2088
        %2199 = vmatprep.subr.mxu0 0.0
        %2200 = vmatpush1.msra.mxu0 %v2089
        %2201 = vmatprep.subr.mxu0 0.0
        %2202 = vmatpush1.msra.mxu0 %v2090
        %2203 = vmatprep.subr.mxu0 0.0
        %2204 = vmatpush1.msra.mxu0 %v2091
        %2205 = vmatprep.subr.mxu0 0.0
        %2206 = vmatpush1.msra.mxu0 %v2092
        %2207 = vmatprep.subr.mxu0 0.0
        %2208 = vmatpush1.msra.mxu0 0.0
        %2209 = vmatprep.subr.mxu0 0.0
        %2210 = vmatpush1.msra.mxu0 0.0
        %2211 = vmatprep.subr.mxu0 0.0
        %2212 = vmatpush1.msra.mxu0 0.0
        %2213 = vmatprep.subr.mxu0 0.0
        %2214 = vmatpush1.msra.mxu0 0.0
        %2215 = vmatprep.subr.mxu0 0.0
        %2216 = vmatpush1.msra.mxu0 0.0
        %2217 = vmatprep.subr.mxu0 0.0
        %2218 = vmatpush1.msra.mxu0 0.0
        %2219 = vmatprep.subr.mxu0 0.0
        %2220 = vmatpush1.msra.mxu0 0.0
        %2221 = vmatprep.subr.mxu0 0.0
        %2222 = vmatpush1.msra.mxu0 0.0
        %2223 = vmatprep.subr.mxu0 0.0
        %2224 = vmatpush1.msra.mxu0 0.0
        %2225 = vmatprep.subr.mxu0 0.0
        %2226 = vmatpush1.msra.mxu0 0.0
        %2227 = vmatprep.subr.mxu0 0.0
        %2228 = vmatpush1.msra.mxu0 0.0
        %2229 = vmatprep.subr.mxu0 0.0
        %2230 = vmatpush1.msra.mxu0 0.0
        %2231 = vmatprep.subr.mxu0 0.0
        %2232 = vmatpush1.msra.mxu0 0.0
        %2233 = vmatprep.subr.mxu0 0.0
        %2234 = vmatpush1.msra.mxu0 0.0
        %2235 = vmatprep.subr.mxu0 0.0
        %2236 = vmatpush1.msra.mxu0 0.0
        %2237 = vmatprep.subr.mxu0 0.0
        %2238 = vmatpush1.msra.mxu0 0.0
        %2239 = vmatprep.mubr.f32.mxu0 0.0
        %2240 = vmatmul.mubr.f32.gmra.mrb[0].mxu0 %v2076
        %v2241 = vpop.f32.mrb[0].mxu0
        %v2242 = vadd.f32 %v2172, %v2241
        %v2243 = vpop.f32.mrb[0].mxu0
        %2244 = vdwg.mxu0
        %v2245 = vld [vmem:[%s462] sm:$0x1]
        %v2246 = vadd.f32 %v2242, %v2245
        %2247 = vst.msk [vmem:[%s533] sm:$0x1] %vm548, %v2246
        %s2248 = sand.u32 %s255, 1
        %s2249 = scalar_lea.sflag [#allocation15], %s2248
        %s2250 = sand.u32 %s255, 1
        %s2251 = scalar_lea.vmem [#allocation24], %s2250
        // Predicated region
        $region84: #{tpu_custom_call.1} parent=51 // pred_check
          %p2252 = pneg %p265
        $region85: #{tpu_custom_call.1} parent=51 // pred_check_branch
          %2254 = sbr.rel (%p2252) target = $region87
        $region86: #{tpu_custom_call.1} parent=51 // pred_region
          %s2256 = ssub.s32 16, 16
          %2257 = vsyncadd %s2249, %s2256
          %s2258 = smul.addr %s39, 16
          %s2259 = scalar_lea.hbm %s9, %s2258
          %s2261 = sshll.u32 %s2251, 4
          %s2262 = int_to_ptr.vmem [resolvable:$true] %s2261
          %2264 = dma.vmem_to_hbm [thread:$0]  %s2262, 16, %s2259, %s2249
        $region87: #{tpu_custom_call.1} parent=51 // pred_fallthru
          _
      $region52: #{tpu_custom_call.1} parent=5 // pred_fallthru
        _
      %p2265 = scmp.le.s32.totalorder 2, %s34
      // Predicated region
      $region88: #{tpu_custom_call.1} parent=5 // pred_check
        %p2266 = pneg %p2265
      $region89: #{tpu_custom_call.1} parent=5 // pred_check_branch
        %2268 = sbr.rel (%p2266) target = $region91
      $region90: #{tpu_custom_call.1} parent=5 // pred_region
        %s2269 = ssub.s32 %s34, 2
        // Predicated region
        $region92: #{tpu_custom_call.1} parent=90 // pred_check
          %p2270 = pneg %p271
        $region93: #{tpu_custom_call.1} parent=90 // pred_check_branch
          %2272 = sbr.rel (%p2270) target = $region95
        $region94: #{tpu_custom_call.1} parent=90 // pred_region
          %s2273 = sand.u32 %s256, 1
          %s2274 = scalar_lea.sflag [#allocation15], %s2273
          %s2275 = sand.u32 %s256, 1
          %s2276 = scalar_lea.vmem [#allocation24], %s2275
          %2277 = dma.done %s2274, 16
        $region95: #{tpu_custom_call.1} parent=90 // pred_fallthru
          _
      $region91: #{tpu_custom_call.1} parent=5 // pred_fallthru
        _
    $region6: #{tpu_custom_call.1} parent=1 // loop_footer
      %s38 = sadd.s32 1, %s34
    $region7: #{tpu_custom_call.1} parent=1 // loop_footer_branch
      %33 = sbr.rel target = $region3
    $region8: #{tpu_custom_call.1} parent=1 // loop_exit
      _
    %2278 = vsyncpa [#allocation14], 1
    %s2279 = scalar_lea.sflag [#allocation14], 1
    %2280 = vsyncpa %s2279, 1
    %2281 = vsyncpa [#allocation17], 1
    %s2282 = scalar_lea.sflag [#allocation17], 1
    %2283 = vsyncpa %s2282, 1
    %2284 = vsyncpa [#allocation20], 1
    %s2285 = scalar_lea.sflag [#allocation20], 1
    %2286 = vsyncpa %s2285, 1
    %2287 = vsyncpa [#allocation23], 1
    %s2288 = scalar_lea.sflag [#allocation23], 1
    %2289 = vsyncpa %s2288, 1
    %2290 = vsyncpa [#allocation15], 1
    %s2291 = scalar_lea.sflag [#allocation15], 1
    %2292 = vsyncpa %s2291, 1

</llo_original>
